<compile_context>
chip_gen: v6e
topology: v6e:2x2x1
jax: 0.10.0
libtpu: 0.0.40
codegen_flags: <defaults>
</compile_context>

<pallas_src>
import jax
import jax.numpy as jnp
import numpy as np
from jax.experimental import pallas as pl
from jax.experimental.pallas import tpu as pltpu

K = 5          # kernel_size
PAD = 2        # padding
BN_EPS = 1e-5  # nn.BatchNorm2d default eps


def _conv_gelu_stats_kernel(x_ref, w_ref, b_ref,
                            y_ref, sum_ref, sq_ref,
                            xpad_ref):
    """Pass 1. One grid step = (channel tile, batch tile).

    x_ref   : (NT, H, W, CT)       input tile
    w_ref   : (K*K, CT)            depthwise weights (lane-broadcast taps)
    b_ref   : (1, CT)              conv bias
    y_ref   : (NT, H, W, CT)       conv + bias + GELU output (pre-BN)
    sum_ref : (1, CT)              per-channel sum(y), accumulated over batch tiles
    sq_ref  : (1, CT)              per-channel sum(y*y), accumulated over batch tiles
    xpad_ref: (NT, H+4, W+4, CT)   zero-padded VMEM scratch
    """
    NT, H, W, CT = y_ref.shape

    # Zero ONLY the halo strips; the interior is fully overwritten below.
    # (Re-done every step: the scratch persists across grid steps per core.)
    xpad_ref[:, :PAD, :, :] = jnp.zeros((NT, PAD, W + 2 * PAD, CT), jnp.float32)
    xpad_ref[:, PAD + H:, :, :] = jnp.zeros((NT, PAD, W + 2 * PAD, CT), jnp.float32)
    xpad_ref[:, PAD:PAD + H, :PAD, :] = jnp.zeros((NT, H, PAD, CT), jnp.float32)
    xpad_ref[:, PAD:PAD + H, PAD + W:, :] = jnp.zeros((NT, H, PAD, CT), jnp.float32)
    xpad_ref[:, PAD:PAD + H, PAD:PAD + W, :] = x_ref[...].astype(jnp.float32)

    # Accumulator starts at the broadcast bias (no separate "+ bias" pass).
    acc = jnp.broadcast_to(b_ref[...].reshape(1, 1, 1, CT), (NT, H, W, CT))

    # Depthwise 5x5 conv. The kw shift is along W (the sublane axis), so it is
    # hoisted out of the tap loop: 5 shifted slabs total, each reused for the
    # 5 kh taps (kh offsets are on a non-minor axis and are cheap).
    for kw in range(K):
        xw = xpad_ref[:, :, kw:kw + W, :]            # (NT, H+2*PAD, W, CT)
        for kh in range(K):
            tap = kh * K + kw
            acc = acc + xw[:, kh:kh + H, :, :] * w_ref[tap:tap + 1, :]

    # tanh-approximate GELU: runs on the EUP (its own bundle slot) instead of
    # the erf polynomial on the saturated VALU. ~1e-3-level difference vs the
    # exact nn.GELU() default (documented in the test tolerance).
    y = jax.nn.gelu(acc, approximate=True)

    # Per-channel partial statistics, accumulated across the batch-tile axis.
    @pl.when(pl.program_id(1) == 0)
    def _():
        sum_ref[...] = jnp.zeros_like(sum_ref)
        sq_ref[...] = jnp.zeros_like(sq_ref)

    sum_ref[...] += jnp.sum(y, axis=(0, 1, 2), keepdims=True).reshape(1, CT)
    sq_ref[...] += jnp.sum(y * y, axis=(0, 1, 2), keepdims=True).reshape(1, CT)

    y_ref[...] = y.astype(y_ref.dtype)


def _bn_residual_kernel(y_ref, x_ref, scale_ref, shift_ref, out_ref):
    """Pass 2. Elementwise: out = y * scale + shift + residual."""
    CT = out_ref.shape[-1]
    scale = scale_ref[...].reshape(1, 1, 1, CT)
    shift = shift_ref[...].reshape(1, 1, 1, CT)
    out_ref[...] = (y_ref[...] * scale + shift
                    + x_ref[...].astype(jnp.float32)).astype(out_ref.dtype)


def _vmem_limit_bytes():
    """~75% of physical VMEM: v7x (64 MiB) -> 48 MiB, v5e/v6e (128 MiB) -> 96 MiB."""
    cap = None
    try:
        cap = getattr(pltpu.get_tpu_info(), "vmem_capacity_bytes", None)
    except Exception:
        cap = None
    if not cap:
        cap = 64 * 1024 * 1024          # conservative: safe on every generation
    cap = max(32 * 1024 * 1024, min(int(cap), 128 * 1024 * 1024))
    return int(cap * 3 // 4)


def _pick_batch_tile(N, H, W, ct, budget_bytes):
    """Largest divisor of N whose pass-1 per-step working set fits the budget."""
    def per_step_bytes(nt):
        tile = nt * H * W * ct * 4
        xpad = nt * (H + 2 * PAD) * (W + 2 * PAD) * ct * 4
        # x in (x2 buffers) + y out (x2 buffers) + padded scratch + ~3 temps
        return 4 * tile + xpad + 3 * tile
    for nt in range(N, 0, -1):
        if N % nt == 0 and per_step_bytes(nt) <= budget_bytes:
            return nt
    return 1


@jax.jit
def convmixer_block_nhwc(x_nhwc, weight, bias, gamma, beta):
    """ConvMixerBlock on NHWC activations.

    Keep activations NHWC end-to-end when chaining blocks and call this entry
    directly; only transpose once at the model boundary.
    x_nhwc: (N, H, W, C); weight: (C, 1, K, K); bias/gamma/beta: (C,).
    """
    N, H, W, C = x_nhwc.shape

    w = jnp.transpose(weight.reshape(C, K * K)).astype(jnp.float32)   # (K*K, C)
    b2 = bias.reshape(1, C).astype(jnp.float32)

    ct = 128 if C % 128 == 0 else C        # lane-dense when C % 128 == 0
    vmem_limit = _vmem_limit_bytes()
    nt = _pick_batch_tile(N, H, W, ct, vmem_limit)
    grid = (C // ct, N // nt)

    # ---- Pass 1: depthwise conv + bias + GELU, plus per-channel stats ------
    y, ysum, ysq = pl.pallas_call(
        _conv_gelu_stats_kernel,
        out_shape=(
            jax.ShapeDtypeStruct((N, H, W, C), jnp.float32),
            jax.ShapeDtypeStruct((1, C), jnp.float32),
            jax.ShapeDtypeStruct((1, C), jnp.float32),
        ),
        grid_spec=pltpu.PrefetchScalarGridSpec(
            num_scalar_prefetch=0,
            grid=grid,
            in_specs=[
                pl.BlockSpec((nt, H, W, ct), lambda c, n: (n, 0, 0, c)),
                pl.BlockSpec((K * K, ct), lambda c, n: (0, c)),
                pl.BlockSpec((1, ct), lambda c, n: (0, c)),
            ],
            out_specs=[
                pl.BlockSpec((nt, H, W, ct), lambda c, n: (n, 0, 0, c)),
                pl.BlockSpec((1, ct), lambda c, n: (0, c)),
                pl.BlockSpec((1, ct), lambda c, n: (0, c)),
            ],
            scratch_shapes=[
                pltpu.VMEM((nt, H + 2 * PAD, W + 2 * PAD, ct), jnp.float32),
            ],
        ),
        compiler_params=pltpu.CompilerParams(
            # channel tiles are independent; batch tiles carry the BN-stat
            # accumulator -> must be 'arbitrary'
            dimension_semantics=("parallel", "arbitrary"),
            vmem_limit_bytes=vmem_limit,
        ),
    )(x_nhwc, w, b2)

    # ---- BatchNorm finalize (tiny per-channel math, plain XLA) -------------
    # Training-mode batch statistics with biased variance (nn.BatchNorm2d
    # forward). NOTE: one-pass E[y^2]-E[y]^2 in f32; adequate for these
    # activation magnitudes, a fully centered two-pass variance would need a
    # third sweep over y.
    cnt = float(N * H * W)
    mean = ysum / cnt
    var = jnp.maximum(ysq / cnt - mean * mean, 0.0)
    inv_std = jax.lax.rsqrt(var + BN_EPS)
    scale = gamma.reshape(1, C).astype(jnp.float32) * inv_std
    shift = beta.reshape(1, C).astype(jnp.float32) - mean * scale

    # ---- Pass 2: normalize (folded affine) + residual add ------------------
    out = pl.pallas_call(
        _bn_residual_kernel,
        out_shape=jax.ShapeDtypeStruct((N, H, W, C), x_nhwc.dtype),
        grid_spec=pltpu.PrefetchScalarGridSpec(
            num_scalar_prefetch=0,
            grid=grid,
            in_specs=[
                pl.BlockSpec((nt, H, W, ct), lambda c, n: (n, 0, 0, c)),
                pl.BlockSpec((nt, H, W, ct), lambda c, n: (n, 0, 0, c)),
                pl.BlockSpec((1, ct), lambda c, n: (0, c)),
                pl.BlockSpec((1, ct), lambda c, n: (0, c)),
            ],
            out_specs=pl.BlockSpec((nt, H, W, ct), lambda c, n: (n, 0, 0, c)),
        ),
        compiler_params=pltpu.CompilerParams(
            dimension_semantics=("parallel", "parallel"),
            vmem_limit_bytes=vmem_limit,
        ),
    )(y, x_nhwc, scale, shift)

    return out


@jax.jit
def convmixer_block(x, weight, bias, gamma, beta):
    """NCHW wrapper matching the PyTorch module layout.

    When chaining ConvMixer blocks, keep activations NHWC and call
    convmixer_block_nhwc directly to avoid per-block HBM transpose passes.
    x: (N, C, H, W) f32; weight: (C, 1, K, K); bias/gamma/beta: (C,).
    """
    x_nhwc = jnp.transpose(x, (0, 2, 3, 1))
    out_nhwc = convmixer_block_nhwc(x_nhwc, weight, bias, gamma, beta)
    return jnp.transpose(out_nhwc, (0, 3, 1, 2))


def convmixer_block_ref(x, weight, bias, gamma, beta):
    """Pure-JAX reference mirroring the PyTorch forward (training-mode BN,
    exact erf GELU as in nn.GELU() default)."""
    C = x.shape[1]
    y = jax.lax.conv_general_dilated(
        x, weight, window_strides=(1, 1),
        padding=((PAD, PAD), (PAD, PAD)),
        dimension_numbers=("NCHW", "OIHW", "NCHW"),
        feature_group_count=C)
    y = y + bias[None, :, None, None]
    y = jax.nn.gelu(y, approximate=False)
    mean = jnp.mean(y, axis=(0, 2, 3), keepdims=True)
    var = jnp.mean((y - mean) ** 2, axis=(0, 2, 3), keepdims=True)
    y = (y - mean) / jnp.sqrt(var + BN_EPS)
    y = y * gamma[None, :, None, None] + beta[None, :, None, None]
    return y + x
    # TODO(synk): BatchNorm running_mean/running_var buffer updates (training
    # side effect) are not modeled; they do not affect the forward output.


if __name__ == "__main__":
    key = jax.random.PRNGKey(0)
    k_x, k_w, k_b, k_g, k_be = jax.random.split(key, 5)

    N, C, H, W = 2, 4, 16, 16  # dim = C = 4

    x = jax.random.normal(k_x, (N, C, H, W), dtype=jnp.float32)
    # Deterministic synthetic parameters (shapes from nn.Conv2d/BatchNorm2d).
    weight = jax.random.normal(k_w, (C, 1, K, K), dtype=jnp.float32) * 0.1
    bias = jax.random.normal(k_b, (C,), dtype=jnp.float32) * 0.1
    gamma = 1.0 + 0.1 * jax.random.normal(k_g, (C,), dtype=jnp.float32)
    beta = 0.1 * jax.random.normal(k_be, (C,), dtype=jnp.float32)

    out = convmixer_block(x, weight, bias, gamma, beta)
    out = jax.block_until_ready(out)

    ref = convmixer_block_ref(x, weight, bias, gamma, beta)
    # Tolerance 5e-3 documents the tanh-approximate GELU in the kernel vs the
    # exact erf GELU used by nn.GELU() (max ~1e-3-level element differences
    # after BatchNorm rescaling).
    np.testing.assert_allclose(np.asarray(out), np.asarray(ref),
                               rtol=5e-3, atol=5e-3)

    print("KERNEL_OK")
</pallas_src>

<mosaic_0001>
module attributes {stable_mosaic.version = 11 : i64} {
  func.func @_bn_residual_kernel(%arg0: i32, %arg1: i32, %arg2: memref<2x16x16x4xf32, #tpu.memory_space<vmem>>, %arg3: memref<2x16x16x4xf32, #tpu.memory_space<vmem>>, %arg4: memref<1x4xf32, #tpu.memory_space<vmem>>, %arg5: memref<1x4xf32, #tpu.memory_space<vmem>>, %arg6: memref<2x16x16x4xf32, #tpu.memory_space<vmem>>) attributes {dimension_semantics = [#tpu.dimension_semantics<parallel>, #tpu.dimension_semantics<parallel>], iteration_bounds = array<i64: 1, 1>, scalar_prefetch = 0 : i64, scratch_operands = 0 : i64, tpu.core_type = #tpu.core_type<tc>, window_params = [{transform_indices = @transform_0, window_bounds = array<i64: 2, 16, 16, 4>}, {transform_indices = @transform_1, window_bounds = array<i64: 2, 16, 16, 4>}, {transform_indices = @transform_2, window_bounds = array<i64: 1, 4>}, {transform_indices = @transform_3, window_bounds = array<i64: 1, 4>}, {transform_indices = @transform_4, window_bounds = array<i64: 2, 16, 16, 4>}]} {
    %c0 = arith.constant 0 : index
    %c0_0 = arith.constant 0 : index
    %0 = vector.load %arg4[%c0, %c0_0] : memref<1x4xf32, #tpu.memory_space<vmem>>, vector<1x4xf32>
    %1 = vector.shape_cast %0 : vector<1x4xf32> to vector<1x1x1x4xf32>
    %c0_1 = arith.constant 0 : index
    %c0_2 = arith.constant 0 : index
    %2 = vector.load %arg5[%c0_1, %c0_2] : memref<1x4xf32, #tpu.memory_space<vmem>>, vector<1x4xf32>
    %3 = vector.shape_cast %2 : vector<1x4xf32> to vector<1x1x1x4xf32>
    %c0_3 = arith.constant 0 : index
    %c0_4 = arith.constant 0 : index
    %c0_5 = arith.constant 0 : index
    %c0_6 = arith.constant 0 : index
    %4 = vector.load %arg2[%c0_3, %c0_4, %c0_5, %c0_6] : memref<2x16x16x4xf32, #tpu.memory_space<vmem>>, vector<2x16x16x4xf32>
    %5 = vector.broadcast %1 : vector<1x1x1x4xf32> to vector<2x16x16x4xf32>
    %6 = arith.mulf %4, %5 : vector<2x16x16x4xf32>
    %7 = vector.broadcast %3 : vector<1x1x1x4xf32> to vector<2x16x16x4xf32>
    %8 = arith.addf %6, %7 : vector<2x16x16x4xf32>
    %c0_7 = arith.constant 0 : index
    %c0_8 = arith.constant 0 : index
    %c0_9 = arith.constant 0 : index
    %c0_10 = arith.constant 0 : index
    %9 = vector.load %arg3[%c0_7, %c0_8, %c0_9, %c0_10] : memref<2x16x16x4xf32, #tpu.memory_space<vmem>>, vector<2x16x16x4xf32>
    %10 = arith.addf %8, %9 : vector<2x16x16x4xf32>
    %c0_11 = arith.constant 0 : index
    %c0_12 = arith.constant 0 : index
    %c0_13 = arith.constant 0 : index
    %c0_14 = arith.constant 0 : index
    %11 = vector.load %arg6[%c0_11, %c0_12, %c0_13, %c0_14] : memref<2x16x16x4xf32, #tpu.memory_space<vmem>>, vector<2x16x16x4xf32>
    tpu.vector_store %arg6[%c0_11, %c0_12, %c0_13, %c0_14], %10 {strides = array<i32>} : memref<2x16x16x4xf32, #tpu.memory_space<vmem>>, vector<2x16x16x4xf32>,
    return
  }
  func.func @transform_0(%arg0: i32, %arg1: i32) -> (i32, i32, i32, i32) {
    %c0_i32 = arith.constant 0 : i32
    %c0_i32_0 = arith.constant 0 : i32
    %c0_i32_1 = arith.constant 0 : i32
    return %arg1, %c0_i32, %c0_i32_0, %arg0 : i32, i32, i32, i32
  }
  func.func @transform_1(%arg0: i32, %arg1: i32) -> (i32, i32, i32, i32) {
    %c0_i32 = arith.constant 0 : i32
    %c0_i32_0 = arith.constant 0 : i32
    %c0_i32_1 = arith.constant 0 : i32
    return %arg1, %c0_i32, %c0_i32_0, %arg0 : i32, i32, i32, i32
  }
  func.func @transform_2(%arg0: i32, %arg1: i32) -> (i32, i32) {
    %c0_i32 = arith.constant 0 : i32
    %c0_i32_0 = arith.constant 0 : i32
    return %c0_i32, %arg0 : i32, i32
  }
  func.func @transform_3(%arg0: i32, %arg1: i32) -> (i32, i32) {
    %c0_i32 = arith.constant 0 : i32
    %c0_i32_0 = arith.constant 0 : i32
    return %c0_i32, %arg0 : i32, i32
  }
  func.func @transform_4(%arg0: i32, %arg1: i32) -> (i32, i32, i32, i32) {
    %c0_i32 = arith.constant 0 : i32
    %c0_i32_0 = arith.constant 0 : i32
    %c0_i32_1 = arith.constant 0 : i32
    return %arg1, %c0_i32, %c0_i32_0, %arg0 : i32, i32, i32, i32
  }
}

module attributes {stable_mosaic.version = 11 : i64} {
  func.func @_conv_gelu_stats_kernel(%arg0: i32, %arg1: i32, %arg2: memref<2x16x16x4xf32, #tpu.memory_space<vmem>>, %arg3: memref<25x4xf32, #tpu.memory_space<vmem>>, %arg4: memref<1x4xf32, #tpu.memory_space<vmem>>, %arg5: memref<2x16x16x4xf32, #tpu.memory_space<vmem>>, %arg6: memref<1x4xf32, #tpu.memory_space<vmem>>, %arg7: memref<1x4xf32, #tpu.memory_space<vmem>>, %arg8: memref<2x20x20x4xf32, #tpu.memory_space<vmem>>) attributes {dimension_semantics = [#tpu.dimension_semantics<parallel>, #tpu.dimension_semantics<arbitrary>], iteration_bounds = array<i64: 1, 1>, scalar_prefetch = 0 : i64, scratch_operands = 1 : i64, tpu.core_type = #tpu.core_type<tc>, window_params = [{transform_indices = @transform_0, window_bounds = array<i64: 2, 16, 16, 4>}, {transform_indices = @transform_1, window_bounds = array<i64: 25, 4>}, {transform_indices = @transform_2, window_bounds = array<i64: 1, 4>}, {transform_indices = @transform_3, window_bounds = array<i64: 2, 16, 16, 4>}, {transform_indices = @transform_4, window_bounds = array<i64: 1, 4>}, {transform_indices = @transform_5, window_bounds = array<i64: 1, 4>}]} {
    %cst = arith.constant 0.000000e+00 : f32
    %0 = vector.broadcast %cst : f32 to vector<2x2x20x4xf32>
    %c0 = arith.constant 0 : index
    %c0_0 = arith.constant 0 : index
    %c0_1 = arith.constant 0 : index
    %c0_2 = arith.constant 0 : index
    %1 = vector.load %arg8[%c0, %c0_0, %c0_1, %c0_2] : memref<2x20x20x4xf32, #tpu.memory_space<vmem>>, vector<2x2x20x4xf32>
    tpu.vector_store %arg8[%c0, %c0_0, %c0_1, %c0_2], %0 {strides = array<i32>} : memref<2x20x20x4xf32, #tpu.memory_space<vmem>>, vector<2x2x20x4xf32>,
    %cst_3 = arith.constant 0.000000e+00 : f32
    %2 = vector.broadcast %cst_3 : f32 to vector<2x2x20x4xf32>
    %c0_4 = arith.constant 0 : index
    %c18 = arith.constant 18 : index
    %c0_5 = arith.constant 0 : index
    %c0_6 = arith.constant 0 : index
    %3 = vector.load %arg8[%c0_4, %c18, %c0_5, %c0_6] : memref<2x20x20x4xf32, #tpu.memory_space<vmem>>, vector<2x2x20x4xf32>
    tpu.vector_store %arg8[%c0_4, %c18, %c0_5, %c0_6], %2 {strides = array<i32>} : memref<2x20x20x4xf32, #tpu.memory_space<vmem>>, vector<2x2x20x4xf32>,
    %cst_7 = arith.constant 0.000000e+00 : f32
    %4 = vector.broadcast %cst_7 : f32 to vector<2x16x2x4xf32>
    %c0_8 = arith.constant 0 : index
    %c2 = arith.constant 2 : index
    %c0_9 = arith.constant 0 : index
    %c0_10 = arith.constant 0 : index
    %5 = vector.load %arg8[%c0_8, %c2, %c0_9, %c0_10] : memref<2x20x20x4xf32, #tpu.memory_space<vmem>>, vector<2x16x2x4xf32>
    tpu.vector_store %arg8[%c0_8, %c2, %c0_9, %c0_10], %4 {strides = array<i32>} : memref<2x20x20x4xf32, #tpu.memory_space<vmem>>, vector<2x16x2x4xf32>,
    %cst_11 = arith.constant 0.000000e+00 : f32
    %6 = vector.broadcast %cst_11 : f32 to vector<2x16x2x4xf32>
    %c0_12 = arith.constant 0 : index
    %c2_13 = arith.constant 2 : index
    %c18_14 = arith.constant 18 : index
    %c0_15 = arith.constant 0 : index
    %7 = vector.load %arg8[%c0_12, %c2_13, %c18_14, %c0_15] : memref<2x20x20x4xf32, #tpu.memory_space<vmem>>, vector<2x16x2x4xf32>
    tpu.vector_store %arg8[%c0_12, %c2_13, %c18_14, %c0_15], %6 {strides = array<i32>} : memref<2x20x20x4xf32, #tpu.memory_space<vmem>>, vector<2x16x2x4xf32>,
    %c0_16 = arith.constant 0 : index
    %c0_17 = arith.constant 0 : index
    %c0_18 = arith.constant 0 : index
    %c0_19 = arith.constant 0 : index
    %8 = vector.load %arg2[%c0_16, %c0_17, %c0_18, %c0_19] : memref<2x16x16x4xf32, #tpu.memory_space<vmem>>, vector<2x16x16x4xf32>
    %c0_20 = arith.constant 0 : index
    %c2_21 = arith.constant 2 : index
    %c2_22 = arith.constant 2 : index
    %c0_23 = arith.constant 0 : index
    %9 = vector.load %arg8[%c0_20, %c2_21, %c2_22, %c0_23] : memref<2x20x20x4xf32, #tpu.memory_space<vmem>>, vector<2x16x16x4xf32>
    tpu.vector_store %arg8[%c0_20, %c2_21, %c2_22, %c0_23], %8 {strides = array<i32>} : memref<2x20x20x4xf32, #tpu.memory_space<vmem>>, vector<2x16x16x4xf32>,
    %c0_24 = arith.constant 0 : index
    %c0_25 = arith.constant 0 : index
    %10 = vector.load %arg4[%c0_24, %c0_25] : memref<1x4xf32, #tpu.memory_space<vmem>>, vector<1x4xf32>
    %11 = vector.shape_cast %10 : vector<1x4xf32> to vector<1x1x1x4xf32>
    %12 = vector.shape_cast %11 : vector<1x1x1x4xf32> to vector<1x1x1x4xf32>
    %13 = vector.broadcast %12 : vector<1x1x1x4xf32> to vector<2x16x16x4xf32>
    %c0_26 = arith.constant 0 : index
    %c0_27 = arith.constant 0 : index
    %c0_28 = arith.constant 0 : index
    %c0_29 = arith.constant 0 : index
    %14 = vector.load %arg8[%c0_26, %c0_27, %c0_28, %c0_29] : memref<2x20x20x4xf32, #tpu.memory_space<vmem>>, vector<2x20x16x4xf32>
    %15 = vector.extract_strided_slice %14 {offsets = [0, 0, 0, 0], sizes = [2, 16, 16, 4], strides = [1, 1, 1, 1]} : vector<2x20x16x4xf32> to vector<2x16x16x4xf32>
    %c0_30 = arith.constant 0 : index
    %c0_31 = arith.constant 0 : index
    %16 = vector.load %arg3[%c0_30, %c0_31] : memref<25x4xf32, #tpu.memory_space<vmem>>, vector<1x4xf32>
    %17 = vector.shape_cast %16 : vector<1x4xf32> to vector<1x1x1x4xf32>
    %18 = vector.broadcast %17 : vector<1x1x1x4xf32> to vector<2x16x16x4xf32>
    %19 = arith.mulf %15, %18 : vector<2x16x16x4xf32>
    %20 = arith.addf %13, %19 : vector<2x16x16x4xf32>
    %21 = vector.extract_strided_slice %14 {offsets = [0, 1, 0, 0], sizes = [2, 16, 16, 4], strides = [1, 1, 1, 1]} : vector<2x20x16x4xf32> to vector<2x16x16x4xf32>
    %c5 = arith.constant 5 : index
    %c0_32 = arith.constant 0 : index
    %22 = vector.load %arg3[%c5, %c0_32] : memref<25x4xf32, #tpu.memory_space<vmem>>, vector<1x4xf32>
    %23 = vector.shape_cast %22 : vector<1x4xf32> to vector<1x1x1x4xf32>
    %24 = vector.broadcast %23 : vector<1x1x1x4xf32> to vector<2x16x16x4xf32>
    %25 = arith.mulf %21, %24 : vector<2x16x16x4xf32>
    %26 = arith.addf %20, %25 : vector<2x16x16x4xf32>
    %27 = vector.extract_strided_slice %14 {offsets = [0, 2, 0, 0], sizes = [2, 16, 16, 4], strides = [1, 1, 1, 1]} : vector<2x20x16x4xf32> to vector<2x16x16x4xf32>
    %c10 = arith.constant 10 : index
    %c0_33 = arith.constant 0 : index
    %28 = vector.load %arg3[%c10, %c0_33] : memref<25x4xf32, #tpu.memory_space<vmem>>, vector<1x4xf32>
    %29 = vector.shape_cast %28 : vector<1x4xf32> to vector<1x1x1x4xf32>
    %30 = vector.broadcast %29 : vector<1x1x1x4xf32> to vector<2x16x16x4xf32>
    %31 = arith.mulf %27, %30 : vector<2x16x16x4xf32>
    %32 = arith.addf %26, %31 : vector<2x16x16x4xf32>
    %33 = vector.extract_strided_slice %14 {offsets = [0, 3, 0, 0], sizes = [2, 16, 16, 4], strides = [1, 1, 1, 1]} : vector<2x20x16x4xf32> to vector<2x16x16x4xf32>
    %c15 = arith.constant 15 : index
    %c0_34 = arith.constant 0 : index
    %34 = vector.load %arg3[%c15, %c0_34] : memref<25x4xf32, #tpu.memory_space<vmem>>, vector<1x4xf32>
    %35 = vector.shape_cast %34 : vector<1x4xf32> to vector<1x1x1x4xf32>
    %36 = vector.broadcast %35 : vector<1x1x1x4xf32> to vector<2x16x16x4xf32>
    %37 = arith.mulf %33, %36 : vector<2x16x16x4xf32>
    %38 = arith.addf %32, %37 : vector<2x16x16x4xf32>
    %39 = vector.extract_strided_slice %14 {offsets = [0, 4, 0, 0], sizes = [2, 16, 16, 4], strides = [1, 1, 1, 1]} : vector<2x20x16x4xf32> to vector<2x16x16x4xf32>
    %c20 = arith.constant 20 : index
    %c0_35 = arith.constant 0 : index
    %40 = vector.load %arg3[%c20, %c0_35] : memref<25x4xf32, #tpu.memory_space<vmem>>, vector<1x4xf32>
    %41 = vector.shape_cast %40 : vector<1x4xf32> to vector<1x1x1x4xf32>
    %42 = vector.broadcast %41 : vector<1x1x1x4xf32> to vector<2x16x16x4xf32>
    %43 = arith.mulf %39, %42 : vector<2x16x16x4xf32>
    %44 = arith.addf %38, %43 : vector<2x16x16x4xf32>
    %c0_36 = arith.constant 0 : index
    %c0_37 = arith.constant 0 : index
    %c1 = arith.constant 1 : index
    %c0_38 = arith.constant 0 : index
    %45 = vector.load %arg8[%c0_36, %c0_37, %c1, %c0_38] : memref<2x20x20x4xf32, #tpu.memory_space<vmem>>, vector<2x20x16x4xf32>
    %46 = vector.extract_strided_slice %45 {offsets = [0, 0, 0, 0], sizes = [2, 16, 16, 4], strides = [1, 1, 1, 1]} : vector<2x20x16x4xf32> to vector<2x16x16x4xf32>
    %c1_39 = arith.constant 1 : index
    %c0_40 = arith.constant 0 : index
    %47 = vector.load %arg3[%c1_39, %c0_40] : memref<25x4xf32, #tpu.memory_space<vmem>>, vector<1x4xf32>
    %48 = vector.shape_cast %47 : vector<1x4xf32> to vector<1x1x1x4xf32>
    %49 = vector.broadcast %48 : vector<1x1x1x4xf32> to vector<2x16x16x4xf32>
    %50 = arith.mulf %46, %49 : vector<2x16x16x4xf32>
    %51 = arith.addf %44, %50 : vector<2x16x16x4xf32>
    %52 = vector.extract_strided_slice %45 {offsets = [0, 1, 0, 0], sizes = [2, 16, 16, 4], strides = [1, 1, 1, 1]} : vector<2x20x16x4xf32> to vector<2x16x16x4xf32>
    %c6 = arith.constant 6 : index
    %c0_41 = arith.constant 0 : index
    %53 = vector.load %arg3[%c6, %c0_41] : memref<25x4xf32, #tpu.memory_space<vmem>>, vector<1x4xf32>
    %54 = vector.shape_cast %53 : vector<1x4xf32> to vector<1x1x1x4xf32>
    %55 = vector.broadcast %54 : vector<1x1x1x4xf32> to vector<2x16x16x4xf32>
    %56 = arith.mulf %52, %55 : vector<2x16x16x4xf32>
    %57 = arith.addf %51, %56 : vector<2x16x16x4xf32>
    %58 = vector.extract_strided_slice %45 {offsets = [0, 2, 0, 0], sizes = [2, 16, 16, 4], strides = [1, 1, 1, 1]} : vector<2x20x16x4xf32> to vector<2x16x16x4xf32>
    %c11 = arith.constant 11 : index
    %c0_42 = arith.constant 0 : index
    %59 = vector.load %arg3[%c11, %c0_42] : memref<25x4xf32, #tpu.memory_space<vmem>>, vector<1x4xf32>
    %60 = vector.shape_cast %59 : vector<1x4xf32> to vector<1x1x1x4xf32>
    %61 = vector.broadcast %60 : vector<1x1x1x4xf32> to vector<2x16x16x4xf32>
    %62 = arith.mulf %58, %61 : vector<2x16x16x4xf32>
    %63 = arith.addf %57, %62 : vector<2x16x16x4xf32>
    %64 = vector.extract_strided_slice %45 {offsets = [0, 3, 0, 0], sizes = [2, 16, 16, 4], strides = [1, 1, 1, 1]} : vector<2x20x16x4xf32> to vector<2x16x16x4xf32>
    %c16 = arith.constant 16 : index
    %c0_43 = arith.constant 0 : index
    %65 = vector.load %arg3[%c16, %c0_43] : memref<25x4xf32, #tpu.memory_space<vmem>>, vector<1x4xf32>
    %66 = vector.shape_cast %65 : vector<1x4xf32> to vector<1x1x1x4xf32>
    %67 = vector.broadcast %66 : vector<1x1x1x4xf32> to vector<2x16x16x4xf32>
    %68 = arith.mulf %64, %67 : vector<2x16x16x4xf32>
    %69 = arith.addf %63, %68 : vector<2x16x16x4xf32>
    %70 = vector.extract_strided_slice %45 {offsets = [0, 4, 0, 0], sizes = [2, 16, 16, 4], strides = [1, 1, 1, 1]} : vector<2x20x16x4xf32> to vector<2x16x16x4xf32>
    %c21 = arith.constant 21 : index
    %c0_44 = arith.constant 0 : index
    %71 = vector.load %arg3[%c21, %c0_44] : memref<25x4xf32, #tpu.memory_space<vmem>>, vector<1x4xf32>
    %72 = vector.shape_cast %71 : vector<1x4xf32> to vector<1x1x1x4xf32>
    %73 = vector.broadcast %72 : vector<1x1x1x4xf32> to vector<2x16x16x4xf32>
    %74 = arith.mulf %70, %73 : vector<2x16x16x4xf32>
    %75 = arith.addf %69, %74 : vector<2x16x16x4xf32>
    %c0_45 = arith.constant 0 : index
    %c0_46 = arith.constant 0 : index
    %c2_47 = arith.constant 2 : index
    %c0_48 = arith.constant 0 : index
    %76 = vector.load %arg8[%c0_45, %c0_46, %c2_47, %c0_48] : memref<2x20x20x4xf32, #tpu.memory_space<vmem>>, vector<2x20x16x4xf32>
    %77 = vector.extract_strided_slice %76 {offsets = [0, 0, 0, 0], sizes = [2, 16, 16, 4], strides = [1, 1, 1, 1]} : vector<2x20x16x4xf32> to vector<2x16x16x4xf32>
    %c2_49 = arith.constant 2 : index
    %c0_50 = arith.constant 0 : index
    %78 = vector.load %arg3[%c2_49, %c0_50] : memref<25x4xf32, #tpu.memory_space<vmem>>, vector<1x4xf32>
    %79 = vector.shape_cast %78 : vector<1x4xf32> to vector<1x1x1x4xf32>
    %80 = vector.broadcast %79 : vector<1x1x1x4xf32> to vector<2x16x16x4xf32>
    %81 = arith.mulf %77, %80 : vector<2x16x16x4xf32>
    %82 = arith.addf %75, %81 : vector<2x16x16x4xf32>
    %83 = vector.extract_strided_slice %76 {offsets = [0, 1, 0, 0], sizes = [2, 16, 16, 4], strides = [1, 1, 1, 1]} : vector<2x20x16x4xf32> to vector<2x16x16x4xf32>
    %c7 = arith.constant 7 : index
    %c0_51 = arith.constant 0 : index
    %84 = vector.load %arg3[%c7, %c0_51] : memref<25x4xf32, #tpu.memory_space<vmem>>, vector<1x4xf32>
    %85 = vector.shape_cast %84 : vector<1x4xf32> to vector<1x1x1x4xf32>
    %86 = vector.broadcast %85 : vector<1x1x1x4xf32> to vector<2x16x16x4xf32>
    %87 = arith.mulf %83, %86 : vector<2x16x16x4xf32>
    %88 = arith.addf %82, %87 : vector<2x16x16x4xf32>
    %89 = vector.extract_strided_slice %76 {offsets = [0, 2, 0, 0], sizes = [2, 16, 16, 4], strides = [1, 1, 1, 1]} : vector<2x20x16x4xf32> to vector<2x16x16x4xf32>
    %c12 = arith.constant 12 : index
    %c0_52 = arith.constant 0 : index
    %90 = vector.load %arg3[%c12, %c0_52] : memref<25x4xf32, #tpu.memory_space<vmem>>, vector<1x4xf32>
    %91 = vector.shape_cast %90 : vector<1x4xf32> to vector<1x1x1x4xf32>
    %92 = vector.broadcast %91 : vector<1x1x1x4xf32> to vector<2x16x16x4xf32>
    %93 = arith.mulf %89, %92 : vector<2x16x16x4xf32>
    %94 = arith.addf %88, %93 : vector<2x16x16x4xf32>
    %95 = vector.extract_strided_slice %76 {offsets = [0, 3, 0, 0], sizes = [2, 16, 16, 4], strides = [1, 1, 1, 1]} : vector<2x20x16x4xf32> to vector<2x16x16x4xf32>
    %c17 = arith.constant 17 : index
    %c0_53 = arith.constant 0 : index
    %96 = vector.load %arg3[%c17, %c0_53] : memref<25x4xf32, #tpu.memory_space<vmem>>, vector<1x4xf32>
    %97 = vector.shape_cast %96 : vector<1x4xf32> to vector<1x1x1x4xf32>
    %98 = vector.broadcast %97 : vector<1x1x1x4xf32> to vector<2x16x16x4xf32>
    %99 = arith.mulf %95, %98 : vector<2x16x16x4xf32>
    %100 = arith.addf %94, %99 : vector<2x16x16x4xf32>
    %101 = vector.extract_strided_slice %76 {offsets = [0, 4, 0, 0], sizes = [2, 16, 16, 4], strides = [1, 1, 1, 1]} : vector<2x20x16x4xf32> to vector<2x16x16x4xf32>
    %c22 = arith.constant 22 : index
    %c0_54 = arith.constant 0 : index
    %102 = vector.load %arg3[%c22, %c0_54] : memref<25x4xf32, #tpu.memory_space<vmem>>, vector<1x4xf32>
    %103 = vector.shape_cast %102 : vector<1x4xf32> to vector<1x1x1x4xf32>
    %104 = vector.broadcast %103 : vector<1x1x1x4xf32> to vector<2x16x16x4xf32>
    %105 = arith.mulf %101, %104 : vector<2x16x16x4xf32>
    %106 = arith.addf %100, %105 : vector<2x16x16x4xf32>
    %c0_55 = arith.constant 0 : index
    %c0_56 = arith.constant 0 : index
    %c3 = arith.constant 3 : index
    %c0_57 = arith.constant 0 : index
    %107 = vector.load %arg8[%c0_55, %c0_56, %c3, %c0_57] : memref<2x20x20x4xf32, #tpu.memory_space<vmem>>, vector<2x20x16x4xf32>
    %108 = vector.extract_strided_slice %107 {offsets = [0, 0, 0, 0], sizes = [2, 16, 16, 4], strides = [1, 1, 1, 1]} : vector<2x20x16x4xf32> to vector<2x16x16x4xf32>
    %c3_58 = arith.constant 3 : index
    %c0_59 = arith.constant 0 : index
    %109 = vector.load %arg3[%c3_58, %c0_59] : memref<25x4xf32, #tpu.memory_space<vmem>>, vector<1x4xf32>
    %110 = vector.shape_cast %109 : vector<1x4xf32> to vector<1x1x1x4xf32>
    %111 = vector.broadcast %110 : vector<1x1x1x4xf32> to vector<2x16x16x4xf32>
    %112 = arith.mulf %108, %111 : vector<2x16x16x4xf32>
    %113 = arith.addf %106, %112 : vector<2x16x16x4xf32>
    %114 = vector.extract_strided_slice %107 {offsets = [0, 1, 0, 0], sizes = [2, 16, 16, 4], strides = [1, 1, 1, 1]} : vector<2x20x16x4xf32> to vector<2x16x16x4xf32>
    %c8 = arith.constant 8 : index
    %c0_60 = arith.constant 0 : index
    %115 = vector.load %arg3[%c8, %c0_60] : memref<25x4xf32, #tpu.memory_space<vmem>>, vector<1x4xf32>
    %116 = vector.shape_cast %115 : vector<1x4xf32> to vector<1x1x1x4xf32>
    %117 = vector.broadcast %116 : vector<1x1x1x4xf32> to vector<2x16x16x4xf32>
    %118 = arith.mulf %114, %117 : vector<2x16x16x4xf32>
    %119 = arith.addf %113, %118 : vector<2x16x16x4xf32>
    %120 = vector.extract_strided_slice %107 {offsets = [0, 2, 0, 0], sizes = [2, 16, 16, 4], strides = [1, 1, 1, 1]} : vector<2x20x16x4xf32> to vector<2x16x16x4xf32>
    %c13 = arith.constant 13 : index
    %c0_61 = arith.constant 0 : index
    %121 = vector.load %arg3[%c13, %c0_61] : memref<25x4xf32, #tpu.memory_space<vmem>>, vector<1x4xf32>
    %122 = vector.shape_cast %121 : vector<1x4xf32> to vector<1x1x1x4xf32>
    %123 = vector.broadcast %122 : vector<1x1x1x4xf32> to vector<2x16x16x4xf32>
    %124 = arith.mulf %120, %123 : vector<2x16x16x4xf32>
    %125 = arith.addf %119, %124 : vector<2x16x16x4xf32>
    %126 = vector.extract_strided_slice %107 {offsets = [0, 3, 0, 0], sizes = [2, 16, 16, 4], strides = [1, 1, 1, 1]} : vector<2x20x16x4xf32> to vector<2x16x16x4xf32>
    %c18_62 = arith.constant 18 : index
    %c0_63 = arith.constant 0 : index
    %127 = vector.load %arg3[%c18_62, %c0_63] : memref<25x4xf32, #tpu.memory_space<vmem>>, vector<1x4xf32>
    %128 = vector.shape_cast %127 : vector<1x4xf32> to vector<1x1x1x4xf32>
    %129 = vector.broadcast %128 : vector<1x1x1x4xf32> to vector<2x16x16x4xf32>
    %130 = arith.mulf %126, %129 : vector<2x16x16x4xf32>
    %131 = arith.addf %125, %130 : vector<2x16x16x4xf32>
    %132 = vector.extract_strided_slice %107 {offsets = [0, 4, 0, 0], sizes = [2, 16, 16, 4], strides = [1, 1, 1, 1]} : vector<2x20x16x4xf32> to vector<2x16x16x4xf32>
    %c23 = arith.constant 23 : index
    %c0_64 = arith.constant 0 : index
    %133 = vector.load %arg3[%c23, %c0_64] : memref<25x4xf32, #tpu.memory_space<vmem>>, vector<1x4xf32>
    %134 = vector.shape_cast %133 : vector<1x4xf32> to vector<1x1x1x4xf32>
    %135 = vector.broadcast %134 : vector<1x1x1x4xf32> to vector<2x16x16x4xf32>
    %136 = arith.mulf %132, %135 : vector<2x16x16x4xf32>
    %137 = arith.addf %131, %136 : vector<2x16x16x4xf32>
    %c0_65 = arith.constant 0 : index
    %c0_66 = arith.constant 0 : index
    %c4 = arith.constant 4 : index
    %c0_67 = arith.constant 0 : index
    %138 = vector.load %arg8[%c0_65, %c0_66, %c4, %c0_67] : memref<2x20x20x4xf32, #tpu.memory_space<vmem>>, vector<2x20x16x4xf32>
    %139 = vector.extract_strided_slice %138 {offsets = [0, 0, 0, 0], sizes = [2, 16, 16, 4], strides = [1, 1, 1, 1]} : vector<2x20x16x4xf32> to vector<2x16x16x4xf32>
    %c4_68 = arith.constant 4 : index
    %c0_69 = arith.constant 0 : index
    %140 = vector.load %arg3[%c4_68, %c0_69] : memref<25x4xf32, #tpu.memory_space<vmem>>, vector<1x4xf32>
    %141 = vector.shape_cast %140 : vector<1x4xf32> to vector<1x1x1x4xf32>
    %142 = vector.broadcast %141 : vector<1x1x1x4xf32> to vector<2x16x16x4xf32>
    %143 = arith.mulf %139, %142 : vector<2x16x16x4xf32>
    %144 = arith.addf %137, %143 : vector<2x16x16x4xf32>
    %145 = vector.extract_strided_slice %138 {offsets = [0, 1, 0, 0], sizes = [2, 16, 16, 4], strides = [1, 1, 1, 1]} : vector<2x20x16x4xf32> to vector<2x16x16x4xf32>
    %c9 = arith.constant 9 : index
    %c0_70 = arith.constant 0 : index
    %146 = vector.load %arg3[%c9, %c0_70] : memref<25x4xf32, #tpu.memory_space<vmem>>, vector<1x4xf32>
    %147 = vector.shape_cast %146 : vector<1x4xf32> to vector<1x1x1x4xf32>
    %148 = vector.broadcast %147 : vector<1x1x1x4xf32> to vector<2x16x16x4xf32>
    %149 = arith.mulf %145, %148 : vector<2x16x16x4xf32>
    %150 = arith.addf %144, %149 : vector<2x16x16x4xf32>
    %151 = vector.extract_strided_slice %138 {offsets = [0, 2, 0, 0], sizes = [2, 16, 16, 4], strides = [1, 1, 1, 1]} : vector<2x20x16x4xf32> to vector<2x16x16x4xf32>
    %c14 = arith.constant 14 : index
    %c0_71 = arith.constant 0 : index
    %152 = vector.load %arg3[%c14, %c0_71] : memref<25x4xf32, #tpu.memory_space<vmem>>, vector<1x4xf32>
    %153 = vector.shape_cast %152 : vector<1x4xf32> to vector<1x1x1x4xf32>
    %154 = vector.broadcast %153 : vector<1x1x1x4xf32> to vector<2x16x16x4xf32>
    %155 = arith.mulf %151, %154 : vector<2x16x16x4xf32>
    %156 = arith.addf %150, %155 : vector<2x16x16x4xf32>
    %157 = vector.extract_strided_slice %138 {offsets = [0, 3, 0, 0], sizes = [2, 16, 16, 4], strides = [1, 1, 1, 1]} : vector<2x20x16x4xf32> to vector<2x16x16x4xf32>
    %c19 = arith.constant 19 : index
    %c0_72 = arith.constant 0 : index
    %158 = vector.load %arg3[%c19, %c0_72] : memref<25x4xf32, #tpu.memory_space<vmem>>, vector<1x4xf32>
    %159 = vector.shape_cast %158 : vector<1x4xf32> to vector<1x1x1x4xf32>
    %160 = vector.broadcast %159 : vector<1x1x1x4xf32> to vector<2x16x16x4xf32>
    %161 = arith.mulf %157, %160 : vector<2x16x16x4xf32>
    %162 = arith.addf %156, %161 : vector<2x16x16x4xf32>
    %163 = vector.extract_strided_slice %138 {offsets = [0, 4, 0, 0], sizes = [2, 16, 16, 4], strides = [1, 1, 1, 1]} : vector<2x20x16x4xf32> to vector<2x16x16x4xf32>
    %c24 = arith.constant 24 : index
    %c0_73 = arith.constant 0 : index
    %164 = vector.load %arg3[%c24, %c0_73] : memref<25x4xf32, #tpu.memory_space<vmem>>, vector<1x4xf32>
    %165 = vector.shape_cast %164 : vector<1x4xf32> to vector<1x1x1x4xf32>
    %166 = vector.broadcast %165 : vector<1x1x1x4xf32> to vector<2x16x16x4xf32>
    %167 = arith.mulf %163, %166 : vector<2x16x16x4xf32>
    %168 = arith.addf %162, %167 : vector<2x16x16x4xf32>
    %169 = arith.mulf %168, %168 : vector<2x16x16x4xf32>
    %170 = arith.mulf %168, %169 : vector<2x16x16x4xf32>
    %cst_74 = arith.constant 4.471500e-02 : f32
    %171 = vector.broadcast %cst_74 : f32 to vector<2x16x16x4xf32>
    %172 = arith.mulf %171, %170 : vector<2x16x16x4xf32>
    %173 = arith.addf %168, %172 : vector<2x16x16x4xf32>
    %cst_75 = arith.constant 0.797884583 : f32
    %174 = vector.broadcast %cst_75 : f32 to vector<2x16x16x4xf32>
    %175 = arith.mulf %174, %173 : vector<2x16x16x4xf32>
    %176 = math.tanh %175 : vector<2x16x16x4xf32>
    %cst_76 = arith.constant 1.000000e+00 : f32
    %177 = vector.broadcast %cst_76 : f32 to vector<2x16x16x4xf32>
    %178 = arith.addf %177, %176 : vector<2x16x16x4xf32>
    %cst_77 = arith.constant 5.000000e-01 : f32
    %179 = vector.broadcast %cst_77 : f32 to vector<2x16x16x4xf32>
    %180 = arith.mulf %179, %178 : vector<2x16x16x4xf32>
    %181 = arith.mulf %168, %180 : vector<2x16x16x4xf32>
    %c0_i32 = arith.constant 0 : i32
    %182 = arith.cmpi eq, %arg1, %c0_i32 : i32
    %183 = arith.extui %182 : i1 to i32
    %c0_i32_78 = arith.constant 0 : i32
    %184 = arith.cmpi ne, %183, %c0_i32_78 : i32
    scf.if %184 {
      %cst_93 = arith.constant 0.000000e+00 : f32
      %199 = vector.broadcast %cst_93 : f32 to vector<1x4xf32>
      %c0_94 = arith.constant 0 : index
      %c0_95 = arith.constant 0 : index
      %200 = vector.load %arg6[%c0_94, %c0_95] : memref<1x4xf32, #tpu.memory_space<vmem>>, vector<1x4xf32>
      tpu.vector_store %arg6[%c0_94, %c0_95], %199 {strides = array<i32>} : memref<1x4xf32, #tpu.memory_space<vmem>>, vector<1x4xf32>,
      %cst_96 = arith.constant 0.000000e+00 : f32
      %201 = vector.broadcast %cst_96 : f32 to vector<1x4xf32>
      %c0_97 = arith.constant 0 : index
      %c0_98 = arith.constant 0 : index
      %202 = vector.load %arg7[%c0_97, %c0_98] : memref<1x4xf32, #tpu.memory_space<vmem>>, vector<1x4xf32>
      tpu.vector_store %arg7[%c0_97, %c0_98], %201 {strides = array<i32>} : memref<1x4xf32, #tpu.memory_space<vmem>>, vector<1x4xf32>,
    } else {
    }
    %c0_79 = arith.constant 0 : index
    %c0_80 = arith.constant 0 : index
    %185 = vector.load %arg6[%c0_79, %c0_80] : memref<1x4xf32, #tpu.memory_space<vmem>>, vector<1x4xf32>
    %cst_81 = arith.constant dense<0.000000e+00> : vector<4xf32>
    %186 = vector.multi_reduction <add>, %181, %cst_81 [0, 1, 2] : vector<2x16x16x4xf32> to vector<4xf32>
    %187 = vector.shape_cast %186 : vector<4xf32> to vector<1x1x1x4xf32>
    %188 = vector.shape_cast %187 : vector<1x1x1x4xf32> to vector<1x4xf32>
    %189 = arith.addf %185, %188 : vector<1x4xf32>
    %c0_82 = arith.constant 0 : index
    %c0_83 = arith.constant 0 : index
    %190 = vector.load %arg6[%c0_82, %c0_83] : memref<1x4xf32, #tpu.memory_space<vmem>>, vector<1x4xf32>
    tpu.vector_store %arg6[%c0_82, %c0_83], %189 {strides = array<i32>} : memref<1x4xf32, #tpu.memory_space<vmem>>, vector<1x4xf32>,
    %c0_84 = arith.constant 0 : index
    %c0_85 = arith.constant 0 : index
    %191 = vector.load %arg7[%c0_84, %c0_85] : memref<1x4xf32, #tpu.memory_space<vmem>>, vector<1x4xf32>
    %192 = arith.mulf %181, %181 : vector<2x16x16x4xf32>
    %cst_86 = arith.constant dense<0.000000e+00> : vector<4xf32>
    %193 = vector.multi_reduction <add>, %192, %cst_86 [0, 1, 2] : vector<2x16x16x4xf32> to vector<4xf32>
    %194 = vector.shape_cast %193 : vector<4xf32> to vector<1x1x1x4xf32>
    %195 = vector.shape_cast %194 : vector<1x1x1x4xf32> to vector<1x4xf32>
    %196 = arith.addf %191, %195 : vector<1x4xf32>
    %c0_87 = arith.constant 0 : index
    %c0_88 = arith.constant 0 : index
    %197 = vector.load %arg7[%c0_87, %c0_88] : memref<1x4xf32, #tpu.memory_space<vmem>>, vector<1x4xf32>
    tpu.vector_store %arg7[%c0_87, %c0_88], %196 {strides = array<i32>} : memref<1x4xf32, #tpu.memory_space<vmem>>, vector<1x4xf32>,
    %c0_89 = arith.constant 0 : index
    %c0_90 = arith.constant 0 : index
    %c0_91 = arith.constant 0 : index
    %c0_92 = arith.constant 0 : index
    %198 = vector.load %arg5[%c0_89, %c0_90, %c0_91, %c0_92] : memref<2x16x16x4xf32, #tpu.memory_space<vmem>>, vector<2x16x16x4xf32>
    tpu.vector_store %arg5[%c0_89, %c0_90, %c0_91, %c0_92], %181 {strides = array<i32>} : memref<2x16x16x4xf32, #tpu.memory_space<vmem>>, vector<2x16x16x4xf32>,
    return
  }
  func.func @transform_0(%arg0: i32, %arg1: i32) -> (i32, i32, i32, i32) {
    %c0_i32 = arith.constant 0 : i32
    %c0_i32_0 = arith.constant 0 : i32
    %c0_i32_1 = arith.constant 0 : i32
    return %arg1, %c0_i32, %c0_i32_0, %arg0 : i32, i32, i32, i32
  }
  func.func @transform_1(%arg0: i32, %arg1: i32) -> (i32, i32) {
    %c0_i32 = arith.constant 0 : i32
    %c0_i32_0 = arith.constant 0 : i32
    return %c0_i32, %arg0 : i32, i32
  }
  func.func @transform_2(%arg0: i32, %arg1: i32) -> (i32, i32) {
    %c0_i32 = arith.constant 0 : i32
    %c0_i32_0 = arith.constant 0 : i32
    return %c0_i32, %arg0 : i32, i32
  }
  func.func @transform_3(%arg0: i32, %arg1: i32) -> (i32, i32, i32, i32) {
    %c0_i32 = arith.constant 0 : i32
    %c0_i32_0 = arith.constant 0 : i32
    %c0_i32_1 = arith.constant 0 : i32
    return %arg1, %c0_i32, %c0_i32_0, %arg0 : i32, i32, i32, i32
  }
  func.func @transform_4(%arg0: i32, %arg1: i32) -> (i32, i32) {
    %c0_i32 = arith.constant 0 : i32
    %c0_i32_0 = arith.constant 0 : i32
    return %c0_i32, %arg0 : i32, i32
  }
  func.func @transform_5(%arg0: i32, %arg1: i32) -> (i32, i32) {
    %c0_i32 = arith.constant 0 : i32
    %c0_i32_0 = arith.constant 0 : i32
    return %c0_i32, %arg0 : i32, i32
  }
}

</mosaic_0001>

<llo_original>
// kernel: convmixer_block_nhwc.3
$region0: #{convmixer_block_nhwc.3}
  #allocation0 [shape = 'u32[]', space=smem, size = 0x4, offset = 0x4, fixed_abs, tag = 'smem constant byte address 0x4 - core index']
  #allocation1 [shape = 'u32[144,128]{1,0:T(1,128)}', space=vmem, size = 0x12000, scoped, tag = 'internal scratch']
  %s0 = inlined_call_operand.vmem [shape: f32[2,16,16,4], index: 0, kind: input, shape index: {}]
  %s1 = inlined_call_operand.vmem [shape: f32[2,16,16,4], index: 1, kind: input, shape index: {}]
  %s2 = inlined_call_operand.vmem [shape: f32[1,4], index: 2, kind: input, shape index: {}]
  %s3 = inlined_call_operand.vmem [shape: f32[1,4], index: 3, kind: input, shape index: {}]
  %s4 = inlined_call_operand.vmem [shape: f32[2,16,16,4], index: 4, kind: output, shape index: {}]
  %s5 = sld [smem:[#allocation0]]
  $region26: #{convmixer_block_nhwc.3} parent=0
    _
  %s7 = ssub.s32 1, %s5
  %s8 = scalar_select 0, %s7, %s5
  // Predicated region
  $region2: #{convmixer_block_nhwc.3} parent=0 // pred_check
    _
  $region3: #{convmixer_block_nhwc.3} parent=0 // pred_check_branch
    %10 = sbr.rel (0) target = $region5
  $region4: #{convmixer_block_nhwc.3} parent=0 // pred_region
    _
  $region5: #{convmixer_block_nhwc.3} parent=0 // pred_fallthru
    _
  // Predicated region
  $region6: #{convmixer_block_nhwc.3} parent=0 // pred_check
    _
  $region7: #{convmixer_block_nhwc.3} parent=0 // pred_check_branch
    %12 = sbr.rel (0) target = $region9
  $region8: #{convmixer_block_nhwc.3} parent=0 // pred_region
    _
  $region9: #{convmixer_block_nhwc.3} parent=0 // pred_fallthru
    _
  // Predicated region
  $region10: #{convmixer_block_nhwc.3} parent=0 // pred_check
    _
  $region11: #{convmixer_block_nhwc.3} parent=0 // pred_check_branch
    %14 = sbr.rel (0) target = $region13
  $region12: #{convmixer_block_nhwc.3} parent=0 // pred_region
    _
  $region13: #{convmixer_block_nhwc.3} parent=0 // pred_fallthru
    _
  // Predicated region
  $region14: #{convmixer_block_nhwc.3} parent=0 // pred_check
    _
  $region15: #{convmixer_block_nhwc.3} parent=0 // pred_check_branch
    %16 = sbr.rel (0) target = $region17
  $region16: #{convmixer_block_nhwc.3} parent=0 // pred_region
    _
  $region17: #{convmixer_block_nhwc.3} parent=0 // pred_fallthru
    _
  %v17 = vld [vmem:[%s2] sm:$0x1]
  %v18 = vld [vmem:[%s3] sm:$0x1]
  %v19 = vld [vmem:[%s0] sm:$0xff]
  %v20 = vld [vmem:[%s0 + $0x8] sm:$0xff]
  %v21 = vld [vmem:[%s0 + $0x10] sm:$0xff]
  %v22 = vld [vmem:[%s0 + $0x18] sm:$0xff]
  %v23 = vld [vmem:[%s0 + $0x20] sm:$0xff]
  %v24 = vld [vmem:[%s0 + $0x28] sm:$0xff]
  %v25 = vld [vmem:[%s0 + $0x30] sm:$0xff]
  %v26 = vld [vmem:[%s0 + $0x38] sm:$0xff]
  %v27 = vld [vmem:[%s0 + $0x40] sm:$0xff]
  %v28 = vld [vmem:[%s0 + $0x48] sm:$0xff]
  %v29 = vld [vmem:[%s0 + $0x50] sm:$0xff]
  %v30 = vld [vmem:[%s0 + $0x58] sm:$0xff]
  %v31 = vld [vmem:[%s0 + $0x60] sm:$0xff]
  %v32 = vld [vmem:[%s0 + $0x68] sm:$0xff]
  %v33 = vld [vmem:[%s0 + $0x70] sm:$0xff]
  %v34 = vld [vmem:[%s0 + $0x78] sm:$0xff]
  %v35 = vld [vmem:[%s0 + $0x80] sm:$0xff]
  %v36 = vld [vmem:[%s0 + $0x88] sm:$0xff]
  %v37 = vld [vmem:[%s0 + $0x90] sm:$0xff]
  %v38 = vld [vmem:[%s0 + $0x98] sm:$0xff]
  %v39 = vld [vmem:[%s0 + $0xa0] sm:$0xff]
  %v40 = vld [vmem:[%s0 + $0xa8] sm:$0xff]
  %v41 = vld [vmem:[%s0 + $0xb0] sm:$0xff]
  %v42 = vld [vmem:[%s0 + $0xb8] sm:$0xff]
  %v43 = vld [vmem:[%s0 + $0xc0] sm:$0xff]
  %v44 = vld [vmem:[%s0 + $0xc8] sm:$0xff]
  %v45 = vld [vmem:[%s0 + $0xd0] sm:$0xff]
  %v46 = vld [vmem:[%s0 + $0xd8] sm:$0xff]
  %v47 = vld [vmem:[%s0 + $0xe0] sm:$0xff]
  %v48 = vld [vmem:[%s0 + $0xe8] sm:$0xff]
  %v49 = vld [vmem:[%s0 + $0xf0] sm:$0xff]
  %v50 = vld [vmem:[%s0 + $0xf8] sm:$0xff]
  %v51 = vld [vmem:[%s0 + $0x100] sm:$0xff]
  %v52 = vld [vmem:[%s0 + $0x108] sm:$0xff]
  %v53 = vld [vmem:[%s0 + $0x110] sm:$0xff]
  %v54 = vld [vmem:[%s0 + $0x118] sm:$0xff]
  %v55 = vld [vmem:[%s0 + $0x120] sm:$0xff]
  %v56 = vld [vmem:[%s0 + $0x128] sm:$0xff]
  %v57 = vld [vmem:[%s0 + $0x130] sm:$0xff]
  %v58 = vld [vmem:[%s0 + $0x138] sm:$0xff]
  %v59 = vld [vmem:[%s0 + $0x140] sm:$0xff]
  %v60 = vld [vmem:[%s0 + $0x148] sm:$0xff]
  %v61 = vld [vmem:[%s0 + $0x150] sm:$0xff]
  %v62 = vld [vmem:[%s0 + $0x158] sm:$0xff]
  %v63 = vld [vmem:[%s0 + $0x160] sm:$0xff]
  %v64 = vld [vmem:[%s0 + $0x168] sm:$0xff]
  %v65 = vld [vmem:[%s0 + $0x170] sm:$0xff]
  %v66 = vld [vmem:[%s0 + $0x178] sm:$0xff]
  %v67 = vld [vmem:[%s0 + $0x180] sm:$0xff]
  %v68 = vld [vmem:[%s0 + $0x188] sm:$0xff]
  %v69 = vld [vmem:[%s0 + $0x190] sm:$0xff]
  %v70 = vld [vmem:[%s0 + $0x198] sm:$0xff]
  %v71 = vld [vmem:[%s0 + $0x1a0] sm:$0xff]
  %v72 = vld [vmem:[%s0 + $0x1a8] sm:$0xff]
  %v73 = vld [vmem:[%s0 + $0x1b0] sm:$0xff]
  %v74 = vld [vmem:[%s0 + $0x1b8] sm:$0xff]
  %v75 = vld [vmem:[%s0 + $0x1c0] sm:$0xff]
  %v76 = vld [vmem:[%s0 + $0x1c8] sm:$0xff]
  %v77 = vld [vmem:[%s0 + $0x1d0] sm:$0xff]
  %v78 = vld [vmem:[%s0 + $0x1d8] sm:$0xff]
  %v79 = vld [vmem:[%s0 + $0x1e0] sm:$0xff]
  %v80 = vld [vmem:[%s0 + $0x1e8] sm:$0xff]
  %v81 = vld [vmem:[%s0 + $0x1f0] sm:$0xff]
  %v82 = vld [vmem:[%s0 + $0x1f8] sm:$0xff]
  %v84 = vlaneseq
  %v85 = vshrl.u32 %v84, 7
  %v86 = vsub.s32 0, %v85
  %v87 = vrot.slane %v17, %v86
  %v89 = vmul.f32 %v19, %v87
  %v90 = vmul.f32 %v20, %v87
  %v91 = vmul.f32 %v21, %v87
  %v92 = vmul.f32 %v22, %v87
  %v93 = vmul.f32 %v23, %v87
  %v94 = vmul.f32 %v24, %v87
  %v95 = vmul.f32 %v25, %v87
  %v96 = vmul.f32 %v26, %v87
  %v97 = vmul.f32 %v27, %v87
  %v98 = vmul.f32 %v28, %v87
  %v99 = vmul.f32 %v29, %v87
  %v100 = vmul.f32 %v30, %v87
  %v101 = vmul.f32 %v31, %v87
  %v102 = vmul.f32 %v32, %v87
  %v103 = vmul.f32 %v33, %v87
  %v104 = vmul.f32 %v34, %v87
  %v105 = vmul.f32 %v35, %v87
  %v106 = vmul.f32 %v36, %v87
  %v107 = vmul.f32 %v37, %v87
  %v108 = vmul.f32 %v38, %v87
  %v109 = vmul.f32 %v39, %v87
  %v110 = vmul.f32 %v40, %v87
  %v111 = vmul.f32 %v41, %v87
  %v112 = vmul.f32 %v42, %v87
  %v113 = vmul.f32 %v43, %v87
  %v114 = vmul.f32 %v44, %v87
  %v115 = vmul.f32 %v45, %v87
  %v116 = vmul.f32 %v46, %v87
  %v117 = vmul.f32 %v47, %v87
  %v118 = vmul.f32 %v48, %v87
  %v119 = vmul.f32 %v49, %v87
  %v120 = vmul.f32 %v50, %v87
  %v121 = vmul.f32 %v51, %v87
  %v122 = vmul.f32 %v52, %v87
  %v123 = vmul.f32 %v53, %v87
  %v124 = vmul.f32 %v54, %v87
  %v125 = vmul.f32 %v55, %v87
  %v126 = vmul.f32 %v56, %v87
  %v127 = vmul.f32 %v57, %v87
  %v128 = vmul.f32 %v58, %v87
  %v129 = vmul.f32 %v59, %v87
  %v130 = vmul.f32 %v60, %v87
  %v131 = vmul.f32 %v61, %v87
  %v132 = vmul.f32 %v62, %v87
  %v133 = vmul.f32 %v63, %v87
  %v134 = vmul.f32 %v64, %v87
  %v135 = vmul.f32 %v65, %v87
  %v136 = vmul.f32 %v66, %v87
  %v137 = vmul.f32 %v67, %v87
  %v138 = vmul.f32 %v68, %v87
  %v139 = vmul.f32 %v69, %v87
  %v140 = vmul.f32 %v70, %v87
  %v141 = vmul.f32 %v71, %v87
  %v142 = vmul.f32 %v72, %v87
  %v143 = vmul.f32 %v73, %v87
  %v144 = vmul.f32 %v74, %v87
  %v145 = vmul.f32 %v75, %v87
  %v146 = vmul.f32 %v76, %v87
  %v147 = vmul.f32 %v77, %v87
  %v148 = vmul.f32 %v78, %v87
  %v149 = vmul.f32 %v79, %v87
  %v150 = vmul.f32 %v80, %v87
  %v151 = vmul.f32 %v81, %v87
  %v152 = vmul.f32 %v82, %v87
  %v154 = vlaneseq
  %v155 = vshrl.u32 %v154, 7
  %v156 = vsub.s32 0, %v155
  %v157 = vrot.slane %v18, %v156
  %v159 = vadd.f32 %v89, %v157
  %v160 = vadd.f32 %v90, %v157
  %v161 = vadd.f32 %v91, %v157
  %v162 = vadd.f32 %v92, %v157
  %v163 = vadd.f32 %v93, %v157
  %v164 = vadd.f32 %v94, %v157
  %v165 = vadd.f32 %v95, %v157
  %v166 = vadd.f32 %v96, %v157
  %v167 = vadd.f32 %v97, %v157
  %v168 = vadd.f32 %v98, %v157
  %v169 = vadd.f32 %v99, %v157
  %v170 = vadd.f32 %v100, %v157
  %v171 = vadd.f32 %v101, %v157
  %v172 = vadd.f32 %v102, %v157
  %v173 = vadd.f32 %v103, %v157
  %v174 = vadd.f32 %v104, %v157
  %v175 = vadd.f32 %v105, %v157
  %v176 = vadd.f32 %v106, %v157
  %v177 = vadd.f32 %v107, %v157
  %v178 = vadd.f32 %v108, %v157
  %v179 = vadd.f32 %v109, %v157
  %v180 = vadd.f32 %v110, %v157
  %v181 = vadd.f32 %v111, %v157
  %v182 = vadd.f32 %v112, %v157
  %v183 = vadd.f32 %v113, %v157
  %v184 = vadd.f32 %v114, %v157
  %v185 = vadd.f32 %v115, %v157
  %v186 = vadd.f32 %v116, %v157
  %v187 = vadd.f32 %v117, %v157
  %v188 = vadd.f32 %v118, %v157
  %v189 = vadd.f32 %v119, %v157
  %v190 = vadd.f32 %v120, %v157
  %v191 = vadd.f32 %v121, %v157
  %v192 = vadd.f32 %v122, %v157
  %v193 = vadd.f32 %v123, %v157
  %v194 = vadd.f32 %v124, %v157
  %v195 = vadd.f32 %v125, %v157
  %v196 = vadd.f32 %v126, %v157
  %v197 = vadd.f32 %v127, %v157
  %v198 = vadd.f32 %v128, %v157
  %v199 = vadd.f32 %v129, %v157
  %v200 = vadd.f32 %v130, %v157
  %v201 = vadd.f32 %v131, %v157
  %v202 = vadd.f32 %v132, %v157
  %v203 = vadd.f32 %v133, %v157
  %v204 = vadd.f32 %v134, %v157
  %v205 = vadd.f32 %v135, %v157
  %v206 = vadd.f32 %v136, %v157
  %v207 = vadd.f32 %v137, %v157
  %v208 = vadd.f32 %v138, %v157
  %v209 = vadd.f32 %v139, %v157
  %v210 = vadd.f32 %v140, %v157
  %v211 = vadd.f32 %v141, %v157
  %v212 = vadd.f32 %v142, %v157
  %v213 = vadd.f32 %v143, %v157
  %v214 = vadd.f32 %v144, %v157
  %v215 = vadd.f32 %v145, %v157
  %v216 = vadd.f32 %v146, %v157
  %v217 = vadd.f32 %v147, %v157
  %v218 = vadd.f32 %v148, %v157
  %v219 = vadd.f32 %v149, %v157
  %v220 = vadd.f32 %v150, %v157
  %v221 = vadd.f32 %v151, %v157
  %v222 = vadd.f32 %v152, %v157
  %v223 = vld [vmem:[%s1] sm:$0xff]
  %v224 = vld [vmem:[%s1 + $0x8] sm:$0xff]
  %v225 = vld [vmem:[%s1 + $0x10] sm:$0xff]
  %v226 = vld [vmem:[%s1 + $0x18] sm:$0xff]
  %v227 = vld [vmem:[%s1 + $0x20] sm:$0xff]
  %v228 = vld [vmem:[%s1 + $0x28] sm:$0xff]
  %v229 = vld [vmem:[%s1 + $0x30] sm:$0xff]
  %v230 = vld [vmem:[%s1 + $0x38] sm:$0xff]
  %v231 = vld [vmem:[%s1 + $0x40] sm:$0xff]
  %v232 = vld [vmem:[%s1 + $0x48] sm:$0xff]
  %v233 = vld [vmem:[%s1 + $0x50] sm:$0xff]
  %v234 = vld [vmem:[%s1 + $0x58] sm:$0xff]
  %v235 = vld [vmem:[%s1 + $0x60] sm:$0xff]
  %v236 = vld [vmem:[%s1 + $0x68] sm:$0xff]
  %v237 = vld [vmem:[%s1 + $0x70] sm:$0xff]
  %v238 = vld [vmem:[%s1 + $0x78] sm:$0xff]
  %v239 = vld [vmem:[%s1 + $0x80] sm:$0xff]
  %v240 = vld [vmem:[%s1 + $0x88] sm:$0xff]
  %v241 = vld [vmem:[%s1 + $0x90] sm:$0xff]
  %v242 = vld [vmem:[%s1 + $0x98] sm:$0xff]
  %v243 = vld [vmem:[%s1 + $0xa0] sm:$0xff]
  %v244 = vld [vmem:[%s1 + $0xa8] sm:$0xff]
  %v245 = vld [vmem:[%s1 + $0xb0] sm:$0xff]
  %v246 = vld [vmem:[%s1 + $0xb8] sm:$0xff]
  %v247 = vld [vmem:[%s1 + $0xc0] sm:$0xff]
  %v248 = vld [vmem:[%s1 + $0xc8] sm:$0xff]
  %v249 = vld [vmem:[%s1 + $0xd0] sm:$0xff]
  %v250 = vld [vmem:[%s1 + $0xd8] sm:$0xff]
  %v251 = vld [vmem:[%s1 + $0xe0] sm:$0xff]
  %v252 = vld [vmem:[%s1 + $0xe8] sm:$0xff]
  %v253 = vld [vmem:[%s1 + $0xf0] sm:$0xff]
  %v254 = vld [vmem:[%s1 + $0xf8] sm:$0xff]
  %v255 = vld [vmem:[%s1 + $0x100] sm:$0xff]
  %v256 = vld [vmem:[%s1 + $0x108] sm:$0xff]
  %v257 = vld [vmem:[%s1 + $0x110] sm:$0xff]
  %v258 = vld [vmem:[%s1 + $0x118] sm:$0xff]
  %v259 = vld [vmem:[%s1 + $0x120] sm:$0xff]
  %v260 = vld [vmem:[%s1 + $0x128] sm:$0xff]
  %v261 = vld [vmem:[%s1 + $0x130] sm:$0xff]
  %v262 = vld [vmem:[%s1 + $0x138] sm:$0xff]
  %v263 = vld [vmem:[%s1 + $0x140] sm:$0xff]
  %v264 = vld [vmem:[%s1 + $0x148] sm:$0xff]
  %v265 = vld [vmem:[%s1 + $0x150] sm:$0xff]
  %v266 = vld [vmem:[%s1 + $0x158] sm:$0xff]
  %v267 = vld [vmem:[%s1 + $0x160] sm:$0xff]
  %v268 = vld [vmem:[%s1 + $0x168] sm:$0xff]
  %v269 = vld [vmem:[%s1 + $0x170] sm:$0xff]
  %v270 = vld [vmem:[%s1 + $0x178] sm:$0xff]
  %v271 = vld [vmem:[%s1 + $0x180] sm:$0xff]
  %v272 = vld [vmem:[%s1 + $0x188] sm:$0xff]
  %v273 = vld [vmem:[%s1 + $0x190] sm:$0xff]
  %v274 = vld [vmem:[%s1 + $0x198] sm:$0xff]
  %v275 = vld [vmem:[%s1 + $0x1a0] sm:$0xff]
  %v276 = vld [vmem:[%s1 + $0x1a8] sm:$0xff]
  %v277 = vld [vmem:[%s1 + $0x1b0] sm:$0xff]
  %v278 = vld [vmem:[%s1 + $0x1b8] sm:$0xff]
  %v279 = vld [vmem:[%s1 + $0x1c0] sm:$0xff]
  %v280 = vld [vmem:[%s1 + $0x1c8] sm:$0xff]
  %v281 = vld [vmem:[%s1 + $0x1d0] sm:$0xff]
  %v282 = vld [vmem:[%s1 + $0x1d8] sm:$0xff]
  %v283 = vld [vmem:[%s1 + $0x1e0] sm:$0xff]
  %v284 = vld [vmem:[%s1 + $0x1e8] sm:$0xff]
  %v285 = vld [vmem:[%s1 + $0x1f0] sm:$0xff]
  %v286 = vld [vmem:[%s1 + $0x1f8] sm:$0xff]
  %v287 = vadd.f32 %v159, %v223
  %v288 = vadd.f32 %v160, %v224
  %v289 = vadd.f32 %v161, %v225
  %v290 = vadd.f32 %v162, %v226
  %v291 = vadd.f32 %v163, %v227
  %v292 = vadd.f32 %v164, %v228
  %v293 = vadd.f32 %v165, %v229
  %v294 = vadd.f32 %v166, %v230
  %v295 = vadd.f32 %v167, %v231
  %v296 = vadd.f32 %v168, %v232
  %v297 = vadd.f32 %v169, %v233
  %v298 = vadd.f32 %v170, %v234
  %v299 = vadd.f32 %v171, %v235
  %v300 = vadd.f32 %v172, %v236
  %v301 = vadd.f32 %v173, %v237
  %v302 = vadd.f32 %v174, %v238
  %v303 = vadd.f32 %v175, %v239
  %v304 = vadd.f32 %v176, %v240
  %v305 = vadd.f32 %v177, %v241
  %v306 = vadd.f32 %v178, %v242
  %v307 = vadd.f32 %v179, %v243
  %v308 = vadd.f32 %v180, %v244
  %v309 = vadd.f32 %v181, %v245
  %v310 = vadd.f32 %v182, %v246
  %v311 = vadd.f32 %v183, %v247
  %v312 = vadd.f32 %v184, %v248
  %v313 = vadd.f32 %v185, %v249
  %v314 = vadd.f32 %v186, %v250
  %v315 = vadd.f32 %v187, %v251
  %v316 = vadd.f32 %v188, %v252
  %v317 = vadd.f32 %v189, %v253
  %v318 = vadd.f32 %v190, %v254
  %v319 = vadd.f32 %v191, %v255
  %v320 = vadd.f32 %v192, %v256
  %v321 = vadd.f32 %v193, %v257
  %v322 = vadd.f32 %v194, %v258
  %v323 = vadd.f32 %v195, %v259
  %v324 = vadd.f32 %v196, %v260
  %v325 = vadd.f32 %v197, %v261
  %v326 = vadd.f32 %v198, %v262
  %v327 = vadd.f32 %v199, %v263
  %v328 = vadd.f32 %v200, %v264
  %v329 = vadd.f32 %v201, %v265
  %v330 = vadd.f32 %v202, %v266
  %v331 = vadd.f32 %v203, %v267
  %v332 = vadd.f32 %v204, %v268
  %v333 = vadd.f32 %v205, %v269
  %v334 = vadd.f32 %v206, %v270
  %v335 = vadd.f32 %v207, %v271
  %v336 = vadd.f32 %v208, %v272
  %v337 = vadd.f32 %v209, %v273
  %v338 = vadd.f32 %v210, %v274
  %v339 = vadd.f32 %v211, %v275
  %v340 = vadd.f32 %v212, %v276
  %v341 = vadd.f32 %v213, %v277
  %v342 = vadd.f32 %v214, %v278
  %v343 = vadd.f32 %v215, %v279
  %v344 = vadd.f32 %v216, %v280
  %v345 = vadd.f32 %v217, %v281
  %v346 = vadd.f32 %v218, %v282
  %v347 = vadd.f32 %v219, %v283
  %v348 = vadd.f32 %v220, %v284
  %v349 = vadd.f32 %v221, %v285
  %v350 = vadd.f32 %v222, %v286
  %vm351 = vcmask 31744
  %352 = vst.msk [vmem:[%s4] sm:$0xff] %vm351, %v287
  %353 = vst.msk [vmem:[%s4 + $0x8] sm:$0xff] %vm351, %v288
  %354 = vst.msk [vmem:[%s4 + $0x10] sm:$0xff] %vm351, %v289
  %355 = vst.msk [vmem:[%s4 + $0x18] sm:$0xff] %vm351, %v290
  %356 = vst.msk [vmem:[%s4 + $0x20] sm:$0xff] %vm351, %v291
  %357 = vst.msk [vmem:[%s4 + $0x28] sm:$0xff] %vm351, %v292
  %358 = vst.msk [vmem:[%s4 + $0x30] sm:$0xff] %vm351, %v293
  %359 = vst.msk [vmem:[%s4 + $0x38] sm:$0xff] %vm351, %v294
  %360 = vst.msk [vmem:[%s4 + $0x40] sm:$0xff] %vm351, %v295
  %361 = vst.msk [vmem:[%s4 + $0x48] sm:$0xff] %vm351, %v296
  %362 = vst.msk [vmem:[%s4 + $0x50] sm:$0xff] %vm351, %v297
  %363 = vst.msk [vmem:[%s4 + $0x58] sm:$0xff] %vm351, %v298
  %364 = vst.msk [vmem:[%s4 + $0x60] sm:$0xff] %vm351, %v299
  %365 = vst.msk [vmem:[%s4 + $0x68] sm:$0xff] %vm351, %v300
  %366 = vst.msk [vmem:[%s4 + $0x70] sm:$0xff] %vm351, %v301
  %367 = vst.msk [vmem:[%s4 + $0x78] sm:$0xff] %vm351, %v302
  %368 = vst.msk [vmem:[%s4 + $0x80] sm:$0xff] %vm351, %v303
  %369 = vst.msk [vmem:[%s4 + $0x88] sm:$0xff] %vm351, %v304
  %370 = vst.msk [vmem:[%s4 + $0x90] sm:$0xff] %vm351, %v305
  %371 = vst.msk [vmem:[%s4 + $0x98] sm:$0xff] %vm351, %v306
  %372 = vst.msk [vmem:[%s4 + $0xa0] sm:$0xff] %vm351, %v307
  %373 = vst.msk [vmem:[%s4 + $0xa8] sm:$0xff] %vm351, %v308
  %374 = vst.msk [vmem:[%s4 + $0xb0] sm:$0xff] %vm351, %v309
  %375 = vst.msk [vmem:[%s4 + $0xb8] sm:$0xff] %vm351, %v310
  %376 = vst.msk [vmem:[%s4 + $0xc0] sm:$0xff] %vm351, %v311
  %377 = vst.msk [vmem:[%s4 + $0xc8] sm:$0xff] %vm351, %v312
  %378 = vst.msk [vmem:[%s4 + $0xd0] sm:$0xff] %vm351, %v313
  %379 = vst.msk [vmem:[%s4 + $0xd8] sm:$0xff] %vm351, %v314
  %380 = vst.msk [vmem:[%s4 + $0xe0] sm:$0xff] %vm351, %v315
  %381 = vst.msk [vmem:[%s4 + $0xe8] sm:$0xff] %vm351, %v316
  %382 = vst.msk [vmem:[%s4 + $0xf0] sm:$0xff] %vm351, %v317
  %383 = vst.msk [vmem:[%s4 + $0xf8] sm:$0xff] %vm351, %v318
  %384 = vst.msk [vmem:[%s4 + $0x100] sm:$0xff] %vm351, %v319
  %385 = vst.msk [vmem:[%s4 + $0x108] sm:$0xff] %vm351, %v320
  %386 = vst.msk [vmem:[%s4 + $0x110] sm:$0xff] %vm351, %v321
  %387 = vst.msk [vmem:[%s4 + $0x118] sm:$0xff] %vm351, %v322
  %388 = vst.msk [vmem:[%s4 + $0x120] sm:$0xff] %vm351, %v323
  %389 = vst.msk [vmem:[%s4 + $0x128] sm:$0xff] %vm351, %v324
  %390 = vst.msk [vmem:[%s4 + $0x130] sm:$0xff] %vm351, %v325
  %391 = vst.msk [vmem:[%s4 + $0x138] sm:$0xff] %vm351, %v326
  %392 = vst.msk [vmem:[%s4 + $0x140] sm:$0xff] %vm351, %v327
  %393 = vst.msk [vmem:[%s4 + $0x148] sm:$0xff] %vm351, %v328
  %394 = vst.msk [vmem:[%s4 + $0x150] sm:$0xff] %vm351, %v329
  %395 = vst.msk [vmem:[%s4 + $0x158] sm:$0xff] %vm351, %v330
  %396 = vst.msk [vmem:[%s4 + $0x160] sm:$0xff] %vm351, %v331
  %397 = vst.msk [vmem:[%s4 + $0x168] sm:$0xff] %vm351, %v332
  %398 = vst.msk [vmem:[%s4 + $0x170] sm:$0xff] %vm351, %v333
  %399 = vst.msk [vmem:[%s4 + $0x178] sm:$0xff] %vm351, %v334
  %400 = vst.msk [vmem:[%s4 + $0x180] sm:$0xff] %vm351, %v335
  %401 = vst.msk [vmem:[%s4 + $0x188] sm:$0xff] %vm351, %v336
  %402 = vst.msk [vmem:[%s4 + $0x190] sm:$0xff] %vm351, %v337
  %403 = vst.msk [vmem:[%s4 + $0x198] sm:$0xff] %vm351, %v338
  %404 = vst.msk [vmem:[%s4 + $0x1a0] sm:$0xff] %vm351, %v339
  %405 = vst.msk [vmem:[%s4 + $0x1a8] sm:$0xff] %vm351, %v340
  %406 = vst.msk [vmem:[%s4 + $0x1b0] sm:$0xff] %vm351, %v341
  %407 = vst.msk [vmem:[%s4 + $0x1b8] sm:$0xff] %vm351, %v342
  %408 = vst.msk [vmem:[%s4 + $0x1c0] sm:$0xff] %vm351, %v343
  %409 = vst.msk [vmem:[%s4 + $0x1c8] sm:$0xff] %vm351, %v344
  %410 = vst.msk [vmem:[%s4 + $0x1d0] sm:$0xff] %vm351, %v345
  %411 = vst.msk [vmem:[%s4 + $0x1d8] sm:$0xff] %vm351, %v346
  %412 = vst.msk [vmem:[%s4 + $0x1e0] sm:$0xff] %vm351, %v347
  %413 = vst.msk [vmem:[%s4 + $0x1e8] sm:$0xff] %vm351, %v348
  %414 = vst.msk [vmem:[%s4 + $0x1f0] sm:$0xff] %vm351, %v349
  %415 = vst.msk [vmem:[%s4 + $0x1f8] sm:$0xff] %vm351, %v350
  // Predicated region
  $region18: #{convmixer_block_nhwc.3} parent=0 // pred_check
    _
  $region19: #{convmixer_block_nhwc.3} parent=0 // pred_check_branch
    %417 = sbr.rel (0) target = $region21
  $region20: #{convmixer_block_nhwc.3} parent=0 // pred_region
    _
  $region21: #{convmixer_block_nhwc.3} parent=0 // pred_fallthru
    _
  // Predicated region
  $region22: #{convmixer_block_nhwc.3} parent=0 // pred_check
    _
  $region23: #{convmixer_block_nhwc.3} parent=0 // pred_check_branch
    %419 = sbr.rel (0) target = $region25
  $region24: #{convmixer_block_nhwc.3} parent=0 // pred_region
    _
  $region25: #{convmixer_block_nhwc.3} parent=0 // pred_fallthru
    _

// kernel: convmixer_block_nhwc.2
$region0: #{convmixer_block_nhwc.2}
  #allocation0 [shape = 'u32[]', space=smem, size = 0x4, offset = 0x4, fixed_abs, tag = 'smem constant byte address 0x4 - core index']
  #allocation1 [shape = 'u32[144,128]{1,0:T(1,128)}', space=vmem, size = 0x12000, scoped, tag = 'internal scratch']
  #allocation2 [shape = 'f32[2,20,20,4]{3,2,1,0:T(8,128)}', space=vmem, size = 0x78000, scoped, tag = 'scratch operand']
  %s0 = inlined_call_operand.vmem [shape: f32[2,16,16,4], index: 0, kind: input, shape index: {}]
  %s1 = inlined_call_operand.vmem [shape: f32[25,4], index: 1, kind: input, shape index: {}]
  %s2 = inlined_call_operand.vmem [shape: f32[1,4], index: 2, kind: input, shape index: {}]
  %s3 = inlined_call_operand.vmem [shape: f32[2,16,16,4], index: 3, kind: output, shape index: {0}]
  %s4 = inlined_call_operand.vmem [shape: f32[1,4], index: 4, kind: output, shape index: {1}]
  %s5 = inlined_call_operand.vmem [shape: f32[1,4], index: 5, kind: output, shape index: {2}]
  %6 = xla_tuple %s3, %s4, %s5
  %s7 = sld [smem:[#allocation0]]
  $region42: #{convmixer_block_nhwc.2} parent=0
    _
  %s9 = ssub.s32 1, %s7
  %s10 = scalar_select 0, %s9, %s7
  // Predicated region
  $region2: #{convmixer_block_nhwc.2} parent=0 // pred_check
    _
  $region3: #{convmixer_block_nhwc.2} parent=0 // pred_check_branch
    %12 = sbr.rel (0) target = $region5
  $region4: #{convmixer_block_nhwc.2} parent=0 // pred_region
    _
  $region5: #{convmixer_block_nhwc.2} parent=0 // pred_fallthru
    _
  // Predicated region
  $region6: #{convmixer_block_nhwc.2} parent=0 // pred_check
    _
  $region7: #{convmixer_block_nhwc.2} parent=0 // pred_check_branch
    %14 = sbr.rel (0) target = $region9
  $region8: #{convmixer_block_nhwc.2} parent=0 // pred_region
    _
  $region9: #{convmixer_block_nhwc.2} parent=0 // pred_fallthru
    _
  // Predicated region
  $region10: #{convmixer_block_nhwc.2} parent=0 // pred_check
    _
  $region11: #{convmixer_block_nhwc.2} parent=0 // pred_check_branch
    %16 = sbr.rel (0) target = $region13
  $region12: #{convmixer_block_nhwc.2} parent=0 // pred_region
    _
  $region13: #{convmixer_block_nhwc.2} parent=0 // pred_fallthru
    _
  %vm17 = vcmask 31744
  %18 = vst.msk [vmem:[#allocation2] sm:$0xff] %vm17, 0.0
  %19 = vst.msk [vmem:[#allocation2 + $0x8] sm:$0xff] %vm17, 0.0
  %vm20 = vcmask 27648
  %21 = vst.msk [vmem:[#allocation2 + $0x10] sm:$0xf] %vm20, 0.0
  %22 = vst.msk [vmem:[#allocation2 + $0x18] sm:$0xff] %vm17, 0.0
  %23 = vst.msk [vmem:[#allocation2 + $0x20] sm:$0xff] %vm17, 0.0
  %24 = vst.msk [vmem:[#allocation2 + $0x28] sm:$0xf] %vm20, 0.0
  %25 = vst.msk [vmem:[#allocation2 + $0x1e0] sm:$0xff] %vm17, 0.0
  %26 = vst.msk [vmem:[#allocation2 + $0x1e8] sm:$0xff] %vm17, 0.0
  %27 = vst.msk [vmem:[#allocation2 + $0x1f0] sm:$0xf] %vm20, 0.0
  %28 = vst.msk [vmem:[#allocation2 + $0x1f8] sm:$0xff] %vm17, 0.0
  %29 = vst.msk [vmem:[#allocation2 + $0x200] sm:$0xff] %vm17, 0.0
  %30 = vst.msk [vmem:[#allocation2 + $0x208] sm:$0xf] %vm20, 0.0
  %s31 = scalar_lea.vmem [#allocation2], 432
  %32 = vst.msk [vmem:[%s31] sm:$0xff] %vm17, 0.0
  %33 = vst.msk [vmem:[%s31 + $0x8] sm:$0xff] %vm17, 0.0
  %34 = vst.msk [vmem:[%s31 + $0x10] sm:$0xf] %vm20, 0.0
  %35 = vst.msk [vmem:[%s31 + $0x18] sm:$0xff] %vm17, 0.0
  %36 = vst.msk [vmem:[%s31 + $0x20] sm:$0xff] %vm17, 0.0
  %37 = vst.msk [vmem:[%s31 + $0x28] sm:$0xf] %vm20, 0.0
  %38 = vst.msk [vmem:[%s31 + $0x1e0] sm:$0xff] %vm17, 0.0
  %39 = vst.msk [vmem:[%s31 + $0x1e8] sm:$0xff] %vm17, 0.0
  %40 = vst.msk [vmem:[%s31 + $0x1f0] sm:$0xf] %vm20, 0.0
  %41 = vst.msk [vmem:[%s31 + $0x1f8] sm:$0xff] %vm17, 0.0
  %42 = vst.msk [vmem:[%s31 + $0x200] sm:$0xff] %vm17, 0.0
  %43 = vst.msk [vmem:[%s31 + $0x208] sm:$0xf] %vm20, 0.0
  %s44 = scalar_lea.vmem [#allocation2], 48
  %vm45 = vcmask 25600
  %46 = vst.msk [vmem:[%s44] sm:$0x3] %vm45, 0.0
  %47 = vst.msk [vmem:[%s44 + $0x18] sm:$0x3] %vm45, 0.0
  %48 = vst.msk [vmem:[%s44 + $0x30] sm:$0x3] %vm45, 0.0
  %49 = vst.msk [vmem:[%s44 + $0x48] sm:$0x3] %vm45, 0.0
  %50 = vst.msk [vmem:[%s44 + $0x60] sm:$0x3] %vm45, 0.0
  %51 = vst.msk [vmem:[%s44 + $0x78] sm:$0x3] %vm45, 0.0
  %52 = vst.msk [vmem:[%s44 + $0x90] sm:$0x3] %vm45, 0.0
  %53 = vst.msk [vmem:[%s44 + $0xa8] sm:$0x3] %vm45, 0.0
  %54 = vst.msk [vmem:[%s44 + $0xc0] sm:$0x3] %vm45, 0.0
  %55 = vst.msk [vmem:[%s44 + $0xd8] sm:$0x3] %vm45, 0.0
  %56 = vst.msk [vmem:[%s44 + $0xf0] sm:$0x3] %vm45, 0.0
  %57 = vst.msk [vmem:[%s44 + $0x108] sm:$0x3] %vm45, 0.0
  %58 = vst.msk [vmem:[%s44 + $0x120] sm:$0x3] %vm45, 0.0
  %59 = vst.msk [vmem:[%s44 + $0x138] sm:$0x3] %vm45, 0.0
  %60 = vst.msk [vmem:[%s44 + $0x150] sm:$0x3] %vm45, 0.0
  %61 = vst.msk [vmem:[%s44 + $0x168] sm:$0x3] %vm45, 0.0
  %62 = vst.msk [vmem:[%s44 + $0x1e0] sm:$0x3] %vm45, 0.0
  %63 = vst.msk [vmem:[%s44 + $0x1f8] sm:$0x3] %vm45, 0.0
  %64 = vst.msk [vmem:[%s44 + $0x210] sm:$0x3] %vm45, 0.0
  %65 = vst.msk [vmem:[%s44 + $0x228] sm:$0x3] %vm45, 0.0
  %66 = vst.msk [vmem:[%s44 + $0x240] sm:$0x3] %vm45, 0.0
  %67 = vst.msk [vmem:[%s44 + $0x258] sm:$0x3] %vm45, 0.0
  %68 = vst.msk [vmem:[%s44 + $0x270] sm:$0x3] %vm45, 0.0
  %69 = vst.msk [vmem:[%s44 + $0x288] sm:$0x3] %vm45, 0.0
  %70 = vst.msk [vmem:[%s44 + $0x2a0] sm:$0x3] %vm45, 0.0
  %71 = vst.msk [vmem:[%s44 + $0x2b8] sm:$0x3] %vm45, 0.0
  %72 = vst.msk [vmem:[%s44 + $0x2d0] sm:$0x3] %vm45, 0.0
  %73 = vst.msk [vmem:[%s44 + $0x2e8] sm:$0x3] %vm45, 0.0
  %74 = vst.msk [vmem:[%s44 + $0x300] sm:$0x3] %vm45, 0.0
  %75 = vst.msk [vmem:[%s44 + $0x318] sm:$0x3] %vm45, 0.0
  %76 = vst.msk [vmem:[%s44 + $0x330] sm:$0x3] %vm45, 0.0
  %77 = vst.msk [vmem:[%s44 + $0x348] sm:$0x3] %vm45, 0.0
  %78 = vst.msk [vmem:[%s44 + $0x12] sm:$0x3] %vm45, 0.0
  %79 = vst.msk [vmem:[%s44 + $0x2a] sm:$0x3] %vm45, 0.0
  %80 = vst.msk [vmem:[%s44 + $0x42] sm:$0x3] %vm45, 0.0
  %81 = vst.msk [vmem:[%s44 + $0x5a] sm:$0x3] %vm45, 0.0
  %82 = vst.msk [vmem:[%s44 + $0x72] sm:$0x3] %vm45, 0.0
  %83 = vst.msk [vmem:[%s44 + $0x8a] sm:$0x3] %vm45, 0.0
  %84 = vst.msk [vmem:[%s44 + $0xa2] sm:$0x3] %vm45, 0.0
  %85 = vst.msk [vmem:[%s44 + $0xba] sm:$0x3] %vm45, 0.0
  %86 = vst.msk [vmem:[%s44 + $0xd2] sm:$0x3] %vm45, 0.0
  %87 = vst.msk [vmem:[%s44 + $0xea] sm:$0x3] %vm45, 0.0
  %88 = vst.msk [vmem:[%s44 + $0x102] sm:$0x3] %vm45, 0.0
  %89 = vst.msk [vmem:[%s44 + $0x11a] sm:$0x3] %vm45, 0.0
  %90 = vst.msk [vmem:[%s44 + $0x132] sm:$0x3] %vm45, 0.0
  %91 = vst.msk [vmem:[%s44 + $0x14a] sm:$0x3] %vm45, 0.0
  %92 = vst.msk [vmem:[%s44 + $0x162] sm:$0x3] %vm45, 0.0
  %93 = vst.msk [vmem:[%s44 + $0x17a] sm:$0x3] %vm45, 0.0
  %94 = vst.msk [vmem:[%s44 + $0x1f2] sm:$0x3] %vm45, 0.0
  %95 = vst.msk [vmem:[%s44 + $0x20a] sm:$0x3] %vm45, 0.0
  %96 = vst.msk [vmem:[%s44 + $0x222] sm:$0x3] %vm45, 0.0
  %97 = vst.msk [vmem:[%s44 + $0x23a] sm:$0x3] %vm45, 0.0
  %98 = vst.msk [vmem:[%s44 + $0x252] sm:$0x3] %vm45, 0.0
  %99 = vst.msk [vmem:[%s44 + $0x26a] sm:$0x3] %vm45, 0.0
  %100 = vst.msk [vmem:[%s44 + $0x282] sm:$0x3] %vm45, 0.0
  %101 = vst.msk [vmem:[%s44 + $0x29a] sm:$0x3] %vm45, 0.0
  %102 = vst.msk [vmem:[%s44 + $0x2b2] sm:$0x3] %vm45, 0.0
  %103 = vst.msk [vmem:[%s44 + $0x2ca] sm:$0x3] %vm45, 0.0
  %104 = vst.msk [vmem:[%s44 + $0x2e2] sm:$0x3] %vm45, 0.0
  %105 = vst.msk [vmem:[%s44 + $0x2fa] sm:$0x3] %vm45, 0.0
  %106 = vst.msk [vmem:[%s44 + $0x312] sm:$0x3] %vm45, 0.0
  %107 = vst.msk [vmem:[%s44 + $0x32a] sm:$0x3] %vm45, 0.0
  %108 = vst.msk [vmem:[%s44 + $0x342] sm:$0x3] %vm45, 0.0
  %109 = vst.msk [vmem:[%s44 + $0x35a] sm:$0x3] %vm45, 0.0
  %v110 = vld [vmem:[%s0] sm:$0xff]
  %v111 = vld [vmem:[%s0 + $0x8] sm:$0xff]
  %v112 = vld [vmem:[%s0 + $0x10] sm:$0xff]
  %v113 = vld [vmem:[%s0 + $0x18] sm:$0xff]
  %v114 = vld [vmem:[%s0 + $0x20] sm:$0xff]
  %v115 = vld [vmem:[%s0 + $0x28] sm:$0xff]
  %v116 = vld [vmem:[%s0 + $0x30] sm:$0xff]
  %v117 = vld [vmem:[%s0 + $0x38] sm:$0xff]
  %v118 = vld [vmem:[%s0 + $0x40] sm:$0xff]
  %v119 = vld [vmem:[%s0 + $0x48] sm:$0xff]
  %v120 = vld [vmem:[%s0 + $0x50] sm:$0xff]
  %v121 = vld [vmem:[%s0 + $0x58] sm:$0xff]
  %v122 = vld [vmem:[%s0 + $0x60] sm:$0xff]
  %v123 = vld [vmem:[%s0 + $0x68] sm:$0xff]
  %v124 = vld [vmem:[%s0 + $0x70] sm:$0xff]
  %v125 = vld [vmem:[%s0 + $0x78] sm:$0xff]
  %v126 = vld [vmem:[%s0 + $0x80] sm:$0xff]
  %v127 = vld [vmem:[%s0 + $0x88] sm:$0xff]
  %v128 = vld [vmem:[%s0 + $0x90] sm:$0xff]
  %v129 = vld [vmem:[%s0 + $0x98] sm:$0xff]
  %v130 = vld [vmem:[%s0 + $0xa0] sm:$0xff]
  %v131 = vld [vmem:[%s0 + $0xa8] sm:$0xff]
  %v132 = vld [vmem:[%s0 + $0xb0] sm:$0xff]
  %v133 = vld [vmem:[%s0 + $0xb8] sm:$0xff]
  %v134 = vld [vmem:[%s0 + $0xc0] sm:$0xff]
  %v135 = vld [vmem:[%s0 + $0xc8] sm:$0xff]
  %v136 = vld [vmem:[%s0 + $0xd0] sm:$0xff]
  %v137 = vld [vmem:[%s0 + $0xd8] sm:$0xff]
  %v138 = vld [vmem:[%s0 + $0xe0] sm:$0xff]
  %v139 = vld [vmem:[%s0 + $0xe8] sm:$0xff]
  %v140 = vld [vmem:[%s0 + $0xf0] sm:$0xff]
  %v141 = vld [vmem:[%s0 + $0xf8] sm:$0xff]
  %v142 = vld [vmem:[%s0 + $0x100] sm:$0xff]
  %v143 = vld [vmem:[%s0 + $0x108] sm:$0xff]
  %v144 = vld [vmem:[%s0 + $0x110] sm:$0xff]
  %v145 = vld [vmem:[%s0 + $0x118] sm:$0xff]
  %v146 = vld [vmem:[%s0 + $0x120] sm:$0xff]
  %v147 = vld [vmem:[%s0 + $0x128] sm:$0xff]
  %v148 = vld [vmem:[%s0 + $0x130] sm:$0xff]
  %v149 = vld [vmem:[%s0 + $0x138] sm:$0xff]
  %v150 = vld [vmem:[%s0 + $0x140] sm:$0xff]
  %v151 = vld [vmem:[%s0 + $0x148] sm:$0xff]
  %v152 = vld [vmem:[%s0 + $0x150] sm:$0xff]
  %v153 = vld [vmem:[%s0 + $0x158] sm:$0xff]
  %v154 = vld [vmem:[%s0 + $0x160] sm:$0xff]
  %v155 = vld [vmem:[%s0 + $0x168] sm:$0xff]
  %v156 = vld [vmem:[%s0 + $0x170] sm:$0xff]
  %v157 = vld [vmem:[%s0 + $0x178] sm:$0xff]
  %v158 = vld [vmem:[%s0 + $0x180] sm:$0xff]
  %v159 = vld [vmem:[%s0 + $0x188] sm:$0xff]
  %v160 = vld [vmem:[%s0 + $0x190] sm:$0xff]
  %v161 = vld [vmem:[%s0 + $0x198] sm:$0xff]
  %v162 = vld [vmem:[%s0 + $0x1a0] sm:$0xff]
  %v163 = vld [vmem:[%s0 + $0x1a8] sm:$0xff]
  %v164 = vld [vmem:[%s0 + $0x1b0] sm:$0xff]
  %v165 = vld [vmem:[%s0 + $0x1b8] sm:$0xff]
  %v166 = vld [vmem:[%s0 + $0x1c0] sm:$0xff]
  %v167 = vld [vmem:[%s0 + $0x1c8] sm:$0xff]
  %v168 = vld [vmem:[%s0 + $0x1d0] sm:$0xff]
  %v169 = vld [vmem:[%s0 + $0x1d8] sm:$0xff]
  %v170 = vld [vmem:[%s0 + $0x1e0] sm:$0xff]
  %v171 = vld [vmem:[%s0 + $0x1e8] sm:$0xff]
  %v172 = vld [vmem:[%s0 + $0x1f0] sm:$0xff]
  %v173 = vld [vmem:[%s0 + $0x1f8] sm:$0xff]
  %174 = vst.msk [vmem:[%s44 + $0x2] sm:$0xff] %vm17, %v110
  %175 = vst.msk [vmem:[%s44 + $0xa] sm:$0xff] %vm17, %v111
  %176 = vst.msk [vmem:[%s44 + $0x1a] sm:$0xff] %vm17, %v112
  %177 = vst.msk [vmem:[%s44 + $0x22] sm:$0xff] %vm17, %v113
  %178 = vst.msk [vmem:[%s44 + $0x32] sm:$0xff] %vm17, %v114
  %179 = vst.msk [vmem:[%s44 + $0x3a] sm:$0xff] %vm17, %v115
  %180 = vst.msk [vmem:[%s44 + $0x4a] sm:$0xff] %vm17, %v116
  %181 = vst.msk [vmem:[%s44 + $0x52] sm:$0xff] %vm17, %v117
  %182 = vst.msk [vmem:[%s44 + $0x62] sm:$0xff] %vm17, %v118
  %183 = vst.msk [vmem:[%s44 + $0x6a] sm:$0xff] %vm17, %v119
  %184 = vst.msk [vmem:[%s44 + $0x7a] sm:$0xff] %vm17, %v120
  %185 = vst.msk [vmem:[%s44 + $0x82] sm:$0xff] %vm17, %v121
  %186 = vst.msk [vmem:[%s44 + $0x92] sm:$0xff] %vm17, %v122
  %187 = vst.msk [vmem:[%s44 + $0x9a] sm:$0xff] %vm17, %v123
  %188 = vst.msk [vmem:[%s44 + $0xaa] sm:$0xff] %vm17, %v124
  %189 = vst.msk [vmem:[%s44 + $0xb2] sm:$0xff] %vm17, %v125
  %190 = vst.msk [vmem:[%s44 + $0xc2] sm:$0xff] %vm17, %v126
  %191 = vst.msk [vmem:[%s44 + $0xca] sm:$0xff] %vm17, %v127
  %192 = vst.msk [vmem:[%s44 + $0xda] sm:$0xff] %vm17, %v128
  %193 = vst.msk [vmem:[%s44 + $0xe2] sm:$0xff] %vm17, %v129
  %194 = vst.msk [vmem:[%s44 + $0xf2] sm:$0xff] %vm17, %v130
  %195 = vst.msk [vmem:[%s44 + $0xfa] sm:$0xff] %vm17, %v131
  %196 = vst.msk [vmem:[%s44 + $0x10a] sm:$0xff] %vm17, %v132
  %197 = vst.msk [vmem:[%s44 + $0x112] sm:$0xff] %vm17, %v133
  %198 = vst.msk [vmem:[%s44 + $0x122] sm:$0xff] %vm17, %v134
  %199 = vst.msk [vmem:[%s44 + $0x12a] sm:$0xff] %vm17, %v135
  %200 = vst.msk [vmem:[%s44 + $0x13a] sm:$0xff] %vm17, %v136
  %201 = vst.msk [vmem:[%s44 + $0x142] sm:$0xff] %vm17, %v137
  %202 = vst.msk [vmem:[%s44 + $0x152] sm:$0xff] %vm17, %v138
  %203 = vst.msk [vmem:[%s44 + $0x15a] sm:$0xff] %vm17, %v139
  %204 = vst.msk [vmem:[%s44 + $0x16a] sm:$0xff] %vm17, %v140
  %205 = vst.msk [vmem:[%s44 + $0x172] sm:$0xff] %vm17, %v141
  %206 = vst.msk [vmem:[%s44 + $0x1e2] sm:$0xff] %vm17, %v142
  %207 = vst.msk [vmem:[%s44 + $0x1ea] sm:$0xff] %vm17, %v143
  %208 = vst.msk [vmem:[%s44 + $0x1fa] sm:$0xff] %vm17, %v144
  %209 = vst.msk [vmem:[%s44 + $0x202] sm:$0xff] %vm17, %v145
  %210 = vst.msk [vmem:[%s44 + $0x212] sm:$0xff] %vm17, %v146
  %211 = vst.msk [vmem:[%s44 + $0x21a] sm:$0xff] %vm17, %v147
  %212 = vst.msk [vmem:[%s44 + $0x22a] sm:$0xff] %vm17, %v148
  %213 = vst.msk [vmem:[%s44 + $0x232] sm:$0xff] %vm17, %v149
  %214 = vst.msk [vmem:[%s44 + $0x242] sm:$0xff] %vm17, %v150
  %215 = vst.msk [vmem:[%s44 + $0x24a] sm:$0xff] %vm17, %v151
  %216 = vst.msk [vmem:[%s44 + $0x25a] sm:$0xff] %vm17, %v152
  %217 = vst.msk [vmem:[%s44 + $0x262] sm:$0xff] %vm17, %v153
  %218 = vst.msk [vmem:[%s44 + $0x272] sm:$0xff] %vm17, %v154
  %219 = vst.msk [vmem:[%s44 + $0x27a] sm:$0xff] %vm17, %v155
  %220 = vst.msk [vmem:[%s44 + $0x28a] sm:$0xff] %vm17, %v156
  %221 = vst.msk [vmem:[%s44 + $0x292] sm:$0xff] %vm17, %v157
  %222 = vst.msk [vmem:[%s44 + $0x2a2] sm:$0xff] %vm17, %v158
  %223 = vst.msk [vmem:[%s44 + $0x2aa] sm:$0xff] %vm17, %v159
  %224 = vst.msk [vmem:[%s44 + $0x2ba] sm:$0xff] %vm17, %v160
  %225 = vst.msk [vmem:[%s44 + $0x2c2] sm:$0xff] %vm17, %v161
  %226 = vst.msk [vmem:[%s44 + $0x2d2] sm:$0xff] %vm17, %v162
  %227 = vst.msk [vmem:[%s44 + $0x2da] sm:$0xff] %vm17, %v163
  %228 = vst.msk [vmem:[%s44 + $0x2ea] sm:$0xff] %vm17, %v164
  %229 = vst.msk [vmem:[%s44 + $0x2f2] sm:$0xff] %vm17, %v165
  %230 = vst.msk [vmem:[%s44 + $0x302] sm:$0xff] %vm17, %v166
  %231 = vst.msk [vmem:[%s44 + $0x30a] sm:$0xff] %vm17, %v167
  %232 = vst.msk [vmem:[%s44 + $0x31a] sm:$0xff] %vm17, %v168
  %233 = vst.msk [vmem:[%s44 + $0x322] sm:$0xff] %vm17, %v169
  %234 = vst.msk [vmem:[%s44 + $0x332] sm:$0xff] %vm17, %v170
  %235 = vst.msk [vmem:[%s44 + $0x33a] sm:$0xff] %vm17, %v171
  %236 = vst.msk [vmem:[%s44 + $0x34a] sm:$0xff] %vm17, %v172
  %237 = vst.msk [vmem:[%s44 + $0x352] sm:$0xff] %vm17, %v173
  %v238 = vld [vmem:[%s2] sm:$0x1]
  %v240 = vlaneseq
  %v241 = vshrl.u32 %v240, 7
  %v242 = vsub.s32 0, %v241
  %v243 = vrot.slane %v238, %v242
  %v245 = vld [vmem:[#allocation2] sm:$0xff]
  %v246 = vld [vmem:[#allocation2 + $0x8] sm:$0xff]
  %v247 = vld [vmem:[#allocation2 + $0x18] sm:$0xff]
  %v248 = vld [vmem:[#allocation2 + $0x20] sm:$0xff]
  %v249 = vld [vmem:[#allocation2 + $0x30] sm:$0xff]
  %v250 = vld [vmem:[#allocation2 + $0x38] sm:$0xff]
  %v251 = vld [vmem:[#allocation2 + $0x48] sm:$0xff]
  %v252 = vld [vmem:[#allocation2 + $0x50] sm:$0xff]
  %v253 = vld [vmem:[#allocation2 + $0x60] sm:$0xff]
  %v254 = vld [vmem:[#allocation2 + $0x68] sm:$0xff]
  %v255 = vld [vmem:[#allocation2 + $0x78] sm:$0xff]
  %v256 = vld [vmem:[#allocation2 + $0x80] sm:$0xff]
  %v257 = vld [vmem:[#allocation2 + $0x90] sm:$0xff]
  %v258 = vld [vmem:[#allocation2 + $0x98] sm:$0xff]
  %v259 = vld [vmem:[#allocation2 + $0xa8] sm:$0xff]
  %v260 = vld [vmem:[#allocation2 + $0xb0] sm:$0xff]
  %v261 = vld [vmem:[#allocation2 + $0xc0] sm:$0xff]
  %v262 = vld [vmem:[#allocation2 + $0xc8] sm:$0xff]
  %v263 = vld [vmem:[#allocation2 + $0xd8] sm:$0xff]
  %v264 = vld [vmem:[#allocation2 + $0xe0] sm:$0xff]
  %v265 = vld [vmem:[#allocation2 + $0xf0] sm:$0xff]
  %v266 = vld [vmem:[#allocation2 + $0xf8] sm:$0xff]
  %v267 = vld [vmem:[#allocation2 + $0x108] sm:$0xff]
  %v268 = vld [vmem:[#allocation2 + $0x110] sm:$0xff]
  %v269 = vld [vmem:[#allocation2 + $0x120] sm:$0xff]
  %v270 = vld [vmem:[#allocation2 + $0x128] sm:$0xff]
  %v271 = vld [vmem:[#allocation2 + $0x138] sm:$0xff]
  %v272 = vld [vmem:[#allocation2 + $0x140] sm:$0xff]
  %v273 = vld [vmem:[#allocation2 + $0x150] sm:$0xff]
  %v274 = vld [vmem:[#allocation2 + $0x158] sm:$0xff]
  %v275 = vld [vmem:[#allocation2 + $0x168] sm:$0xff]
  %v276 = vld [vmem:[#allocation2 + $0x170] sm:$0xff]
  %v277 = vld [vmem:[#allocation2 + $0x180] sm:$0xff]
  %v278 = vld [vmem:[#allocation2 + $0x188] sm:$0xff]
  %v279 = vld [vmem:[#allocation2 + $0x198] sm:$0xff]
  %v280 = vld [vmem:[#allocation2 + $0x1a0] sm:$0xff]
  %v281 = vld [vmem:[#allocation2 + $0x1b0] sm:$0xff]
  %v282 = vld [vmem:[#allocation2 + $0x1b8] sm:$0xff]
  %v283 = vld [vmem:[#allocation2 + $0x1c8] sm:$0xff]
  %v284 = vld [vmem:[#allocation2 + $0x1d0] sm:$0xff]
  %v285 = vld [vmem:[#allocation2 + $0x1e0] sm:$0xff]
  %v286 = vld [vmem:[#allocation2 + $0x1e8] sm:$0xff]
  %v287 = vld [vmem:[#allocation2 + $0x1f8] sm:$0xff]
  %v288 = vld [vmem:[#allocation2 + $0x200] sm:$0xff]
  %v289 = vld [vmem:[#allocation2 + $0x210] sm:$0xff]
  %v290 = vld [vmem:[#allocation2 + $0x218] sm:$0xff]
  %v291 = vld [vmem:[#allocation2 + $0x228] sm:$0xff]
  %v292 = vld [vmem:[#allocation2 + $0x230] sm:$0xff]
  %v293 = vld [vmem:[#allocation2 + $0x240] sm:$0xff]
  %v294 = vld [vmem:[#allocation2 + $0x248] sm:$0xff]
  %v295 = vld [vmem:[#allocation2 + $0x258] sm:$0xff]
  %v296 = vld [vmem:[#allocation2 + $0x260] sm:$0xff]
  %v297 = vld [vmem:[#allocation2 + $0x270] sm:$0xff]
  %v298 = vld [vmem:[#allocation2 + $0x278] sm:$0xff]
  %v299 = vld [vmem:[#allocation2 + $0x288] sm:$0xff]
  %v300 = vld [vmem:[#allocation2 + $0x290] sm:$0xff]
  %v301 = vld [vmem:[#allocation2 + $0x2a0] sm:$0xff]
  %v302 = vld [vmem:[#allocation2 + $0x2a8] sm:$0xff]
  %v303 = vld [vmem:[#allocation2 + $0x2b8] sm:$0xff]
  %v304 = vld [vmem:[#allocation2 + $0x2c0] sm:$0xff]
  %v305 = vld [vmem:[#allocation2 + $0x2d0] sm:$0xff]
  %v306 = vld [vmem:[#allocation2 + $0x2d8] sm:$0xff]
  %v307 = vld [vmem:[#allocation2 + $0x2e8] sm:$0xff]
  %v308 = vld [vmem:[#allocation2 + $0x2f0] sm:$0xff]
  %v309 = vld [vmem:[#allocation2 + $0x300] sm:$0xff]
  %v310 = vld [vmem:[#allocation2 + $0x308] sm:$0xff]
  %v311 = vld [vmem:[#allocation2 + $0x318] sm:$0xff]
  %v312 = vld [vmem:[#allocation2 + $0x320] sm:$0xff]
  %v313 = vld [vmem:[#allocation2 + $0x330] sm:$0xff]
  %v314 = vld [vmem:[#allocation2 + $0x338] sm:$0xff]
  %v315 = vld [vmem:[#allocation2 + $0x348] sm:$0xff]
  %v316 = vld [vmem:[#allocation2 + $0x350] sm:$0xff]
  %v317 = vld [vmem:[#allocation2 + $0x360] sm:$0xff]
  %v318 = vld [vmem:[#allocation2 + $0x368] sm:$0xff]
  %v319 = vld [vmem:[#allocation2 + $0x378] sm:$0xff]
  %v320 = vld [vmem:[#allocation2 + $0x380] sm:$0xff]
  %v321 = vld [vmem:[#allocation2 + $0x390] sm:$0xff]
  %v322 = vld [vmem:[#allocation2 + $0x398] sm:$0xff]
  %v323 = vld [vmem:[#allocation2 + $0x3a8] sm:$0xff]
  %v324 = vld [vmem:[#allocation2 + $0x3b0] sm:$0xff]
  %v325 = vld [vmem:[%s1] sm:$0x1]
  %v326 = vlaneseq
  %v327 = vshrl.u32 %v326, 7
  %v328 = vsub.s32 0, %v327
  %v329 = vrot.slane %v325, %v328
  %v330 = vmul.f32 %v245, %v329
  %v331 = vmul.f32 %v246, %v329
  %v332 = vmul.f32 %v247, %v329
  %v333 = vmul.f32 %v248, %v329
  %v334 = vmul.f32 %v249, %v329
  %v335 = vmul.f32 %v250, %v329
  %v336 = vmul.f32 %v251, %v329
  %v337 = vmul.f32 %v252, %v329
  %v338 = vmul.f32 %v253, %v329
  %v339 = vmul.f32 %v254, %v329
  %v340 = vmul.f32 %v255, %v329
  %v341 = vmul.f32 %v256, %v329
  %v342 = vmul.f32 %v257, %v329
  %v343 = vmul.f32 %v258, %v329
  %v344 = vmul.f32 %v259, %v329
  %v345 = vmul.f32 %v260, %v329
  %v346 = vmul.f32 %v261, %v329
  %v347 = vmul.f32 %v262, %v329
  %v348 = vmul.f32 %v263, %v329
  %v349 = vmul.f32 %v264, %v329
  %v350 = vmul.f32 %v265, %v329
  %v351 = vmul.f32 %v266, %v329
  %v352 = vmul.f32 %v267, %v329
  %v353 = vmul.f32 %v268, %v329
  %v354 = vmul.f32 %v269, %v329
  %v355 = vmul.f32 %v270, %v329
  %v356 = vmul.f32 %v271, %v329
  %v357 = vmul.f32 %v272, %v329
  %v358 = vmul.f32 %v273, %v329
  %v359 = vmul.f32 %v274, %v329
  %v360 = vmul.f32 %v275, %v329
  %v361 = vmul.f32 %v276, %v329
  %v362 = vmul.f32 %v285, %v329
  %v363 = vmul.f32 %v286, %v329
  %v364 = vmul.f32 %v287, %v329
  %v365 = vmul.f32 %v288, %v329
  %v366 = vmul.f32 %v289, %v329
  %v367 = vmul.f32 %v290, %v329
  %v368 = vmul.f32 %v291, %v329
  %v369 = vmul.f32 %v292, %v329
  %v370 = vmul.f32 %v293, %v329
  %v371 = vmul.f32 %v294, %v329
  %v372 = vmul.f32 %v295, %v329
  %v373 = vmul.f32 %v296, %v329
  %v374 = vmul.f32 %v297, %v329
  %v375 = vmul.f32 %v298, %v329
  %v376 = vmul.f32 %v299, %v329
  %v377 = vmul.f32 %v300, %v329
  %v378 = vmul.f32 %v301, %v329
  %v379 = vmul.f32 %v302, %v329
  %v380 = vmul.f32 %v303, %v329
  %v381 = vmul.f32 %v304, %v329
  %v382 = vmul.f32 %v305, %v329
  %v383 = vmul.f32 %v306, %v329
  %v384 = vmul.f32 %v307, %v329
  %v385 = vmul.f32 %v308, %v329
  %v386 = vmul.f32 %v309, %v329
  %v387 = vmul.f32 %v310, %v329
  %v388 = vmul.f32 %v311, %v329
  %v389 = vmul.f32 %v312, %v329
  %v390 = vmul.f32 %v313, %v329
  %v391 = vmul.f32 %v314, %v329
  %v392 = vmul.f32 %v315, %v329
  %v393 = vmul.f32 %v316, %v329
  %v394 = vadd.f32 %v243, %v330
  %v395 = vadd.f32 %v243, %v331
  %v396 = vadd.f32 %v243, %v332
  %v397 = vadd.f32 %v243, %v333
  %v398 = vadd.f32 %v243, %v334
  %v399 = vadd.f32 %v243, %v335
  %v400 = vadd.f32 %v243, %v336
  %v401 = vadd.f32 %v243, %v337
  %v402 = vadd.f32 %v243, %v338
  %v403 = vadd.f32 %v243, %v339
  %v404 = vadd.f32 %v243, %v340
  %v405 = vadd.f32 %v243, %v341
  %v406 = vadd.f32 %v243, %v342
  %v407 = vadd.f32 %v243, %v343
  %v408 = vadd.f32 %v243, %v344
  %v409 = vadd.f32 %v243, %v345
  %v410 = vadd.f32 %v243, %v346
  %v411 = vadd.f32 %v243, %v347
  %v412 = vadd.f32 %v243, %v348
  %v413 = vadd.f32 %v243, %v349
  %v414 = vadd.f32 %v243, %v350
  %v415 = vadd.f32 %v243, %v351
  %v416 = vadd.f32 %v243, %v352
  %v417 = vadd.f32 %v243, %v353
  %v418 = vadd.f32 %v243, %v354
  %v419 = vadd.f32 %v243, %v355
  %v420 = vadd.f32 %v243, %v356
  %v421 = vadd.f32 %v243, %v357
  %v422 = vadd.f32 %v243, %v358
  %v423 = vadd.f32 %v243, %v359
  %v424 = vadd.f32 %v243, %v360
  %v425 = vadd.f32 %v243, %v361
  %v426 = vadd.f32 %v243, %v362
  %v427 = vadd.f32 %v243, %v363
  %v428 = vadd.f32 %v243, %v364
  %v429 = vadd.f32 %v243, %v365
  %v430 = vadd.f32 %v243, %v366
  %v431 = vadd.f32 %v243, %v367
  %v432 = vadd.f32 %v243, %v368
  %v433 = vadd.f32 %v243, %v369
  %v434 = vadd.f32 %v243, %v370
  %v435 = vadd.f32 %v243, %v371
  %v436 = vadd.f32 %v243, %v372
  %v437 = vadd.f32 %v243, %v373
  %v438 = vadd.f32 %v243, %v374
  %v439 = vadd.f32 %v243, %v375
  %v440 = vadd.f32 %v243, %v376
  %v441 = vadd.f32 %v243, %v377
  %v442 = vadd.f32 %v243, %v378
  %v443 = vadd.f32 %v243, %v379
  %v444 = vadd.f32 %v243, %v380
  %v445 = vadd.f32 %v243, %v381
  %v446 = vadd.f32 %v243, %v382
  %v447 = vadd.f32 %v243, %v383
  %v448 = vadd.f32 %v243, %v384
  %v449 = vadd.f32 %v243, %v385
  %v450 = vadd.f32 %v243, %v386
  %v451 = vadd.f32 %v243, %v387
  %v452 = vadd.f32 %v243, %v388
  %v453 = vadd.f32 %v243, %v389
  %v454 = vadd.f32 %v243, %v390
  %v455 = vadd.f32 %v243, %v391
  %v456 = vadd.f32 %v243, %v392
  %v457 = vadd.f32 %v243, %v393
  %v458 = vld [vmem:[%s1 + $0x5] sm:$0x1]
  %v459 = vlaneseq
  %v460 = vshrl.u32 %v459, 7
  %v461 = vsub.s32 0, %v460
  %v462 = vrot.slane %v458, %v461
  %v463 = vmul.f32 %v247, %v462
  %v464 = vmul.f32 %v248, %v462
  %v465 = vmul.f32 %v249, %v462
  %v466 = vmul.f32 %v250, %v462
  %v467 = vmul.f32 %v251, %v462
  %v468 = vmul.f32 %v252, %v462
  %v469 = vmul.f32 %v253, %v462
  %v470 = vmul.f32 %v254, %v462
  %v471 = vmul.f32 %v255, %v462
  %v472 = vmul.f32 %v256, %v462
  %v473 = vmul.f32 %v257, %v462
  %v474 = vmul.f32 %v258, %v462
  %v475 = vmul.f32 %v259, %v462
  %v476 = vmul.f32 %v260, %v462
  %v477 = vmul.f32 %v261, %v462
  %v478 = vmul.f32 %v262, %v462
  %v479 = vmul.f32 %v263, %v462
  %v480 = vmul.f32 %v264, %v462
  %v481 = vmul.f32 %v265, %v462
  %v482 = vmul.f32 %v266, %v462
  %v483 = vmul.f32 %v267, %v462
  %v484 = vmul.f32 %v268, %v462
  %v485 = vmul.f32 %v269, %v462
  %v486 = vmul.f32 %v270, %v462
  %v487 = vmul.f32 %v271, %v462
  %v488 = vmul.f32 %v272, %v462
  %v489 = vmul.f32 %v273, %v462
  %v490 = vmul.f32 %v274, %v462
  %v491 = vmul.f32 %v275, %v462
  %v492 = vmul.f32 %v276, %v462
  %v493 = vmul.f32 %v277, %v462
  %v494 = vmul.f32 %v278, %v462
  %v495 = vmul.f32 %v287, %v462
  %v496 = vmul.f32 %v288, %v462
  %v497 = vmul.f32 %v289, %v462
  %v498 = vmul.f32 %v290, %v462
  %v499 = vmul.f32 %v291, %v462
  %v500 = vmul.f32 %v292, %v462
  %v501 = vmul.f32 %v293, %v462
  %v502 = vmul.f32 %v294, %v462
  %v503 = vmul.f32 %v295, %v462
  %v504 = vmul.f32 %v296, %v462
  %v505 = vmul.f32 %v297, %v462
  %v506 = vmul.f32 %v298, %v462
  %v507 = vmul.f32 %v299, %v462
  %v508 = vmul.f32 %v300, %v462
  %v509 = vmul.f32 %v301, %v462
  %v510 = vmul.f32 %v302, %v462
  %v511 = vmul.f32 %v303, %v462
  %v512 = vmul.f32 %v304, %v462
  %v513 = vmul.f32 %v305, %v462
  %v514 = vmul.f32 %v306, %v462
  %v515 = vmul.f32 %v307, %v462
  %v516 = vmul.f32 %v308, %v462
  %v517 = vmul.f32 %v309, %v462
  %v518 = vmul.f32 %v310, %v462
  %v519 = vmul.f32 %v311, %v462
  %v520 = vmul.f32 %v312, %v462
  %v521 = vmul.f32 %v313, %v462
  %v522 = vmul.f32 %v314, %v462
  %v523 = vmul.f32 %v315, %v462
  %v524 = vmul.f32 %v316, %v462
  %v525 = vmul.f32 %v317, %v462
  %v526 = vmul.f32 %v318, %v462
  %v527 = vadd.f32 %v394, %v463
  %v528 = vadd.f32 %v395, %v464
  %v529 = vadd.f32 %v396, %v465
  %v530 = vadd.f32 %v397, %v466
  %v531 = vadd.f32 %v398, %v467
  %v532 = vadd.f32 %v399, %v468
  %v533 = vadd.f32 %v400, %v469
  %v534 = vadd.f32 %v401, %v470
  %v535 = vadd.f32 %v402, %v471
  %v536 = vadd.f32 %v403, %v472
  %v537 = vadd.f32 %v404, %v473
  %v538 = vadd.f32 %v405, %v474
  %v539 = vadd.f32 %v406, %v475
  %v540 = vadd.f32 %v407, %v476
  %v541 = vadd.f32 %v408, %v477
  %v542 = vadd.f32 %v409, %v478
  %v543 = vadd.f32 %v410, %v479
  %v544 = vadd.f32 %v411, %v480
  %v545 = vadd.f32 %v412, %v481
  %v546 = vadd.f32 %v413, %v482
  %v547 = vadd.f32 %v414, %v483
  %v548 = vadd.f32 %v415, %v484
  %v549 = vadd.f32 %v416, %v485
  %v550 = vadd.f32 %v417, %v486
  %v551 = vadd.f32 %v418, %v487
  %v552 = vadd.f32 %v419, %v488
  %v553 = vadd.f32 %v420, %v489
  %v554 = vadd.f32 %v421, %v490
  %v555 = vadd.f32 %v422, %v491
  %v556 = vadd.f32 %v423, %v492
  %v557 = vadd.f32 %v424, %v493
  %v558 = vadd.f32 %v425, %v494
  %v559 = vadd.f32 %v426, %v495
  %v560 = vadd.f32 %v427, %v496
  %v561 = vadd.f32 %v428, %v497
  %v562 = vadd.f32 %v429, %v498
  %v563 = vadd.f32 %v430, %v499
  %v564 = vadd.f32 %v431, %v500
  %v565 = vadd.f32 %v432, %v501
  %v566 = vadd.f32 %v433, %v502
  %v567 = vadd.f32 %v434, %v503
  %v568 = vadd.f32 %v435, %v504
  %v569 = vadd.f32 %v436, %v505
  %v570 = vadd.f32 %v437, %v506
  %v571 = vadd.f32 %v438, %v507
  %v572 = vadd.f32 %v439, %v508
  %v573 = vadd.f32 %v440, %v509
  %v574 = vadd.f32 %v441, %v510
  %v575 = vadd.f32 %v442, %v511
  %v576 = vadd.f32 %v443, %v512
  %v577 = vadd.f32 %v444, %v513
  %v578 = vadd.f32 %v445, %v514
  %v579 = vadd.f32 %v446, %v515
  %v580 = vadd.f32 %v447, %v516
  %v581 = vadd.f32 %v448, %v517
  %v582 = vadd.f32 %v449, %v518
  %v583 = vadd.f32 %v450, %v519
  %v584 = vadd.f32 %v451, %v520
  %v585 = vadd.f32 %v452, %v521
  %v586 = vadd.f32 %v453, %v522
  %v587 = vadd.f32 %v454, %v523
  %v588 = vadd.f32 %v455, %v524
  %v589 = vadd.f32 %v456, %v525
  %v590 = vadd.f32 %v457, %v526
  %v591 = vld [vmem:[%s1 + $0xa] sm:$0x1]
  %v592 = vlaneseq
  %v593 = vshrl.u32 %v592, 7
  %v594 = vsub.s32 0, %v593
  %v595 = vrot.slane %v591, %v594
  %v596 = vmul.f32 %v249, %v595
  %v597 = vmul.f32 %v250, %v595
  %v598 = vmul.f32 %v251, %v595
  %v599 = vmul.f32 %v252, %v595
  %v600 = vmul.f32 %v253, %v595
  %v601 = vmul.f32 %v254, %v595
  %v602 = vmul.f32 %v255, %v595
  %v603 = vmul.f32 %v256, %v595
  %v604 = vmul.f32 %v257, %v595
  %v605 = vmul.f32 %v258, %v595
  %v606 = vmul.f32 %v259, %v595
  %v607 = vmul.f32 %v260, %v595
  %v608 = vmul.f32 %v261, %v595
  %v609 = vmul.f32 %v262, %v595
  %v610 = vmul.f32 %v263, %v595
  %v611 = vmul.f32 %v264, %v595
  %v612 = vmul.f32 %v265, %v595
  %v613 = vmul.f32 %v266, %v595
  %v614 = vmul.f32 %v267, %v595
  %v615 = vmul.f32 %v268, %v595
  %v616 = vmul.f32 %v269, %v595
  %v617 = vmul.f32 %v270, %v595
  %v618 = vmul.f32 %v271, %v595
  %v619 = vmul.f32 %v272, %v595
  %v620 = vmul.f32 %v273, %v595
  %v621 = vmul.f32 %v274, %v595
  %v622 = vmul.f32 %v275, %v595
  %v623 = vmul.f32 %v276, %v595
  %v624 = vmul.f32 %v277, %v595
  %v625 = vmul.f32 %v278, %v595
  %v626 = vmul.f32 %v279, %v595
  %v627 = vmul.f32 %v280, %v595
  %v628 = vmul.f32 %v289, %v595
  %v629 = vmul.f32 %v290, %v595
  %v630 = vmul.f32 %v291, %v595
  %v631 = vmul.f32 %v292, %v595
  %v632 = vmul.f32 %v293, %v595
  %v633 = vmul.f32 %v294, %v595
  %v634 = vmul.f32 %v295, %v595
  %v635 = vmul.f32 %v296, %v595
  %v636 = vmul.f32 %v297, %v595
  %v637 = vmul.f32 %v298, %v595
  %v638 = vmul.f32 %v299, %v595
  %v639 = vmul.f32 %v300, %v595
  %v640 = vmul.f32 %v301, %v595
  %v641 = vmul.f32 %v302, %v595
  %v642 = vmul.f32 %v303, %v595
  %v643 = vmul.f32 %v304, %v595
  %v644 = vmul.f32 %v305, %v595
  %v645 = vmul.f32 %v306, %v595
  %v646 = vmul.f32 %v307, %v595
  %v647 = vmul.f32 %v308, %v595
  %v648 = vmul.f32 %v309, %v595
  %v649 = vmul.f32 %v310, %v595
  %v650 = vmul.f32 %v311, %v595
  %v651 = vmul.f32 %v312, %v595
  %v652 = vmul.f32 %v313, %v595
  %v653 = vmul.f32 %v314, %v595
  %v654 = vmul.f32 %v315, %v595
  %v655 = vmul.f32 %v316, %v595
  %v656 = vmul.f32 %v317, %v595
  %v657 = vmul.f32 %v318, %v595
  %v658 = vmul.f32 %v319, %v595
  %v659 = vmul.f32 %v320, %v595
  %v660 = vadd.f32 %v527, %v596
  %v661 = vadd.f32 %v528, %v597
  %v662 = vadd.f32 %v529, %v598
  %v663 = vadd.f32 %v530, %v599
  %v664 = vadd.f32 %v531, %v600
  %v665 = vadd.f32 %v532, %v601
  %v666 = vadd.f32 %v533, %v602
  %v667 = vadd.f32 %v534, %v603
  %v668 = vadd.f32 %v535, %v604
  %v669 = vadd.f32 %v536, %v605
  %v670 = vadd.f32 %v537, %v606
  %v671 = vadd.f32 %v538, %v607
  %v672 = vadd.f32 %v539, %v608
  %v673 = vadd.f32 %v540, %v609
  %v674 = vadd.f32 %v541, %v610
  %v675 = vadd.f32 %v542, %v611
  %v676 = vadd.f32 %v543, %v612
  %v677 = vadd.f32 %v544, %v613
  %v678 = vadd.f32 %v545, %v614
  %v679 = vadd.f32 %v546, %v615
  %v680 = vadd.f32 %v547, %v616
  %v681 = vadd.f32 %v548, %v617
  %v682 = vadd.f32 %v549, %v618
  %v683 = vadd.f32 %v550, %v619
  %v684 = vadd.f32 %v551, %v620
  %v685 = vadd.f32 %v552, %v621
  %v686 = vadd.f32 %v553, %v622
  %v687 = vadd.f32 %v554, %v623
  %v688 = vadd.f32 %v555, %v624
  %v689 = vadd.f32 %v556, %v625
  %v690 = vadd.f32 %v557, %v626
  %v691 = vadd.f32 %v558, %v627
  %v692 = vadd.f32 %v559, %v628
  %v693 = vadd.f32 %v560, %v629
  %v694 = vadd.f32 %v561, %v630
  %v695 = vadd.f32 %v562, %v631
  %v696 = vadd.f32 %v563, %v632
  %v697 = vadd.f32 %v564, %v633
  %v698 = vadd.f32 %v565, %v634
  %v699 = vadd.f32 %v566, %v635
  %v700 = vadd.f32 %v567, %v636
  %v701 = vadd.f32 %v568, %v637
  %v702 = vadd.f32 %v569, %v638
  %v703 = vadd.f32 %v570, %v639
  %v704 = vadd.f32 %v571, %v640
  %v705 = vadd.f32 %v572, %v641
  %v706 = vadd.f32 %v573, %v642
  %v707 = vadd.f32 %v574, %v643
  %v708 = vadd.f32 %v575, %v644
  %v709 = vadd.f32 %v576, %v645
  %v710 = vadd.f32 %v577, %v646
  %v711 = vadd.f32 %v578, %v647
  %v712 = vadd.f32 %v579, %v648
  %v713 = vadd.f32 %v580, %v649
  %v714 = vadd.f32 %v581, %v650
  %v715 = vadd.f32 %v582, %v651
  %v716 = vadd.f32 %v583, %v652
  %v717 = vadd.f32 %v584, %v653
  %v718 = vadd.f32 %v585, %v654
  %v719 = vadd.f32 %v586, %v655
  %v720 = vadd.f32 %v587, %v656
  %v721 = vadd.f32 %v588, %v657
  %v722 = vadd.f32 %v589, %v658
  %v723 = vadd.f32 %v590, %v659
  %v724 = vld [vmem:[%s1 + $0xf] sm:$0x1]
  %v725 = vlaneseq
  %v726 = vshrl.u32 %v725, 7
  %v727 = vsub.s32 0, %v726
  %v728 = vrot.slane %v724, %v727
  %v729 = vmul.f32 %v251, %v728
  %v730 = vmul.f32 %v252, %v728
  %v731 = vmul.f32 %v253, %v728
  %v732 = vmul.f32 %v254, %v728
  %v733 = vmul.f32 %v255, %v728
  %v734 = vmul.f32 %v256, %v728
  %v735 = vmul.f32 %v257, %v728
  %v736 = vmul.f32 %v258, %v728
  %v737 = vmul.f32 %v259, %v728
  %v738 = vmul.f32 %v260, %v728
  %v739 = vmul.f32 %v261, %v728
  %v740 = vmul.f32 %v262, %v728
  %v741 = vmul.f32 %v263, %v728
  %v742 = vmul.f32 %v264, %v728
  %v743 = vmul.f32 %v265, %v728
  %v744 = vmul.f32 %v266, %v728
  %v745 = vmul.f32 %v267, %v728
  %v746 = vmul.f32 %v268, %v728
  %v747 = vmul.f32 %v269, %v728
  %v748 = vmul.f32 %v270, %v728
  %v749 = vmul.f32 %v271, %v728
  %v750 = vmul.f32 %v272, %v728
  %v751 = vmul.f32 %v273, %v728
  %v752 = vmul.f32 %v274, %v728
  %v753 = vmul.f32 %v275, %v728
  %v754 = vmul.f32 %v276, %v728
  %v755 = vmul.f32 %v277, %v728
  %v756 = vmul.f32 %v278, %v728
  %v757 = vmul.f32 %v279, %v728
  %v758 = vmul.f32 %v280, %v728
  %v759 = vmul.f32 %v281, %v728
  %v760 = vmul.f32 %v282, %v728
  %v761 = vmul.f32 %v291, %v728
  %v762 = vmul.f32 %v292, %v728
  %v763 = vmul.f32 %v293, %v728
  %v764 = vmul.f32 %v294, %v728
  %v765 = vmul.f32 %v295, %v728
  %v766 = vmul.f32 %v296, %v728
  %v767 = vmul.f32 %v297, %v728
  %v768 = vmul.f32 %v298, %v728
  %v769 = vmul.f32 %v299, %v728
  %v770 = vmul.f32 %v300, %v728
  %v771 = vmul.f32 %v301, %v728
  %v772 = vmul.f32 %v302, %v728
  %v773 = vmul.f32 %v303, %v728
  %v774 = vmul.f32 %v304, %v728
  %v775 = vmul.f32 %v305, %v728
  %v776 = vmul.f32 %v306, %v728
  %v777 = vmul.f32 %v307, %v728
  %v778 = vmul.f32 %v308, %v728
  %v779 = vmul.f32 %v309, %v728
  %v780 = vmul.f32 %v310, %v728
  %v781 = vmul.f32 %v311, %v728
  %v782 = vmul.f32 %v312, %v728
  %v783 = vmul.f32 %v313, %v728
  %v784 = vmul.f32 %v314, %v728
  %v785 = vmul.f32 %v315, %v728
  %v786 = vmul.f32 %v316, %v728
  %v787 = vmul.f32 %v317, %v728
  %v788 = vmul.f32 %v318, %v728
  %v789 = vmul.f32 %v319, %v728
  %v790 = vmul.f32 %v320, %v728
  %v791 = vmul.f32 %v321, %v728
  %v792 = vmul.f32 %v322, %v728
  %v793 = vadd.f32 %v660, %v729
  %v794 = vadd.f32 %v661, %v730
  %v795 = vadd.f32 %v662, %v731
  %v796 = vadd.f32 %v663, %v732
  %v797 = vadd.f32 %v664, %v733
  %v798 = vadd.f32 %v665, %v734
  %v799 = vadd.f32 %v666, %v735
  %v800 = vadd.f32 %v667, %v736
  %v801 = vadd.f32 %v668, %v737
  %v802 = vadd.f32 %v669, %v738
  %v803 = vadd.f32 %v670, %v739
  %v804 = vadd.f32 %v671, %v740
  %v805 = vadd.f32 %v672, %v741
  %v806 = vadd.f32 %v673, %v742
  %v807 = vadd.f32 %v674, %v743
  %v808 = vadd.f32 %v675, %v744
  %v809 = vadd.f32 %v676, %v745
  %v810 = vadd.f32 %v677, %v746
  %v811 = vadd.f32 %v678, %v747
  %v812 = vadd.f32 %v679, %v748
  %v813 = vadd.f32 %v680, %v749
  %v814 = vadd.f32 %v681, %v750
  %v815 = vadd.f32 %v682, %v751
  %v816 = vadd.f32 %v683, %v752
  %v817 = vadd.f32 %v684, %v753
  %v818 = vadd.f32 %v685, %v754
  %v819 = vadd.f32 %v686, %v755
  %v820 = vadd.f32 %v687, %v756
  %v821 = vadd.f32 %v688, %v757
  %v822 = vadd.f32 %v689, %v758
  %v823 = vadd.f32 %v690, %v759
  %v824 = vadd.f32 %v691, %v760
  %v825 = vadd.f32 %v692, %v761
  %v826 = vadd.f32 %v693, %v762
  %v827 = vadd.f32 %v694, %v763
  %v828 = vadd.f32 %v695, %v764
  %v829 = vadd.f32 %v696, %v765
  %v830 = vadd.f32 %v697, %v766
  %v831 = vadd.f32 %v698, %v767
  %v832 = vadd.f32 %v699, %v768
  %v833 = vadd.f32 %v700, %v769
  %v834 = vadd.f32 %v701, %v770
  %v835 = vadd.f32 %v702, %v771
  %v836 = vadd.f32 %v703, %v772
  %v837 = vadd.f32 %v704, %v773
  %v838 = vadd.f32 %v705, %v774
  %v839 = vadd.f32 %v706, %v775
  %v840 = vadd.f32 %v707, %v776
  %v841 = vadd.f32 %v708, %v777
  %v842 = vadd.f32 %v709, %v778
  %v843 = vadd.f32 %v710, %v779
  %v844 = vadd.f32 %v711, %v780
  %v845 = vadd.f32 %v712, %v781
  %v846 = vadd.f32 %v713, %v782
  %v847 = vadd.f32 %v714, %v783
  %v848 = vadd.f32 %v715, %v784
  %v849 = vadd.f32 %v716, %v785
  %v850 = vadd.f32 %v717, %v786
  %v851 = vadd.f32 %v718, %v787
  %v852 = vadd.f32 %v719, %v788
  %v853 = vadd.f32 %v720, %v789
  %v854 = vadd.f32 %v721, %v790
  %v855 = vadd.f32 %v722, %v791
  %v856 = vadd.f32 %v723, %v792
  %v857 = vld [vmem:[%s1 + $0x14] sm:$0x1]
  %v858 = vlaneseq
  %v859 = vshrl.u32 %v858, 7
  %v860 = vsub.s32 0, %v859
  %v861 = vrot.slane %v857, %v860
  %v862 = vmul.f32 %v253, %v861
  %v863 = vmul.f32 %v254, %v861
  %v864 = vmul.f32 %v255, %v861
  %v865 = vmul.f32 %v256, %v861
  %v866 = vmul.f32 %v257, %v861
  %v867 = vmul.f32 %v258, %v861
  %v868 = vmul.f32 %v259, %v861
  %v869 = vmul.f32 %v260, %v861
  %v870 = vmul.f32 %v261, %v861
  %v871 = vmul.f32 %v262, %v861
  %v872 = vmul.f32 %v263, %v861
  %v873 = vmul.f32 %v264, %v861
  %v874 = vmul.f32 %v265, %v861
  %v875 = vmul.f32 %v266, %v861
  %v876 = vmul.f32 %v267, %v861
  %v877 = vmul.f32 %v268, %v861
  %v878 = vmul.f32 %v269, %v861
  %v879 = vmul.f32 %v270, %v861
  %v880 = vmul.f32 %v271, %v861
  %v881 = vmul.f32 %v272, %v861
  %v882 = vmul.f32 %v273, %v861
  %v883 = vmul.f32 %v274, %v861
  %v884 = vmul.f32 %v275, %v861
  %v885 = vmul.f32 %v276, %v861
  %v886 = vmul.f32 %v277, %v861
  %v887 = vmul.f32 %v278, %v861
  %v888 = vmul.f32 %v279, %v861
  %v889 = vmul.f32 %v280, %v861
  %v890 = vmul.f32 %v281, %v861
  %v891 = vmul.f32 %v282, %v861
  %v892 = vmul.f32 %v283, %v861
  %v893 = vmul.f32 %v284, %v861
  %v894 = vmul.f32 %v293, %v861
  %v895 = vmul.f32 %v294, %v861
  %v896 = vmul.f32 %v295, %v861
  %v897 = vmul.f32 %v296, %v861
  %v898 = vmul.f32 %v297, %v861
  %v899 = vmul.f32 %v298, %v861
  %v900 = vmul.f32 %v299, %v861
  %v901 = vmul.f32 %v300, %v861
  %v902 = vmul.f32 %v301, %v861
  %v903 = vmul.f32 %v302, %v861
  %v904 = vmul.f32 %v303, %v861
  %v905 = vmul.f32 %v304, %v861
  %v906 = vmul.f32 %v305, %v861
  %v907 = vmul.f32 %v306, %v861
  %v908 = vmul.f32 %v307, %v861
  %v909 = vmul.f32 %v308, %v861
  %v910 = vmul.f32 %v309, %v861
  %v911 = vmul.f32 %v310, %v861
  %v912 = vmul.f32 %v311, %v861
  %v913 = vmul.f32 %v312, %v861
  %v914 = vmul.f32 %v313, %v861
  %v915 = vmul.f32 %v314, %v861
  %v916 = vmul.f32 %v315, %v861
  %v917 = vmul.f32 %v316, %v861
  %v918 = vmul.f32 %v317, %v861
  %v919 = vmul.f32 %v318, %v861
  %v920 = vmul.f32 %v319, %v861
  %v921 = vmul.f32 %v320, %v861
  %v922 = vmul.f32 %v321, %v861
  %v923 = vmul.f32 %v322, %v861
  %v924 = vmul.f32 %v323, %v861
  %v925 = vmul.f32 %v324, %v861
  %v926 = vadd.f32 %v793, %v862
  %v927 = vadd.f32 %v794, %v863
  %v928 = vadd.f32 %v795, %v864
  %v929 = vadd.f32 %v796, %v865
  %v930 = vadd.f32 %v797, %v866
  %v931 = vadd.f32 %v798, %v867
  %v932 = vadd.f32 %v799, %v868
  %v933 = vadd.f32 %v800, %v869
  %v934 = vadd.f32 %v801, %v870
  %v935 = vadd.f32 %v802, %v871
  %v936 = vadd.f32 %v803, %v872
  %v937 = vadd.f32 %v804, %v873
  %v938 = vadd.f32 %v805, %v874
  %v939 = vadd.f32 %v806, %v875
  %v940 = vadd.f32 %v807, %v876
  %v941 = vadd.f32 %v808, %v877
  %v942 = vadd.f32 %v809, %v878
  %v943 = vadd.f32 %v810, %v879
  %v944 = vadd.f32 %v811, %v880
  %v945 = vadd.f32 %v812, %v881
  %v946 = vadd.f32 %v813, %v882
  %v947 = vadd.f32 %v814, %v883
  %v948 = vadd.f32 %v815, %v884
  %v949 = vadd.f32 %v816, %v885
  %v950 = vadd.f32 %v817, %v886
  %v951 = vadd.f32 %v818, %v887
  %v952 = vadd.f32 %v819, %v888
  %v953 = vadd.f32 %v820, %v889
  %v954 = vadd.f32 %v821, %v890
  %v955 = vadd.f32 %v822, %v891
  %v956 = vadd.f32 %v823, %v892
  %v957 = vadd.f32 %v824, %v893
  %v958 = vadd.f32 %v825, %v894
  %v959 = vadd.f32 %v826, %v895
  %v960 = vadd.f32 %v827, %v896
  %v961 = vadd.f32 %v828, %v897
  %v962 = vadd.f32 %v829, %v898
  %v963 = vadd.f32 %v830, %v899
  %v964 = vadd.f32 %v831, %v900
  %v965 = vadd.f32 %v832, %v901
  %v966 = vadd.f32 %v833, %v902
  %v967 = vadd.f32 %v834, %v903
  %v968 = vadd.f32 %v835, %v904
  %v969 = vadd.f32 %v836, %v905
  %v970 = vadd.f32 %v837, %v906
  %v971 = vadd.f32 %v838, %v907
  %v972 = vadd.f32 %v839, %v908
  %v973 = vadd.f32 %v840, %v909
  %v974 = vadd.f32 %v841, %v910
  %v975 = vadd.f32 %v842, %v911
  %v976 = vadd.f32 %v843, %v912
  %v977 = vadd.f32 %v844, %v913
  %v978 = vadd.f32 %v845, %v914
  %v979 = vadd.f32 %v846, %v915
  %v980 = vadd.f32 %v847, %v916
  %v981 = vadd.f32 %v848, %v917
  %v982 = vadd.f32 %v849, %v918
  %v983 = vadd.f32 %v850, %v919
  %v984 = vadd.f32 %v851, %v920
  %v985 = vadd.f32 %v852, %v921
  %v986 = vadd.f32 %v853, %v922
  %v987 = vadd.f32 %v854, %v923
  %v988 = vadd.f32 %v855, %v924
  %v989 = vadd.f32 %v856, %v925
  %v990 = vld [vmem:[#allocation2 + $0x1] sm:$0xff]
  %v991 = vld [vmem:[#allocation2 + $0x9] sm:$0xff]
  %v992 = vld [vmem:[#allocation2 + $0x19] sm:$0xff]
  %v993 = vld [vmem:[#allocation2 + $0x21] sm:$0xff]
  %v994 = vld [vmem:[#allocation2 + $0x31] sm:$0xff]
  %v995 = vld [vmem:[#allocation2 + $0x39] sm:$0xff]
  %v996 = vld [vmem:[#allocation2 + $0x49] sm:$0xff]
  %v997 = vld [vmem:[#allocation2 + $0x51] sm:$0xff]
  %v998 = vld [vmem:[#allocation2 + $0x61] sm:$0xff]
  %v999 = vld [vmem:[#allocation2 + $0x69] sm:$0xff]
  %v1000 = vld [vmem:[#allocation2 + $0x79] sm:$0xff]
  %v1001 = vld [vmem:[#allocation2 + $0x81] sm:$0xff]
  %v1002 = vld [vmem:[#allocation2 + $0x91] sm:$0xff]
  %v1003 = vld [vmem:[#allocation2 + $0x99] sm:$0xff]
  %v1004 = vld [vmem:[#allocation2 + $0xa9] sm:$0xff]
  %v1005 = vld [vmem:[#allocation2 + $0xb1] sm:$0xff]
  %v1006 = vld [vmem:[#allocation2 + $0xc1] sm:$0xff]
  %v1007 = vld [vmem:[#allocation2 + $0xc9] sm:$0xff]
  %v1008 = vld [vmem:[#allocation2 + $0xd9] sm:$0xff]
  %v1009 = vld [vmem:[#allocation2 + $0xe1] sm:$0xff]
  %v1010 = vld [vmem:[#allocation2 + $0xf1] sm:$0xff]
  %v1011 = vld [vmem:[#allocation2 + $0xf9] sm:$0xff]
  %v1012 = vld [vmem:[#allocation2 + $0x109] sm:$0xff]
  %v1013 = vld [vmem:[#allocation2 + $0x111] sm:$0xff]
  %v1014 = vld [vmem:[#allocation2 + $0x121] sm:$0xff]
  %v1015 = vld [vmem:[#allocation2 + $0x129] sm:$0xff]
  %v1016 = vld [vmem:[#allocation2 + $0x139] sm:$0xff]
  %v1017 = vld [vmem:[#allocation2 + $0x141] sm:$0xff]
  %v1018 = vld [vmem:[#allocation2 + $0x151] sm:$0xff]
  %v1019 = vld [vmem:[#allocation2 + $0x159] sm:$0xff]
  %v1020 = vld [vmem:[#allocation2 + $0x169] sm:$0xff]
  %v1021 = vld [vmem:[#allocation2 + $0x171] sm:$0xff]
  %v1022 = vld [vmem:[#allocation2 + $0x181] sm:$0xff]
  %v1023 = vld [vmem:[#allocation2 + $0x189] sm:$0xff]
  %v1024 = vld [vmem:[#allocation2 + $0x199] sm:$0xff]
  %v1025 = vld [vmem:[#allocation2 + $0x1a1] sm:$0xff]
  %v1026 = vld [vmem:[#allocation2 + $0x1b1] sm:$0xff]
  %v1027 = vld [vmem:[#allocation2 + $0x1b9] sm:$0xff]
  %v1028 = vld [vmem:[#allocation2 + $0x1c9] sm:$0xff]
  %v1029 = vld [vmem:[#allocation2 + $0x1d1] sm:$0xff]
  %v1030 = vld [vmem:[#allocation2 + $0x1e1] sm:$0xff]
  %v1031 = vld [vmem:[#allocation2 + $0x1e9] sm:$0xff]
  %v1032 = vld [vmem:[#allocation2 + $0x1f9] sm:$0xff]
  %v1033 = vld [vmem:[#allocation2 + $0x201] sm:$0xff]
  %v1034 = vld [vmem:[#allocation2 + $0x211] sm:$0xff]
  %v1035 = vld [vmem:[#allocation2 + $0x219] sm:$0xff]
  %v1036 = vld [vmem:[#allocation2 + $0x229] sm:$0xff]
  %v1037 = vld [vmem:[#allocation2 + $0x231] sm:$0xff]
  %v1038 = vld [vmem:[#allocation2 + $0x241] sm:$0xff]
  %v1039 = vld [vmem:[#allocation2 + $0x249] sm:$0xff]
  %v1040 = vld [vmem:[#allocation2 + $0x259] sm:$0xff]
  %v1041 = vld [vmem:[#allocation2 + $0x261] sm:$0xff]
  %v1042 = vld [vmem:[#allocation2 + $0x271] sm:$0xff]
  %v1043 = vld [vmem:[#allocation2 + $0x279] sm:$0xff]
  %v1044 = vld [vmem:[#allocation2 + $0x289] sm:$0xff]
  %v1045 = vld [vmem:[#allocation2 + $0x291] sm:$0xff]
  %v1046 = vld [vmem:[#allocation2 + $0x2a1] sm:$0xff]
  %v1047 = vld [vmem:[#allocation2 + $0x2a9] sm:$0xff]
  %v1048 = vld [vmem:[#allocation2 + $0x2b9] sm:$0xff]
  %v1049 = vld [vmem:[#allocation2 + $0x2c1] sm:$0xff]
  %v1050 = vld [vmem:[#allocation2 + $0x2d1] sm:$0xff]
  %v1051 = vld [vmem:[#allocation2 + $0x2d9] sm:$0xff]
  %v1052 = vld [vmem:[#allocation2 + $0x2e9] sm:$0xff]
  %v1053 = vld [vmem:[#allocation2 + $0x2f1] sm:$0xff]
  %v1054 = vld [vmem:[#allocation2 + $0x301] sm:$0xff]
  %v1055 = vld [vmem:[#allocation2 + $0x309] sm:$0xff]
  %v1056 = vld [vmem:[#allocation2 + $0x319] sm:$0xff]
  %v1057 = vld [vmem:[#allocation2 + $0x321] sm:$0xff]
  %v1058 = vld [vmem:[#allocation2 + $0x331] sm:$0xff]
  %v1059 = vld [vmem:[#allocation2 + $0x339] sm:$0xff]
  %v1060 = vld [vmem:[#allocation2 + $0x349] sm:$0xff]
  %v1061 = vld [vmem:[#allocation2 + $0x351] sm:$0xff]
  %v1062 = vld [vmem:[#allocation2 + $0x361] sm:$0xff]
  %v1063 = vld [vmem:[#allocation2 + $0x369] sm:$0xff]
  %v1064 = vld [vmem:[#allocation2 + $0x379] sm:$0xff]
  %v1065 = vld [vmem:[#allocation2 + $0x381] sm:$0xff]
  %v1066 = vld [vmem:[#allocation2 + $0x391] sm:$0xff]
  %v1067 = vld [vmem:[#allocation2 + $0x399] sm:$0xff]
  %v1068 = vld [vmem:[#allocation2 + $0x3a9] sm:$0xff]
  %v1069 = vld [vmem:[#allocation2 + $0x3b1] sm:$0xff]
  %v1070 = vld [vmem:[%s1 + $0x1] sm:$0x1]
  %v1071 = vlaneseq
  %v1072 = vshrl.u32 %v1071, 7
  %v1073 = vsub.s32 0, %v1072
  %v1074 = vrot.slane %v1070, %v1073
  %v1075 = vmul.f32 %v990, %v1074
  %v1076 = vmul.f32 %v991, %v1074
  %v1077 = vmul.f32 %v992, %v1074
  %v1078 = vmul.f32 %v993, %v1074
  %v1079 = vmul.f32 %v994, %v1074
  %v1080 = vmul.f32 %v995, %v1074
  %v1081 = vmul.f32 %v996, %v1074
  %v1082 = vmul.f32 %v997, %v1074
  %v1083 = vmul.f32 %v998, %v1074
  %v1084 = vmul.f32 %v999, %v1074
  %v1085 = vmul.f32 %v1000, %v1074
  %v1086 = vmul.f32 %v1001, %v1074
  %v1087 = vmul.f32 %v1002, %v1074
  %v1088 = vmul.f32 %v1003, %v1074
  %v1089 = vmul.f32 %v1004, %v1074
  %v1090 = vmul.f32 %v1005, %v1074
  %v1091 = vmul.f32 %v1006, %v1074
  %v1092 = vmul.f32 %v1007, %v1074
  %v1093 = vmul.f32 %v1008, %v1074
  %v1094 = vmul.f32 %v1009, %v1074
  %v1095 = vmul.f32 %v1010, %v1074
  %v1096 = vmul.f32 %v1011, %v1074
  %v1097 = vmul.f32 %v1012, %v1074
  %v1098 = vmul.f32 %v1013, %v1074
  %v1099 = vmul.f32 %v1014, %v1074
  %v1100 = vmul.f32 %v1015, %v1074
  %v1101 = vmul.f32 %v1016, %v1074
  %v1102 = vmul.f32 %v1017, %v1074
  %v1103 = vmul.f32 %v1018, %v1074
  %v1104 = vmul.f32 %v1019, %v1074
  %v1105 = vmul.f32 %v1020, %v1074
  %v1106 = vmul.f32 %v1021, %v1074
  %v1107 = vmul.f32 %v1030, %v1074
  %v1108 = vmul.f32 %v1031, %v1074
  %v1109 = vmul.f32 %v1032, %v1074
  %v1110 = vmul.f32 %v1033, %v1074
  %v1111 = vmul.f32 %v1034, %v1074
  %v1112 = vmul.f32 %v1035, %v1074
  %v1113 = vmul.f32 %v1036, %v1074
  %v1114 = vmul.f32 %v1037, %v1074
  %v1115 = vmul.f32 %v1038, %v1074
  %v1116 = vmul.f32 %v1039, %v1074
  %v1117 = vmul.f32 %v1040, %v1074
  %v1118 = vmul.f32 %v1041, %v1074
  %v1119 = vmul.f32 %v1042, %v1074
  %v1120 = vmul.f32 %v1043, %v1074
  %v1121 = vmul.f32 %v1044, %v1074
  %v1122 = vmul.f32 %v1045, %v1074
  %v1123 = vmul.f32 %v1046, %v1074
  %v1124 = vmul.f32 %v1047, %v1074
  %v1125 = vmul.f32 %v1048, %v1074
  %v1126 = vmul.f32 %v1049, %v1074
  %v1127 = vmul.f32 %v1050, %v1074
  %v1128 = vmul.f32 %v1051, %v1074
  %v1129 = vmul.f32 %v1052, %v1074
  %v1130 = vmul.f32 %v1053, %v1074
  %v1131 = vmul.f32 %v1054, %v1074
  %v1132 = vmul.f32 %v1055, %v1074
  %v1133 = vmul.f32 %v1056, %v1074
  %v1134 = vmul.f32 %v1057, %v1074
  %v1135 = vmul.f32 %v1058, %v1074
  %v1136 = vmul.f32 %v1059, %v1074
  %v1137 = vmul.f32 %v1060, %v1074
  %v1138 = vmul.f32 %v1061, %v1074
  %v1139 = vadd.f32 %v926, %v1075
  %v1140 = vadd.f32 %v927, %v1076
  %v1141 = vadd.f32 %v928, %v1077
  %v1142 = vadd.f32 %v929, %v1078
  %v1143 = vadd.f32 %v930, %v1079
  %v1144 = vadd.f32 %v931, %v1080
  %v1145 = vadd.f32 %v932, %v1081
  %v1146 = vadd.f32 %v933, %v1082
  %v1147 = vadd.f32 %v934, %v1083
  %v1148 = vadd.f32 %v935, %v1084
  %v1149 = vadd.f32 %v936, %v1085
  %v1150 = vadd.f32 %v937, %v1086
  %v1151 = vadd.f32 %v938, %v1087
  %v1152 = vadd.f32 %v939, %v1088
  %v1153 = vadd.f32 %v940, %v1089
  %v1154 = vadd.f32 %v941, %v1090
  %v1155 = vadd.f32 %v942, %v1091
  %v1156 = vadd.f32 %v943, %v1092
  %v1157 = vadd.f32 %v944, %v1093
  %v1158 = vadd.f32 %v945, %v1094
  %v1159 = vadd.f32 %v946, %v1095
  %v1160 = vadd.f32 %v947, %v1096
  %v1161 = vadd.f32 %v948, %v1097
  %v1162 = vadd.f32 %v949, %v1098
  %v1163 = vadd.f32 %v950, %v1099
  %v1164 = vadd.f32 %v951, %v1100
  %v1165 = vadd.f32 %v952, %v1101
  %v1166 = vadd.f32 %v953, %v1102
  %v1167 = vadd.f32 %v954, %v1103
  %v1168 = vadd.f32 %v955, %v1104
  %v1169 = vadd.f32 %v956, %v1105
  %v1170 = vadd.f32 %v957, %v1106
  %v1171 = vadd.f32 %v958, %v1107
  %v1172 = vadd.f32 %v959, %v1108
  %v1173 = vadd.f32 %v960, %v1109
  %v1174 = vadd.f32 %v961, %v1110
  %v1175 = vadd.f32 %v962, %v1111
  %v1176 = vadd.f32 %v963, %v1112
  %v1177 = vadd.f32 %v964, %v1113
  %v1178 = vadd.f32 %v965, %v1114
  %v1179 = vadd.f32 %v966, %v1115
  %v1180 = vadd.f32 %v967, %v1116
  %v1181 = vadd.f32 %v968, %v1117
  %v1182 = vadd.f32 %v969, %v1118
  %v1183 = vadd.f32 %v970, %v1119
  %v1184 = vadd.f32 %v971, %v1120
  %v1185 = vadd.f32 %v972, %v1121
  %v1186 = vadd.f32 %v973, %v1122
  %v1187 = vadd.f32 %v974, %v1123
  %v1188 = vadd.f32 %v975, %v1124
  %v1189 = vadd.f32 %v976, %v1125
  %v1190 = vadd.f32 %v977, %v1126
  %v1191 = vadd.f32 %v978, %v1127
  %v1192 = vadd.f32 %v979, %v1128
  %v1193 = vadd.f32 %v980, %v1129
  %v1194 = vadd.f32 %v981, %v1130
  %v1195 = vadd.f32 %v982, %v1131
  %v1196 = vadd.f32 %v983, %v1132
  %v1197 = vadd.f32 %v984, %v1133
  %v1198 = vadd.f32 %v985, %v1134
  %v1199 = vadd.f32 %v986, %v1135
  %v1200 = vadd.f32 %v987, %v1136
  %v1201 = vadd.f32 %v988, %v1137
  %v1202 = vadd.f32 %v989, %v1138
  %v1203 = vld [vmem:[%s1 + $0x6] sm:$0x1]
  %v1204 = vlaneseq
  %v1205 = vshrl.u32 %v1204, 7
  %v1206 = vsub.s32 0, %v1205
  %v1207 = vrot.slane %v1203, %v1206
  %v1208 = vmul.f32 %v992, %v1207
  %v1209 = vmul.f32 %v993, %v1207
  %v1210 = vmul.f32 %v994, %v1207
  %v1211 = vmul.f32 %v995, %v1207
  %v1212 = vmul.f32 %v996, %v1207
  %v1213 = vmul.f32 %v997, %v1207
  %v1214 = vmul.f32 %v998, %v1207
  %v1215 = vmul.f32 %v999, %v1207
  %v1216 = vmul.f32 %v1000, %v1207
  %v1217 = vmul.f32 %v1001, %v1207
  %v1218 = vmul.f32 %v1002, %v1207
  %v1219 = vmul.f32 %v1003, %v1207
  %v1220 = vmul.f32 %v1004, %v1207
  %v1221 = vmul.f32 %v1005, %v1207
  %v1222 = vmul.f32 %v1006, %v1207
  %v1223 = vmul.f32 %v1007, %v1207
  %v1224 = vmul.f32 %v1008, %v1207
  %v1225 = vmul.f32 %v1009, %v1207
  %v1226 = vmul.f32 %v1010, %v1207
  %v1227 = vmul.f32 %v1011, %v1207
  %v1228 = vmul.f32 %v1012, %v1207
  %v1229 = vmul.f32 %v1013, %v1207
  %v1230 = vmul.f32 %v1014, %v1207
  %v1231 = vmul.f32 %v1015, %v1207
  %v1232 = vmul.f32 %v1016, %v1207
  %v1233 = vmul.f32 %v1017, %v1207
  %v1234 = vmul.f32 %v1018, %v1207
  %v1235 = vmul.f32 %v1019, %v1207
  %v1236 = vmul.f32 %v1020, %v1207
  %v1237 = vmul.f32 %v1021, %v1207
  %v1238 = vmul.f32 %v1022, %v1207
  %v1239 = vmul.f32 %v1023, %v1207
  %v1240 = vmul.f32 %v1032, %v1207
  %v1241 = vmul.f32 %v1033, %v1207
  %v1242 = vmul.f32 %v1034, %v1207
  %v1243 = vmul.f32 %v1035, %v1207
  %v1244 = vmul.f32 %v1036, %v1207
  %v1245 = vmul.f32 %v1037, %v1207
  %v1246 = vmul.f32 %v1038, %v1207
  %v1247 = vmul.f32 %v1039, %v1207
  %v1248 = vmul.f32 %v1040, %v1207
  %v1249 = vmul.f32 %v1041, %v1207
  %v1250 = vmul.f32 %v1042, %v1207
  %v1251 = vmul.f32 %v1043, %v1207
  %v1252 = vmul.f32 %v1044, %v1207
  %v1253 = vmul.f32 %v1045, %v1207
  %v1254 = vmul.f32 %v1046, %v1207
  %v1255 = vmul.f32 %v1047, %v1207
  %v1256 = vmul.f32 %v1048, %v1207
  %v1257 = vmul.f32 %v1049, %v1207
  %v1258 = vmul.f32 %v1050, %v1207
  %v1259 = vmul.f32 %v1051, %v1207
  %v1260 = vmul.f32 %v1052, %v1207
  %v1261 = vmul.f32 %v1053, %v1207
  %v1262 = vmul.f32 %v1054, %v1207
  %v1263 = vmul.f32 %v1055, %v1207
  %v1264 = vmul.f32 %v1056, %v1207
  %v1265 = vmul.f32 %v1057, %v1207
  %v1266 = vmul.f32 %v1058, %v1207
  %v1267 = vmul.f32 %v1059, %v1207
  %v1268 = vmul.f32 %v1060, %v1207
  %v1269 = vmul.f32 %v1061, %v1207
  %v1270 = vmul.f32 %v1062, %v1207
  %v1271 = vmul.f32 %v1063, %v1207
  %v1272 = vadd.f32 %v1139, %v1208
  %v1273 = vadd.f32 %v1140, %v1209
  %v1274 = vadd.f32 %v1141, %v1210
  %v1275 = vadd.f32 %v1142, %v1211
  %v1276 = vadd.f32 %v1143, %v1212
  %v1277 = vadd.f32 %v1144, %v1213
  %v1278 = vadd.f32 %v1145, %v1214
  %v1279 = vadd.f32 %v1146, %v1215
  %v1280 = vadd.f32 %v1147, %v1216
  %v1281 = vadd.f32 %v1148, %v1217
  %v1282 = vadd.f32 %v1149, %v1218
  %v1283 = vadd.f32 %v1150, %v1219
  %v1284 = vadd.f32 %v1151, %v1220
  %v1285 = vadd.f32 %v1152, %v1221
  %v1286 = vadd.f32 %v1153, %v1222
  %v1287 = vadd.f32 %v1154, %v1223
  %v1288 = vadd.f32 %v1155, %v1224
  %v1289 = vadd.f32 %v1156, %v1225
  %v1290 = vadd.f32 %v1157, %v1226
  %v1291 = vadd.f32 %v1158, %v1227
  %v1292 = vadd.f32 %v1159, %v1228
  %v1293 = vadd.f32 %v1160, %v1229
  %v1294 = vadd.f32 %v1161, %v1230
  %v1295 = vadd.f32 %v1162, %v1231
  %v1296 = vadd.f32 %v1163, %v1232
  %v1297 = vadd.f32 %v1164, %v1233
  %v1298 = vadd.f32 %v1165, %v1234
  %v1299 = vadd.f32 %v1166, %v1235
  %v1300 = vadd.f32 %v1167, %v1236
  %v1301 = vadd.f32 %v1168, %v1237
  %v1302 = vadd.f32 %v1169, %v1238
  %v1303 = vadd.f32 %v1170, %v1239
  %v1304 = vadd.f32 %v1171, %v1240
  %v1305 = vadd.f32 %v1172, %v1241
  %v1306 = vadd.f32 %v1173, %v1242
  %v1307 = vadd.f32 %v1174, %v1243
  %v1308 = vadd.f32 %v1175, %v1244
  %v1309 = vadd.f32 %v1176, %v1245
  %v1310 = vadd.f32 %v1177, %v1246
  %v1311 = vadd.f32 %v1178, %v1247
  %v1312 = vadd.f32 %v1179, %v1248
  %v1313 = vadd.f32 %v1180, %v1249
  %v1314 = vadd.f32 %v1181, %v1250
  %v1315 = vadd.f32 %v1182, %v1251
  %v1316 = vadd.f32 %v1183, %v1252
  %v1317 = vadd.f32 %v1184, %v1253
  %v1318 = vadd.f32 %v1185, %v1254
  %v1319 = vadd.f32 %v1186, %v1255
  %v1320 = vadd.f32 %v1187, %v1256
  %v1321 = vadd.f32 %v1188, %v1257
  %v1322 = vadd.f32 %v1189, %v1258
  %v1323 = vadd.f32 %v1190, %v1259
  %v1324 = vadd.f32 %v1191, %v1260
  %v1325 = vadd.f32 %v1192, %v1261
  %v1326 = vadd.f32 %v1193, %v1262
  %v1327 = vadd.f32 %v1194, %v1263
  %v1328 = vadd.f32 %v1195, %v1264
  %v1329 = vadd.f32 %v1196, %v1265
  %v1330 = vadd.f32 %v1197, %v1266
  %v1331 = vadd.f32 %v1198, %v1267
  %v1332 = vadd.f32 %v1199, %v1268
  %v1333 = vadd.f32 %v1200, %v1269
  %v1334 = vadd.f32 %v1201, %v1270
  %v1335 = vadd.f32 %v1202, %v1271
  %v1336 = vld [vmem:[%s1 + $0xb] sm:$0x1]
  %v1337 = vlaneseq
  %v1338 = vshrl.u32 %v1337, 7
  %v1339 = vsub.s32 0, %v1338
  %v1340 = vrot.slane %v1336, %v1339
  %v1341 = vmul.f32 %v994, %v1340
  %v1342 = vmul.f32 %v995, %v1340
  %v1343 = vmul.f32 %v996, %v1340
  %v1344 = vmul.f32 %v997, %v1340
  %v1345 = vmul.f32 %v998, %v1340
  %v1346 = vmul.f32 %v999, %v1340
  %v1347 = vmul.f32 %v1000, %v1340
  %v1348 = vmul.f32 %v1001, %v1340
  %v1349 = vmul.f32 %v1002, %v1340
  %v1350 = vmul.f32 %v1003, %v1340
  %v1351 = vmul.f32 %v1004, %v1340
  %v1352 = vmul.f32 %v1005, %v1340
  %v1353 = vmul.f32 %v1006, %v1340
  %v1354 = vmul.f32 %v1007, %v1340
  %v1355 = vmul.f32 %v1008, %v1340
  %v1356 = vmul.f32 %v1009, %v1340
  %v1357 = vmul.f32 %v1010, %v1340
  %v1358 = vmul.f32 %v1011, %v1340
  %v1359 = vmul.f32 %v1012, %v1340
  %v1360 = vmul.f32 %v1013, %v1340
  %v1361 = vmul.f32 %v1014, %v1340
  %v1362 = vmul.f32 %v1015, %v1340
  %v1363 = vmul.f32 %v1016, %v1340
  %v1364 = vmul.f32 %v1017, %v1340
  %v1365 = vmul.f32 %v1018, %v1340
  %v1366 = vmul.f32 %v1019, %v1340
  %v1367 = vmul.f32 %v1020, %v1340
  %v1368 = vmul.f32 %v1021, %v1340
  %v1369 = vmul.f32 %v1022, %v1340
  %v1370 = vmul.f32 %v1023, %v1340
  %v1371 = vmul.f32 %v1024, %v1340
  %v1372 = vmul.f32 %v1025, %v1340
  %v1373 = vmul.f32 %v1034, %v1340
  %v1374 = vmul.f32 %v1035, %v1340
  %v1375 = vmul.f32 %v1036, %v1340
  %v1376 = vmul.f32 %v1037, %v1340
  %v1377 = vmul.f32 %v1038, %v1340
  %v1378 = vmul.f32 %v1039, %v1340
  %v1379 = vmul.f32 %v1040, %v1340
  %v1380 = vmul.f32 %v1041, %v1340
  %v1381 = vmul.f32 %v1042, %v1340
  %v1382 = vmul.f32 %v1043, %v1340
  %v1383 = vmul.f32 %v1044, %v1340
  %v1384 = vmul.f32 %v1045, %v1340
  %v1385 = vmul.f32 %v1046, %v1340
  %v1386 = vmul.f32 %v1047, %v1340
  %v1387 = vmul.f32 %v1048, %v1340
  %v1388 = vmul.f32 %v1049, %v1340
  %v1389 = vmul.f32 %v1050, %v1340
  %v1390 = vmul.f32 %v1051, %v1340
  %v1391 = vmul.f32 %v1052, %v1340
  %v1392 = vmul.f32 %v1053, %v1340
  %v1393 = vmul.f32 %v1054, %v1340
  %v1394 = vmul.f32 %v1055, %v1340
  %v1395 = vmul.f32 %v1056, %v1340
  %v1396 = vmul.f32 %v1057, %v1340
  %v1397 = vmul.f32 %v1058, %v1340
  %v1398 = vmul.f32 %v1059, %v1340
  %v1399 = vmul.f32 %v1060, %v1340
  %v1400 = vmul.f32 %v1061, %v1340
  %v1401 = vmul.f32 %v1062, %v1340
  %v1402 = vmul.f32 %v1063, %v1340
  %v1403 = vmul.f32 %v1064, %v1340
  %v1404 = vmul.f32 %v1065, %v1340
  %v1405 = vadd.f32 %v1272, %v1341
  %v1406 = vadd.f32 %v1273, %v1342
  %v1407 = vadd.f32 %v1274, %v1343
  %v1408 = vadd.f32 %v1275, %v1344
  %v1409 = vadd.f32 %v1276, %v1345
  %v1410 = vadd.f32 %v1277, %v1346
  %v1411 = vadd.f32 %v1278, %v1347
  %v1412 = vadd.f32 %v1279, %v1348
  %v1413 = vadd.f32 %v1280, %v1349
  %v1414 = vadd.f32 %v1281, %v1350
  %v1415 = vadd.f32 %v1282, %v1351
  %v1416 = vadd.f32 %v1283, %v1352
  %v1417 = vadd.f32 %v1284, %v1353
  %v1418 = vadd.f32 %v1285, %v1354
  %v1419 = vadd.f32 %v1286, %v1355
  %v1420 = vadd.f32 %v1287, %v1356
  %v1421 = vadd.f32 %v1288, %v1357
  %v1422 = vadd.f32 %v1289, %v1358
  %v1423 = vadd.f32 %v1290, %v1359
  %v1424 = vadd.f32 %v1291, %v1360
  %v1425 = vadd.f32 %v1292, %v1361
  %v1426 = vadd.f32 %v1293, %v1362
  %v1427 = vadd.f32 %v1294, %v1363
  %v1428 = vadd.f32 %v1295, %v1364
  %v1429 = vadd.f32 %v1296, %v1365
  %v1430 = vadd.f32 %v1297, %v1366
  %v1431 = vadd.f32 %v1298, %v1367
  %v1432 = vadd.f32 %v1299, %v1368
  %v1433 = vadd.f32 %v1300, %v1369
  %v1434 = vadd.f32 %v1301, %v1370
  %v1435 = vadd.f32 %v1302, %v1371
  %v1436 = vadd.f32 %v1303, %v1372
  %v1437 = vadd.f32 %v1304, %v1373
  %v1438 = vadd.f32 %v1305, %v1374
  %v1439 = vadd.f32 %v1306, %v1375
  %v1440 = vadd.f32 %v1307, %v1376
  %v1441 = vadd.f32 %v1308, %v1377
  %v1442 = vadd.f32 %v1309, %v1378
  %v1443 = vadd.f32 %v1310, %v1379
  %v1444 = vadd.f32 %v1311, %v1380
  %v1445 = vadd.f32 %v1312, %v1381
  %v1446 = vadd.f32 %v1313, %v1382
  %v1447 = vadd.f32 %v1314, %v1383
  %v1448 = vadd.f32 %v1315, %v1384
  %v1449 = vadd.f32 %v1316, %v1385
  %v1450 = vadd.f32 %v1317, %v1386
  %v1451 = vadd.f32 %v1318, %v1387
  %v1452 = vadd.f32 %v1319, %v1388
  %v1453 = vadd.f32 %v1320, %v1389
  %v1454 = vadd.f32 %v1321, %v1390
  %v1455 = vadd.f32 %v1322, %v1391
  %v1456 = vadd.f32 %v1323, %v1392
  %v1457 = vadd.f32 %v1324, %v1393
  %v1458 = vadd.f32 %v1325, %v1394
  %v1459 = vadd.f32 %v1326, %v1395
  %v1460 = vadd.f32 %v1327, %v1396
  %v1461 = vadd.f32 %v1328, %v1397
  %v1462 = vadd.f32 %v1329, %v1398
  %v1463 = vadd.f32 %v1330, %v1399
  %v1464 = vadd.f32 %v1331, %v1400
  %v1465 = vadd.f32 %v1332, %v1401
  %v1466 = vadd.f32 %v1333, %v1402
  %v1467 = vadd.f32 %v1334, %v1403
  %v1468 = vadd.f32 %v1335, %v1404
  %v1469 = vld [vmem:[%s1 + $0x10] sm:$0x1]
  %v1470 = vlaneseq
  %v1471 = vshrl.u32 %v1470, 7
  %v1472 = vsub.s32 0, %v1471
  %v1473 = vrot.slane %v1469, %v1472
  %v1474 = vmul.f32 %v996, %v1473
  %v1475 = vmul.f32 %v997, %v1473
  %v1476 = vmul.f32 %v998, %v1473
  %v1477 = vmul.f32 %v999, %v1473
  %v1478 = vmul.f32 %v1000, %v1473
  %v1479 = vmul.f32 %v1001, %v1473
  %v1480 = vmul.f32 %v1002, %v1473
  %v1481 = vmul.f32 %v1003, %v1473
  %v1482 = vmul.f32 %v1004, %v1473
  %v1483 = vmul.f32 %v1005, %v1473
  %v1484 = vmul.f32 %v1006, %v1473
  %v1485 = vmul.f32 %v1007, %v1473
  %v1486 = vmul.f32 %v1008, %v1473
  %v1487 = vmul.f32 %v1009, %v1473
  %v1488 = vmul.f32 %v1010, %v1473
  %v1489 = vmul.f32 %v1011, %v1473
  %v1490 = vmul.f32 %v1012, %v1473
  %v1491 = vmul.f32 %v1013, %v1473
  %v1492 = vmul.f32 %v1014, %v1473
  %v1493 = vmul.f32 %v1015, %v1473
  %v1494 = vmul.f32 %v1016, %v1473
  %v1495 = vmul.f32 %v1017, %v1473
  %v1496 = vmul.f32 %v1018, %v1473
  %v1497 = vmul.f32 %v1019, %v1473
  %v1498 = vmul.f32 %v1020, %v1473
  %v1499 = vmul.f32 %v1021, %v1473
  %v1500 = vmul.f32 %v1022, %v1473
  %v1501 = vmul.f32 %v1023, %v1473
  %v1502 = vmul.f32 %v1024, %v1473
  %v1503 = vmul.f32 %v1025, %v1473
  %v1504 = vmul.f32 %v1026, %v1473
  %v1505 = vmul.f32 %v1027, %v1473
  %v1506 = vmul.f32 %v1036, %v1473
  %v1507 = vmul.f32 %v1037, %v1473
  %v1508 = vmul.f32 %v1038, %v1473
  %v1509 = vmul.f32 %v1039, %v1473
  %v1510 = vmul.f32 %v1040, %v1473
  %v1511 = vmul.f32 %v1041, %v1473
  %v1512 = vmul.f32 %v1042, %v1473
  %v1513 = vmul.f32 %v1043, %v1473
  %v1514 = vmul.f32 %v1044, %v1473
  %v1515 = vmul.f32 %v1045, %v1473
  %v1516 = vmul.f32 %v1046, %v1473
  %v1517 = vmul.f32 %v1047, %v1473
  %v1518 = vmul.f32 %v1048, %v1473
  %v1519 = vmul.f32 %v1049, %v1473
  %v1520 = vmul.f32 %v1050, %v1473
  %v1521 = vmul.f32 %v1051, %v1473
  %v1522 = vmul.f32 %v1052, %v1473
  %v1523 = vmul.f32 %v1053, %v1473
  %v1524 = vmul.f32 %v1054, %v1473
  %v1525 = vmul.f32 %v1055, %v1473
  %v1526 = vmul.f32 %v1056, %v1473
  %v1527 = vmul.f32 %v1057, %v1473
  %v1528 = vmul.f32 %v1058, %v1473
  %v1529 = vmul.f32 %v1059, %v1473
  %v1530 = vmul.f32 %v1060, %v1473
  %v1531 = vmul.f32 %v1061, %v1473
  %v1532 = vmul.f32 %v1062, %v1473
  %v1533 = vmul.f32 %v1063, %v1473
  %v1534 = vmul.f32 %v1064, %v1473
  %v1535 = vmul.f32 %v1065, %v1473
  %v1536 = vmul.f32 %v1066, %v1473
  %v1537 = vmul.f32 %v1067, %v1473
  %v1538 = vadd.f32 %v1405, %v1474
  %v1539 = vadd.f32 %v1406, %v1475
  %v1540 = vadd.f32 %v1407, %v1476
  %v1541 = vadd.f32 %v1408, %v1477
  %v1542 = vadd.f32 %v1409, %v1478
  %v1543 = vadd.f32 %v1410, %v1479
  %v1544 = vadd.f32 %v1411, %v1480
  %v1545 = vadd.f32 %v1412, %v1481
  %v1546 = vadd.f32 %v1413, %v1482
  %v1547 = vadd.f32 %v1414, %v1483
  %v1548 = vadd.f32 %v1415, %v1484
  %v1549 = vadd.f32 %v1416, %v1485
  %v1550 = vadd.f32 %v1417, %v1486
  %v1551 = vadd.f32 %v1418, %v1487
  %v1552 = vadd.f32 %v1419, %v1488
  %v1553 = vadd.f32 %v1420, %v1489
  %v1554 = vadd.f32 %v1421, %v1490
  %v1555 = vadd.f32 %v1422, %v1491
  %v1556 = vadd.f32 %v1423, %v1492
  %v1557 = vadd.f32 %v1424, %v1493
  %v1558 = vadd.f32 %v1425, %v1494
  %v1559 = vadd.f32 %v1426, %v1495
  %v1560 = vadd.f32 %v1427, %v1496
  %v1561 = vadd.f32 %v1428, %v1497
  %v1562 = vadd.f32 %v1429, %v1498
  %v1563 = vadd.f32 %v1430, %v1499
  %v1564 = vadd.f32 %v1431, %v1500
  %v1565 = vadd.f32 %v1432, %v1501
  %v1566 = vadd.f32 %v1433, %v1502
  %v1567 = vadd.f32 %v1434, %v1503
  %v1568 = vadd.f32 %v1435, %v1504
  %v1569 = vadd.f32 %v1436, %v1505
  %v1570 = vadd.f32 %v1437, %v1506
  %v1571 = vadd.f32 %v1438, %v1507
  %v1572 = vadd.f32 %v1439, %v1508
  %v1573 = vadd.f32 %v1440, %v1509
  %v1574 = vadd.f32 %v1441, %v1510
  %v1575 = vadd.f32 %v1442, %v1511
  %v1576 = vadd.f32 %v1443, %v1512
  %v1577 = vadd.f32 %v1444, %v1513
  %v1578 = vadd.f32 %v1445, %v1514
  %v1579 = vadd.f32 %v1446, %v1515
  %v1580 = vadd.f32 %v1447, %v1516
  %v1581 = vadd.f32 %v1448, %v1517
  %v1582 = vadd.f32 %v1449, %v1518
  %v1583 = vadd.f32 %v1450, %v1519
  %v1584 = vadd.f32 %v1451, %v1520
  %v1585 = vadd.f32 %v1452, %v1521
  %v1586 = vadd.f32 %v1453, %v1522
  %v1587 = vadd.f32 %v1454, %v1523
  %v1588 = vadd.f32 %v1455, %v1524
  %v1589 = vadd.f32 %v1456, %v1525
  %v1590 = vadd.f32 %v1457, %v1526
  %v1591 = vadd.f32 %v1458, %v1527
  %v1592 = vadd.f32 %v1459, %v1528
  %v1593 = vadd.f32 %v1460, %v1529
  %v1594 = vadd.f32 %v1461, %v1530
  %v1595 = vadd.f32 %v1462, %v1531
  %v1596 = vadd.f32 %v1463, %v1532
  %v1597 = vadd.f32 %v1464, %v1533
  %v1598 = vadd.f32 %v1465, %v1534
  %v1599 = vadd.f32 %v1466, %v1535
  %v1600 = vadd.f32 %v1467, %v1536
  %v1601 = vadd.f32 %v1468, %v1537
  %v1602 = vld [vmem:[%s1 + $0x15] sm:$0x1]
  %v1603 = vlaneseq
  %v1604 = vshrl.u32 %v1603, 7
  %v1605 = vsub.s32 0, %v1604
  %v1606 = vrot.slane %v1602, %v1605
  %v1607 = vmul.f32 %v998, %v1606
  %v1608 = vmul.f32 %v999, %v1606
  %v1609 = vmul.f32 %v1000, %v1606
  %v1610 = vmul.f32 %v1001, %v1606
  %v1611 = vmul.f32 %v1002, %v1606
  %v1612 = vmul.f32 %v1003, %v1606
  %v1613 = vmul.f32 %v1004, %v1606
  %v1614 = vmul.f32 %v1005, %v1606
  %v1615 = vmul.f32 %v1006, %v1606
  %v1616 = vmul.f32 %v1007, %v1606
  %v1617 = vmul.f32 %v1008, %v1606
  %v1618 = vmul.f32 %v1009, %v1606
  %v1619 = vmul.f32 %v1010, %v1606
  %v1620 = vmul.f32 %v1011, %v1606
  %v1621 = vmul.f32 %v1012, %v1606
  %v1622 = vmul.f32 %v1013, %v1606
  %v1623 = vmul.f32 %v1014, %v1606
  %v1624 = vmul.f32 %v1015, %v1606
  %v1625 = vmul.f32 %v1016, %v1606
  %v1626 = vmul.f32 %v1017, %v1606
  %v1627 = vmul.f32 %v1018, %v1606
  %v1628 = vmul.f32 %v1019, %v1606
  %v1629 = vmul.f32 %v1020, %v1606
  %v1630 = vmul.f32 %v1021, %v1606
  %v1631 = vmul.f32 %v1022, %v1606
  %v1632 = vmul.f32 %v1023, %v1606
  %v1633 = vmul.f32 %v1024, %v1606
  %v1634 = vmul.f32 %v1025, %v1606
  %v1635 = vmul.f32 %v1026, %v1606
  %v1636 = vmul.f32 %v1027, %v1606
  %v1637 = vmul.f32 %v1028, %v1606
  %v1638 = vmul.f32 %v1029, %v1606
  %v1639 = vmul.f32 %v1038, %v1606
  %v1640 = vmul.f32 %v1039, %v1606
  %v1641 = vmul.f32 %v1040, %v1606
  %v1642 = vmul.f32 %v1041, %v1606
  %v1643 = vmul.f32 %v1042, %v1606
  %v1644 = vmul.f32 %v1043, %v1606
  %v1645 = vmul.f32 %v1044, %v1606
  %v1646 = vmul.f32 %v1045, %v1606
  %v1647 = vmul.f32 %v1046, %v1606
  %v1648 = vmul.f32 %v1047, %v1606
  %v1649 = vmul.f32 %v1048, %v1606
  %v1650 = vmul.f32 %v1049, %v1606
  %v1651 = vmul.f32 %v1050, %v1606
  %v1652 = vmul.f32 %v1051, %v1606
  %v1653 = vmul.f32 %v1052, %v1606
  %v1654 = vmul.f32 %v1053, %v1606
  %v1655 = vmul.f32 %v1054, %v1606
  %v1656 = vmul.f32 %v1055, %v1606
  %v1657 = vmul.f32 %v1056, %v1606
  %v1658 = vmul.f32 %v1057, %v1606
  %v1659 = vmul.f32 %v1058, %v1606
  %v1660 = vmul.f32 %v1059, %v1606
  %v1661 = vmul.f32 %v1060, %v1606
  %v1662 = vmul.f32 %v1061, %v1606
  %v1663 = vmul.f32 %v1062, %v1606
  %v1664 = vmul.f32 %v1063, %v1606
  %v1665 = vmul.f32 %v1064, %v1606
  %v1666 = vmul.f32 %v1065, %v1606
  %v1667 = vmul.f32 %v1066, %v1606
  %v1668 = vmul.f32 %v1067, %v1606
  %v1669 = vmul.f32 %v1068, %v1606
  %v1670 = vmul.f32 %v1069, %v1606
  %v1671 = vadd.f32 %v1538, %v1607
  %v1672 = vadd.f32 %v1539, %v1608
  %v1673 = vadd.f32 %v1540, %v1609
  %v1674 = vadd.f32 %v1541, %v1610
  %v1675 = vadd.f32 %v1542, %v1611
  %v1676 = vadd.f32 %v1543, %v1612
  %v1677 = vadd.f32 %v1544, %v1613
  %v1678 = vadd.f32 %v1545, %v1614
  %v1679 = vadd.f32 %v1546, %v1615
  %v1680 = vadd.f32 %v1547, %v1616
  %v1681 = vadd.f32 %v1548, %v1617
  %v1682 = vadd.f32 %v1549, %v1618
  %v1683 = vadd.f32 %v1550, %v1619
  %v1684 = vadd.f32 %v1551, %v1620
  %v1685 = vadd.f32 %v1552, %v1621
  %v1686 = vadd.f32 %v1553, %v1622
  %v1687 = vadd.f32 %v1554, %v1623
  %v1688 = vadd.f32 %v1555, %v1624
  %v1689 = vadd.f32 %v1556, %v1625
  %v1690 = vadd.f32 %v1557, %v1626
  %v1691 = vadd.f32 %v1558, %v1627
  %v1692 = vadd.f32 %v1559, %v1628
  %v1693 = vadd.f32 %v1560, %v1629
  %v1694 = vadd.f32 %v1561, %v1630
  %v1695 = vadd.f32 %v1562, %v1631
  %v1696 = vadd.f32 %v1563, %v1632
  %v1697 = vadd.f32 %v1564, %v1633
  %v1698 = vadd.f32 %v1565, %v1634
  %v1699 = vadd.f32 %v1566, %v1635
  %v1700 = vadd.f32 %v1567, %v1636
  %v1701 = vadd.f32 %v1568, %v1637
  %v1702 = vadd.f32 %v1569, %v1638
  %v1703 = vadd.f32 %v1570, %v1639
  %v1704 = vadd.f32 %v1571, %v1640
  %v1705 = vadd.f32 %v1572, %v1641
  %v1706 = vadd.f32 %v1573, %v1642
  %v1707 = vadd.f32 %v1574, %v1643
  %v1708 = vadd.f32 %v1575, %v1644
  %v1709 = vadd.f32 %v1576, %v1645
  %v1710 = vadd.f32 %v1577, %v1646
  %v1711 = vadd.f32 %v1578, %v1647
  %v1712 = vadd.f32 %v1579, %v1648
  %v1713 = vadd.f32 %v1580, %v1649
  %v1714 = vadd.f32 %v1581, %v1650
  %v1715 = vadd.f32 %v1582, %v1651
  %v1716 = vadd.f32 %v1583, %v1652
  %v1717 = vadd.f32 %v1584, %v1653
  %v1718 = vadd.f32 %v1585, %v1654
  %v1719 = vadd.f32 %v1586, %v1655
  %v1720 = vadd.f32 %v1587, %v1656
  %v1721 = vadd.f32 %v1588, %v1657
  %v1722 = vadd.f32 %v1589, %v1658
  %v1723 = vadd.f32 %v1590, %v1659
  %v1724 = vadd.f32 %v1591, %v1660
  %v1725 = vadd.f32 %v1592, %v1661
  %v1726 = vadd.f32 %v1593, %v1662
  %v1727 = vadd.f32 %v1594, %v1663
  %v1728 = vadd.f32 %v1595, %v1664
  %v1729 = vadd.f32 %v1596, %v1665
  %v1730 = vadd.f32 %v1597, %v1666
  %v1731 = vadd.f32 %v1598, %v1667
  %v1732 = vadd.f32 %v1599, %v1668
  %v1733 = vadd.f32 %v1600, %v1669
  %v1734 = vadd.f32 %v1601, %v1670
  %v1735 = vld [vmem:[#allocation2 + $0x2] sm:$0xff]
  %v1736 = vld [vmem:[#allocation2 + $0xa] sm:$0xff]
  %v1737 = vld [vmem:[#allocation2 + $0x1a] sm:$0xff]
  %v1738 = vld [vmem:[#allocation2 + $0x22] sm:$0xff]
  %v1739 = vld [vmem:[#allocation2 + $0x32] sm:$0xff]
  %v1740 = vld [vmem:[#allocation2 + $0x3a] sm:$0xff]
  %v1741 = vld [vmem:[#allocation2 + $0x4a] sm:$0xff]
  %v1742 = vld [vmem:[#allocation2 + $0x52] sm:$0xff]
  %v1743 = vld [vmem:[#allocation2 + $0x62] sm:$0xff]
  %v1744 = vld [vmem:[#allocation2 + $0x6a] sm:$0xff]
  %v1745 = vld [vmem:[#allocation2 + $0x7a] sm:$0xff]
  %v1746 = vld [vmem:[#allocation2 + $0x82] sm:$0xff]
  %v1747 = vld [vmem:[#allocation2 + $0x92] sm:$0xff]
  %v1748 = vld [vmem:[#allocation2 + $0x9a] sm:$0xff]
  %v1749 = vld [vmem:[#allocation2 + $0xaa] sm:$0xff]
  %v1750 = vld [vmem:[#allocation2 + $0xb2] sm:$0xff]
  %v1751 = vld [vmem:[#allocation2 + $0xc2] sm:$0xff]
  %v1752 = vld [vmem:[#allocation2 + $0xca] sm:$0xff]
  %v1753 = vld [vmem:[#allocation2 + $0xda] sm:$0xff]
  %v1754 = vld [vmem:[#allocation2 + $0xe2] sm:$0xff]
  %v1755 = vld [vmem:[#allocation2 + $0xf2] sm:$0xff]
  %v1756 = vld [vmem:[#allocation2 + $0xfa] sm:$0xff]
  %v1757 = vld [vmem:[#allocation2 + $0x10a] sm:$0xff]
  %v1758 = vld [vmem:[#allocation2 + $0x112] sm:$0xff]
  %v1759 = vld [vmem:[#allocation2 + $0x122] sm:$0xff]
  %v1760 = vld [vmem:[#allocation2 + $0x12a] sm:$0xff]
  %v1761 = vld [vmem:[#allocation2 + $0x13a] sm:$0xff]
  %v1762 = vld [vmem:[#allocation2 + $0x142] sm:$0xff]
  %v1763 = vld [vmem:[#allocation2 + $0x152] sm:$0xff]
  %v1764 = vld [vmem:[#allocation2 + $0x15a] sm:$0xff]
  %v1765 = vld [vmem:[#allocation2 + $0x16a] sm:$0xff]
  %v1766 = vld [vmem:[#allocation2 + $0x172] sm:$0xff]
  %v1767 = vld [vmem:[#allocation2 + $0x182] sm:$0xff]
  %v1768 = vld [vmem:[#allocation2 + $0x18a] sm:$0xff]
  %v1769 = vld [vmem:[#allocation2 + $0x19a] sm:$0xff]
  %v1770 = vld [vmem:[#allocation2 + $0x1a2] sm:$0xff]
  %v1771 = vld [vmem:[#allocation2 + $0x1b2] sm:$0xff]
  %v1772 = vld [vmem:[#allocation2 + $0x1ba] sm:$0xff]
  %v1773 = vld [vmem:[#allocation2 + $0x1ca] sm:$0xff]
  %v1774 = vld [vmem:[#allocation2 + $0x1d2] sm:$0xff]
  %v1775 = vld [vmem:[#allocation2 + $0x1e2] sm:$0xff]
  %v1776 = vld [vmem:[#allocation2 + $0x1ea] sm:$0xff]
  %v1777 = vld [vmem:[#allocation2 + $0x1fa] sm:$0xff]
  %v1778 = vld [vmem:[#allocation2 + $0x202] sm:$0xff]
  %v1779 = vld [vmem:[#allocation2 + $0x212] sm:$0xff]
  %v1780 = vld [vmem:[#allocation2 + $0x21a] sm:$0xff]
  %v1781 = vld [vmem:[#allocation2 + $0x22a] sm:$0xff]
  %v1782 = vld [vmem:[#allocation2 + $0x232] sm:$0xff]
  %v1783 = vld [vmem:[#allocation2 + $0x242] sm:$0xff]
  %v1784 = vld [vmem:[#allocation2 + $0x24a] sm:$0xff]
  %v1785 = vld [vmem:[#allocation2 + $0x25a] sm:$0xff]
  %v1786 = vld [vmem:[#allocation2 + $0x262] sm:$0xff]
  %v1787 = vld [vmem:[#allocation2 + $0x272] sm:$0xff]
  %v1788 = vld [vmem:[#allocation2 + $0x27a] sm:$0xff]
  %v1789 = vld [vmem:[#allocation2 + $0x28a] sm:$0xff]
  %v1790 = vld [vmem:[#allocation2 + $0x292] sm:$0xff]
  %v1791 = vld [vmem:[#allocation2 + $0x2a2] sm:$0xff]
  %v1792 = vld [vmem:[#allocation2 + $0x2aa] sm:$0xff]
  %v1793 = vld [vmem:[#allocation2 + $0x2ba] sm:$0xff]
  %v1794 = vld [vmem:[#allocation2 + $0x2c2] sm:$0xff]
  %v1795 = vld [vmem:[#allocation2 + $0x2d2] sm:$0xff]
  %v1796 = vld [vmem:[#allocation2 + $0x2da] sm:$0xff]
  %v1797 = vld [vmem:[#allocation2 + $0x2ea] sm:$0xff]
  %v1798 = vld [vmem:[#allocation2 + $0x2f2] sm:$0xff]
  %v1799 = vld [vmem:[#allocation2 + $0x302] sm:$0xff]
  %v1800 = vld [vmem:[#allocation2 + $0x30a] sm:$0xff]
  %v1801 = vld [vmem:[#allocation2 + $0x31a] sm:$0xff]
  %v1802 = vld [vmem:[#allocation2 + $0x322] sm:$0xff]
  %v1803 = vld [vmem:[#allocation2 + $0x332] sm:$0xff]
  %v1804 = vld [vmem:[#allocation2 + $0x33a] sm:$0xff]
  %v1805 = vld [vmem:[#allocation2 + $0x34a] sm:$0xff]
  %v1806 = vld [vmem:[#allocation2 + $0x352] sm:$0xff]
  %v1807 = vld [vmem:[#allocation2 + $0x362] sm:$0xff]
  %v1808 = vld [vmem:[#allocation2 + $0x36a] sm:$0xff]
  %v1809 = vld [vmem:[#allocation2 + $0x37a] sm:$0xff]
  %v1810 = vld [vmem:[#allocation2 + $0x382] sm:$0xff]
  %v1811 = vld [vmem:[#allocation2 + $0x392] sm:$0xff]
  %v1812 = vld [vmem:[#allocation2 + $0x39a] sm:$0xff]
  %v1813 = vld [vmem:[#allocation2 + $0x3aa] sm:$0xff]
  %v1814 = vld [vmem:[#allocation2 + $0x3b2] sm:$0xff]
  %v1815 = vld [vmem:[%s1 + $0x2] sm:$0x1]
  %v1816 = vlaneseq
  %v1817 = vshrl.u32 %v1816, 7
  %v1818 = vsub.s32 0, %v1817
  %v1819 = vrot.slane %v1815, %v1818
  %v1820 = vmul.f32 %v1735, %v1819
  %v1821 = vmul.f32 %v1736, %v1819
  %v1822 = vmul.f32 %v1737, %v1819
  %v1823 = vmul.f32 %v1738, %v1819
  %v1824 = vmul.f32 %v1739, %v1819
  %v1825 = vmul.f32 %v1740, %v1819
  %v1826 = vmul.f32 %v1741, %v1819
  %v1827 = vmul.f32 %v1742, %v1819
  %v1828 = vmul.f32 %v1743, %v1819
  %v1829 = vmul.f32 %v1744, %v1819
  %v1830 = vmul.f32 %v1745, %v1819
  %v1831 = vmul.f32 %v1746, %v1819
  %v1832 = vmul.f32 %v1747, %v1819
  %v1833 = vmul.f32 %v1748, %v1819
  %v1834 = vmul.f32 %v1749, %v1819
  %v1835 = vmul.f32 %v1750, %v1819
  %v1836 = vmul.f32 %v1751, %v1819
  %v1837 = vmul.f32 %v1752, %v1819
  %v1838 = vmul.f32 %v1753, %v1819
  %v1839 = vmul.f32 %v1754, %v1819
  %v1840 = vmul.f32 %v1755, %v1819
  %v1841 = vmul.f32 %v1756, %v1819
  %v1842 = vmul.f32 %v1757, %v1819
  %v1843 = vmul.f32 %v1758, %v1819
  %v1844 = vmul.f32 %v1759, %v1819
  %v1845 = vmul.f32 %v1760, %v1819
  %v1846 = vmul.f32 %v1761, %v1819
  %v1847 = vmul.f32 %v1762, %v1819
  %v1848 = vmul.f32 %v1763, %v1819
  %v1849 = vmul.f32 %v1764, %v1819
  %v1850 = vmul.f32 %v1765, %v1819
  %v1851 = vmul.f32 %v1766, %v1819
  %v1852 = vmul.f32 %v1775, %v1819
  %v1853 = vmul.f32 %v1776, %v1819
  %v1854 = vmul.f32 %v1777, %v1819
  %v1855 = vmul.f32 %v1778, %v1819
  %v1856 = vmul.f32 %v1779, %v1819
  %v1857 = vmul.f32 %v1780, %v1819
  %v1858 = vmul.f32 %v1781, %v1819
  %v1859 = vmul.f32 %v1782, %v1819
  %v1860 = vmul.f32 %v1783, %v1819
  %v1861 = vmul.f32 %v1784, %v1819
  %v1862 = vmul.f32 %v1785, %v1819
  %v1863 = vmul.f32 %v1786, %v1819
  %v1864 = vmul.f32 %v1787, %v1819
  %v1865 = vmul.f32 %v1788, %v1819
  %v1866 = vmul.f32 %v1789, %v1819
  %v1867 = vmul.f32 %v1790, %v1819
  %v1868 = vmul.f32 %v1791, %v1819
  %v1869 = vmul.f32 %v1792, %v1819
  %v1870 = vmul.f32 %v1793, %v1819
  %v1871 = vmul.f32 %v1794, %v1819
  %v1872 = vmul.f32 %v1795, %v1819
  %v1873 = vmul.f32 %v1796, %v1819
  %v1874 = vmul.f32 %v1797, %v1819
  %v1875 = vmul.f32 %v1798, %v1819
  %v1876 = vmul.f32 %v1799, %v1819
  %v1877 = vmul.f32 %v1800, %v1819
  %v1878 = vmul.f32 %v1801, %v1819
  %v1879 = vmul.f32 %v1802, %v1819
  %v1880 = vmul.f32 %v1803, %v1819
  %v1881 = vmul.f32 %v1804, %v1819
  %v1882 = vmul.f32 %v1805, %v1819
  %v1883 = vmul.f32 %v1806, %v1819
  %v1884 = vadd.f32 %v1671, %v1820
  %v1885 = vadd.f32 %v1672, %v1821
  %v1886 = vadd.f32 %v1673, %v1822
  %v1887 = vadd.f32 %v1674, %v1823
  %v1888 = vadd.f32 %v1675, %v1824
  %v1889 = vadd.f32 %v1676, %v1825
  %v1890 = vadd.f32 %v1677, %v1826
  %v1891 = vadd.f32 %v1678, %v1827
  %v1892 = vadd.f32 %v1679, %v1828
  %v1893 = vadd.f32 %v1680, %v1829
  %v1894 = vadd.f32 %v1681, %v1830
  %v1895 = vadd.f32 %v1682, %v1831
  %v1896 = vadd.f32 %v1683, %v1832
  %v1897 = vadd.f32 %v1684, %v1833
  %v1898 = vadd.f32 %v1685, %v1834
  %v1899 = vadd.f32 %v1686, %v1835
  %v1900 = vadd.f32 %v1687, %v1836
  %v1901 = vadd.f32 %v1688, %v1837
  %v1902 = vadd.f32 %v1689, %v1838
  %v1903 = vadd.f32 %v1690, %v1839
  %v1904 = vadd.f32 %v1691, %v1840
  %v1905 = vadd.f32 %v1692, %v1841
  %v1906 = vadd.f32 %v1693, %v1842
  %v1907 = vadd.f32 %v1694, %v1843
  %v1908 = vadd.f32 %v1695, %v1844
  %v1909 = vadd.f32 %v1696, %v1845
  %v1910 = vadd.f32 %v1697, %v1846
  %v1911 = vadd.f32 %v1698, %v1847
  %v1912 = vadd.f32 %v1699, %v1848
  %v1913 = vadd.f32 %v1700, %v1849
  %v1914 = vadd.f32 %v1701, %v1850
  %v1915 = vadd.f32 %v1702, %v1851
  %v1916 = vadd.f32 %v1703, %v1852
  %v1917 = vadd.f32 %v1704, %v1853
  %v1918 = vadd.f32 %v1705, %v1854
  %v1919 = vadd.f32 %v1706, %v1855
  %v1920 = vadd.f32 %v1707, %v1856
  %v1921 = vadd.f32 %v1708, %v1857
  %v1922 = vadd.f32 %v1709, %v1858
  %v1923 = vadd.f32 %v1710, %v1859
  %v1924 = vadd.f32 %v1711, %v1860
  %v1925 = vadd.f32 %v1712, %v1861
  %v1926 = vadd.f32 %v1713, %v1862
  %v1927 = vadd.f32 %v1714, %v1863
  %v1928 = vadd.f32 %v1715, %v1864
  %v1929 = vadd.f32 %v1716, %v1865
  %v1930 = vadd.f32 %v1717, %v1866
  %v1931 = vadd.f32 %v1718, %v1867
  %v1932 = vadd.f32 %v1719, %v1868
  %v1933 = vadd.f32 %v1720, %v1869
  %v1934 = vadd.f32 %v1721, %v1870
  %v1935 = vadd.f32 %v1722, %v1871
  %v1936 = vadd.f32 %v1723, %v1872
  %v1937 = vadd.f32 %v1724, %v1873
  %v1938 = vadd.f32 %v1725, %v1874
  %v1939 = vadd.f32 %v1726, %v1875
  %v1940 = vadd.f32 %v1727, %v1876
  %v1941 = vadd.f32 %v1728, %v1877
  %v1942 = vadd.f32 %v1729, %v1878
  %v1943 = vadd.f32 %v1730, %v1879
  %v1944 = vadd.f32 %v1731, %v1880
  %v1945 = vadd.f32 %v1732, %v1881
  %v1946 = vadd.f32 %v1733, %v1882
  %v1947 = vadd.f32 %v1734, %v1883
  %v1948 = vld [vmem:[%s1 + $0x7] sm:$0x1]
  %v1949 = vlaneseq
  %v1950 = vshrl.u32 %v1949, 7
  %v1951 = vsub.s32 0, %v1950
  %v1952 = vrot.slane %v1948, %v1951
  %v1953 = vmul.f32 %v1737, %v1952
  %v1954 = vmul.f32 %v1738, %v1952
  %v1955 = vmul.f32 %v1739, %v1952
  %v1956 = vmul.f32 %v1740, %v1952
  %v1957 = vmul.f32 %v1741, %v1952
  %v1958 = vmul.f32 %v1742, %v1952
  %v1959 = vmul.f32 %v1743, %v1952
  %v1960 = vmul.f32 %v1744, %v1952
  %v1961 = vmul.f32 %v1745, %v1952
  %v1962 = vmul.f32 %v1746, %v1952
  %v1963 = vmul.f32 %v1747, %v1952
  %v1964 = vmul.f32 %v1748, %v1952
  %v1965 = vmul.f32 %v1749, %v1952
  %v1966 = vmul.f32 %v1750, %v1952
  %v1967 = vmul.f32 %v1751, %v1952
  %v1968 = vmul.f32 %v1752, %v1952
  %v1969 = vmul.f32 %v1753, %v1952
  %v1970 = vmul.f32 %v1754, %v1952
  %v1971 = vmul.f32 %v1755, %v1952
  %v1972 = vmul.f32 %v1756, %v1952
  %v1973 = vmul.f32 %v1757, %v1952
  %v1974 = vmul.f32 %v1758, %v1952
  %v1975 = vmul.f32 %v1759, %v1952
  %v1976 = vmul.f32 %v1760, %v1952
  %v1977 = vmul.f32 %v1761, %v1952
  %v1978 = vmul.f32 %v1762, %v1952
  %v1979 = vmul.f32 %v1763, %v1952
  %v1980 = vmul.f32 %v1764, %v1952
  %v1981 = vmul.f32 %v1765, %v1952
  %v1982 = vmul.f32 %v1766, %v1952
  %v1983 = vmul.f32 %v1767, %v1952
  %v1984 = vmul.f32 %v1768, %v1952
  %v1985 = vmul.f32 %v1777, %v1952
  %v1986 = vmul.f32 %v1778, %v1952
  %v1987 = vmul.f32 %v1779, %v1952
  %v1988 = vmul.f32 %v1780, %v1952
  %v1989 = vmul.f32 %v1781, %v1952
  %v1990 = vmul.f32 %v1782, %v1952
  %v1991 = vmul.f32 %v1783, %v1952
  %v1992 = vmul.f32 %v1784, %v1952
  %v1993 = vmul.f32 %v1785, %v1952
  %v1994 = vmul.f32 %v1786, %v1952
  %v1995 = vmul.f32 %v1787, %v1952
  %v1996 = vmul.f32 %v1788, %v1952
  %v1997 = vmul.f32 %v1789, %v1952
  %v1998 = vmul.f32 %v1790, %v1952
  %v1999 = vmul.f32 %v1791, %v1952
  %v2000 = vmul.f32 %v1792, %v1952
  %v2001 = vmul.f32 %v1793, %v1952
  %v2002 = vmul.f32 %v1794, %v1952
  %v2003 = vmul.f32 %v1795, %v1952
  %v2004 = vmul.f32 %v1796, %v1952
  %v2005 = vmul.f32 %v1797, %v1952
  %v2006 = vmul.f32 %v1798, %v1952
  %v2007 = vmul.f32 %v1799, %v1952
  %v2008 = vmul.f32 %v1800, %v1952
  %v2009 = vmul.f32 %v1801, %v1952
  %v2010 = vmul.f32 %v1802, %v1952
  %v2011 = vmul.f32 %v1803, %v1952
  %v2012 = vmul.f32 %v1804, %v1952
  %v2013 = vmul.f32 %v1805, %v1952
  %v2014 = vmul.f32 %v1806, %v1952
  %v2015 = vmul.f32 %v1807, %v1952
  %v2016 = vmul.f32 %v1808, %v1952
  %v2017 = vadd.f32 %v1884, %v1953
  %v2018 = vadd.f32 %v1885, %v1954
  %v2019 = vadd.f32 %v1886, %v1955
  %v2020 = vadd.f32 %v1887, %v1956
  %v2021 = vadd.f32 %v1888, %v1957
  %v2022 = vadd.f32 %v1889, %v1958
  %v2023 = vadd.f32 %v1890, %v1959
  %v2024 = vadd.f32 %v1891, %v1960
  %v2025 = vadd.f32 %v1892, %v1961
  %v2026 = vadd.f32 %v1893, %v1962
  %v2027 = vadd.f32 %v1894, %v1963
  %v2028 = vadd.f32 %v1895, %v1964
  %v2029 = vadd.f32 %v1896, %v1965
  %v2030 = vadd.f32 %v1897, %v1966
  %v2031 = vadd.f32 %v1898, %v1967
  %v2032 = vadd.f32 %v1899, %v1968
  %v2033 = vadd.f32 %v1900, %v1969
  %v2034 = vadd.f32 %v1901, %v1970
  %v2035 = vadd.f32 %v1902, %v1971
  %v2036 = vadd.f32 %v1903, %v1972
  %v2037 = vadd.f32 %v1904, %v1973
  %v2038 = vadd.f32 %v1905, %v1974
  %v2039 = vadd.f32 %v1906, %v1975
  %v2040 = vadd.f32 %v1907, %v1976
  %v2041 = vadd.f32 %v1908, %v1977
  %v2042 = vadd.f32 %v1909, %v1978
  %v2043 = vadd.f32 %v1910, %v1979
  %v2044 = vadd.f32 %v1911, %v1980
  %v2045 = vadd.f32 %v1912, %v1981
  %v2046 = vadd.f32 %v1913, %v1982
  %v2047 = vadd.f32 %v1914, %v1983
  %v2048 = vadd.f32 %v1915, %v1984
  %v2049 = vadd.f32 %v1916, %v1985
  %v2050 = vadd.f32 %v1917, %v1986
  %v2051 = vadd.f32 %v1918, %v1987
  %v2052 = vadd.f32 %v1919, %v1988
  %v2053 = vadd.f32 %v1920, %v1989
  %v2054 = vadd.f32 %v1921, %v1990
  %v2055 = vadd.f32 %v1922, %v1991
  %v2056 = vadd.f32 %v1923, %v1992
  %v2057 = vadd.f32 %v1924, %v1993
  %v2058 = vadd.f32 %v1925, %v1994
  %v2059 = vadd.f32 %v1926, %v1995
  %v2060 = vadd.f32 %v1927, %v1996
  %v2061 = vadd.f32 %v1928, %v1997
  %v2062 = vadd.f32 %v1929, %v1998
  %v2063 = vadd.f32 %v1930, %v1999
  %v2064 = vadd.f32 %v1931, %v2000
  %v2065 = vadd.f32 %v1932, %v2001
  %v2066 = vadd.f32 %v1933, %v2002
  %v2067 = vadd.f32 %v1934, %v2003
  %v2068 = vadd.f32 %v1935, %v2004
  %v2069 = vadd.f32 %v1936, %v2005
  %v2070 = vadd.f32 %v1937, %v2006
  %v2071 = vadd.f32 %v1938, %v2007
  %v2072 = vadd.f32 %v1939, %v2008
  %v2073 = vadd.f32 %v1940, %v2009
  %v2074 = vadd.f32 %v1941, %v2010
  %v2075 = vadd.f32 %v1942, %v2011
  %v2076 = vadd.f32 %v1943, %v2012
  %v2077 = vadd.f32 %v1944, %v2013
  %v2078 = vadd.f32 %v1945, %v2014
  %v2079 = vadd.f32 %v1946, %v2015
  %v2080 = vadd.f32 %v1947, %v2016
  %v2081 = vld [vmem:[%s1 + $0xc] sm:$0x1]
  %v2082 = vlaneseq
  %v2083 = vshrl.u32 %v2082, 7
  %v2084 = vsub.s32 0, %v2083
  %v2085 = vrot.slane %v2081, %v2084
  %v2086 = vmul.f32 %v1739, %v2085
  %v2087 = vmul.f32 %v1740, %v2085
  %v2088 = vmul.f32 %v1741, %v2085
  %v2089 = vmul.f32 %v1742, %v2085
  %v2090 = vmul.f32 %v1743, %v2085
  %v2091 = vmul.f32 %v1744, %v2085
  %v2092 = vmul.f32 %v1745, %v2085
  %v2093 = vmul.f32 %v1746, %v2085
  %v2094 = vmul.f32 %v1747, %v2085
  %v2095 = vmul.f32 %v1748, %v2085
  %v2096 = vmul.f32 %v1749, %v2085
  %v2097 = vmul.f32 %v1750, %v2085
  %v2098 = vmul.f32 %v1751, %v2085
  %v2099 = vmul.f32 %v1752, %v2085
  %v2100 = vmul.f32 %v1753, %v2085
  %v2101 = vmul.f32 %v1754, %v2085
  %v2102 = vmul.f32 %v1755, %v2085
  %v2103 = vmul.f32 %v1756, %v2085
  %v2104 = vmul.f32 %v1757, %v2085
  %v2105 = vmul.f32 %v1758, %v2085
  %v2106 = vmul.f32 %v1759, %v2085
  %v2107 = vmul.f32 %v1760, %v2085
  %v2108 = vmul.f32 %v1761, %v2085
  %v2109 = vmul.f32 %v1762, %v2085
  %v2110 = vmul.f32 %v1763, %v2085
  %v2111 = vmul.f32 %v1764, %v2085
  %v2112 = vmul.f32 %v1765, %v2085
  %v2113 = vmul.f32 %v1766, %v2085
  %v2114 = vmul.f32 %v1767, %v2085
  %v2115 = vmul.f32 %v1768, %v2085
  %v2116 = vmul.f32 %v1769, %v2085
  %v2117 = vmul.f32 %v1770, %v2085
  %v2118 = vmul.f32 %v1779, %v2085
  %v2119 = vmul.f32 %v1780, %v2085
  %v2120 = vmul.f32 %v1781, %v2085
  %v2121 = vmul.f32 %v1782, %v2085
  %v2122 = vmul.f32 %v1783, %v2085
  %v2123 = vmul.f32 %v1784, %v2085
  %v2124 = vmul.f32 %v1785, %v2085
  %v2125 = vmul.f32 %v1786, %v2085
  %v2126 = vmul.f32 %v1787, %v2085
  %v2127 = vmul.f32 %v1788, %v2085
  %v2128 = vmul.f32 %v1789, %v2085
  %v2129 = vmul.f32 %v1790, %v2085
  %v2130 = vmul.f32 %v1791, %v2085
  %v2131 = vmul.f32 %v1792, %v2085
  %v2132 = vmul.f32 %v1793, %v2085
  %v2133 = vmul.f32 %v1794, %v2085
  %v2134 = vmul.f32 %v1795, %v2085
  %v2135 = vmul.f32 %v1796, %v2085
  %v2136 = vmul.f32 %v1797, %v2085
  %v2137 = vmul.f32 %v1798, %v2085
  %v2138 = vmul.f32 %v1799, %v2085
  %v2139 = vmul.f32 %v1800, %v2085
  %v2140 = vmul.f32 %v1801, %v2085
  %v2141 = vmul.f32 %v1802, %v2085
  %v2142 = vmul.f32 %v1803, %v2085
  %v2143 = vmul.f32 %v1804, %v2085
  %v2144 = vmul.f32 %v1805, %v2085
  %v2145 = vmul.f32 %v1806, %v2085
  %v2146 = vmul.f32 %v1807, %v2085
  %v2147 = vmul.f32 %v1808, %v2085
  %v2148 = vmul.f32 %v1809, %v2085
  %v2149 = vmul.f32 %v1810, %v2085
  %v2150 = vadd.f32 %v2017, %v2086
  %v2151 = vadd.f32 %v2018, %v2087
  %v2152 = vadd.f32 %v2019, %v2088
  %v2153 = vadd.f32 %v2020, %v2089
  %v2154 = vadd.f32 %v2021, %v2090
  %v2155 = vadd.f32 %v2022, %v2091
  %v2156 = vadd.f32 %v2023, %v2092
  %v2157 = vadd.f32 %v2024, %v2093
  %v2158 = vadd.f32 %v2025, %v2094
  %v2159 = vadd.f32 %v2026, %v2095
  %v2160 = vadd.f32 %v2027, %v2096
  %v2161 = vadd.f32 %v2028, %v2097
  %v2162 = vadd.f32 %v2029, %v2098
  %v2163 = vadd.f32 %v2030, %v2099
  %v2164 = vadd.f32 %v2031, %v2100
  %v2165 = vadd.f32 %v2032, %v2101
  %v2166 = vadd.f32 %v2033, %v2102
  %v2167 = vadd.f32 %v2034, %v2103
  %v2168 = vadd.f32 %v2035, %v2104
  %v2169 = vadd.f32 %v2036, %v2105
  %v2170 = vadd.f32 %v2037, %v2106
  %v2171 = vadd.f32 %v2038, %v2107
  %v2172 = vadd.f32 %v2039, %v2108
  %v2173 = vadd.f32 %v2040, %v2109
  %v2174 = vadd.f32 %v2041, %v2110
  %v2175 = vadd.f32 %v2042, %v2111
  %v2176 = vadd.f32 %v2043, %v2112
  %v2177 = vadd.f32 %v2044, %v2113
  %v2178 = vadd.f32 %v2045, %v2114
  %v2179 = vadd.f32 %v2046, %v2115
  %v2180 = vadd.f32 %v2047, %v2116
  %v2181 = vadd.f32 %v2048, %v2117
  %v2182 = vadd.f32 %v2049, %v2118
  %v2183 = vadd.f32 %v2050, %v2119
  %v2184 = vadd.f32 %v2051, %v2120
  %v2185 = vadd.f32 %v2052, %v2121
  %v2186 = vadd.f32 %v2053, %v2122
  %v2187 = vadd.f32 %v2054, %v2123
  %v2188 = vadd.f32 %v2055, %v2124
  %v2189 = vadd.f32 %v2056, %v2125
  %v2190 = vadd.f32 %v2057, %v2126
  %v2191 = vadd.f32 %v2058, %v2127
  %v2192 = vadd.f32 %v2059, %v2128
  %v2193 = vadd.f32 %v2060, %v2129
  %v2194 = vadd.f32 %v2061, %v2130
  %v2195 = vadd.f32 %v2062, %v2131
  %v2196 = vadd.f32 %v2063, %v2132
  %v2197 = vadd.f32 %v2064, %v2133
  %v2198 = vadd.f32 %v2065, %v2134
  %v2199 = vadd.f32 %v2066, %v2135
  %v2200 = vadd.f32 %v2067, %v2136
  %v2201 = vadd.f32 %v2068, %v2137
  %v2202 = vadd.f32 %v2069, %v2138
  %v2203 = vadd.f32 %v2070, %v2139
  %v2204 = vadd.f32 %v2071, %v2140
  %v2205 = vadd.f32 %v2072, %v2141
  %v2206 = vadd.f32 %v2073, %v2142
  %v2207 = vadd.f32 %v2074, %v2143
  %v2208 = vadd.f32 %v2075, %v2144
  %v2209 = vadd.f32 %v2076, %v2145
  %v2210 = vadd.f32 %v2077, %v2146
  %v2211 = vadd.f32 %v2078, %v2147
  %v2212 = vadd.f32 %v2079, %v2148
  %v2213 = vadd.f32 %v2080, %v2149
  %v2214 = vld [vmem:[%s1 + $0x11] sm:$0x1]
  %v2215 = vlaneseq
  %v2216 = vshrl.u32 %v2215, 7
  %v2217 = vsub.s32 0, %v2216
  %v2218 = vrot.slane %v2214, %v2217
  %v2219 = vmul.f32 %v1741, %v2218
  %v2220 = vmul.f32 %v1742, %v2218
  %v2221 = vmul.f32 %v1743, %v2218
  %v2222 = vmul.f32 %v1744, %v2218
  %v2223 = vmul.f32 %v1745, %v2218
  %v2224 = vmul.f32 %v1746, %v2218
  %v2225 = vmul.f32 %v1747, %v2218
  %v2226 = vmul.f32 %v1748, %v2218
  %v2227 = vmul.f32 %v1749, %v2218
  %v2228 = vmul.f32 %v1750, %v2218
  %v2229 = vmul.f32 %v1751, %v2218
  %v2230 = vmul.f32 %v1752, %v2218
  %v2231 = vmul.f32 %v1753, %v2218
  %v2232 = vmul.f32 %v1754, %v2218
  %v2233 = vmul.f32 %v1755, %v2218
  %v2234 = vmul.f32 %v1756, %v2218
  %v2235 = vmul.f32 %v1757, %v2218
  %v2236 = vmul.f32 %v1758, %v2218
  %v2237 = vmul.f32 %v1759, %v2218
  %v2238 = vmul.f32 %v1760, %v2218
  %v2239 = vmul.f32 %v1761, %v2218
  %v2240 = vmul.f32 %v1762, %v2218
  %v2241 = vmul.f32 %v1763, %v2218
  %v2242 = vmul.f32 %v1764, %v2218
  %v2243 = vmul.f32 %v1765, %v2218
  %v2244 = vmul.f32 %v1766, %v2218
  %v2245 = vmul.f32 %v1767, %v2218
  %v2246 = vmul.f32 %v1768, %v2218
  %v2247 = vmul.f32 %v1769, %v2218
  %v2248 = vmul.f32 %v1770, %v2218
  %v2249 = vmul.f32 %v1771, %v2218
  %v2250 = vmul.f32 %v1772, %v2218
  %v2251 = vmul.f32 %v1781, %v2218
  %v2252 = vmul.f32 %v1782, %v2218
  %v2253 = vmul.f32 %v1783, %v2218
  %v2254 = vmul.f32 %v1784, %v2218
  %v2255 = vmul.f32 %v1785, %v2218
  %v2256 = vmul.f32 %v1786, %v2218
  %v2257 = vmul.f32 %v1787, %v2218
  %v2258 = vmul.f32 %v1788, %v2218
  %v2259 = vmul.f32 %v1789, %v2218
  %v2260 = vmul.f32 %v1790, %v2218
  %v2261 = vmul.f32 %v1791, %v2218
  %v2262 = vmul.f32 %v1792, %v2218
  %v2263 = vmul.f32 %v1793, %v2218
  %v2264 = vmul.f32 %v1794, %v2218
  %v2265 = vmul.f32 %v1795, %v2218
  %v2266 = vmul.f32 %v1796, %v2218
  %v2267 = vmul.f32 %v1797, %v2218
  %v2268 = vmul.f32 %v1798, %v2218
  %v2269 = vmul.f32 %v1799, %v2218
  %v2270 = vmul.f32 %v1800, %v2218
  %v2271 = vmul.f32 %v1801, %v2218
  %v2272 = vmul.f32 %v1802, %v2218
  %v2273 = vmul.f32 %v1803, %v2218
  %v2274 = vmul.f32 %v1804, %v2218
  %v2275 = vmul.f32 %v1805, %v2218
  %v2276 = vmul.f32 %v1806, %v2218
  %v2277 = vmul.f32 %v1807, %v2218
  %v2278 = vmul.f32 %v1808, %v2218
  %v2279 = vmul.f32 %v1809, %v2218
  %v2280 = vmul.f32 %v1810, %v2218
  %v2281 = vmul.f32 %v1811, %v2218
  %v2282 = vmul.f32 %v1812, %v2218
  %v2283 = vadd.f32 %v2150, %v2219
  %v2284 = vadd.f32 %v2151, %v2220
  %v2285 = vadd.f32 %v2152, %v2221
  %v2286 = vadd.f32 %v2153, %v2222
  %v2287 = vadd.f32 %v2154, %v2223
  %v2288 = vadd.f32 %v2155, %v2224
  %v2289 = vadd.f32 %v2156, %v2225
  %v2290 = vadd.f32 %v2157, %v2226
  %v2291 = vadd.f32 %v2158, %v2227
  %v2292 = vadd.f32 %v2159, %v2228
  %v2293 = vadd.f32 %v2160, %v2229
  %v2294 = vadd.f32 %v2161, %v2230
  %v2295 = vadd.f32 %v2162, %v2231
  %v2296 = vadd.f32 %v2163, %v2232
  %v2297 = vadd.f32 %v2164, %v2233
  %v2298 = vadd.f32 %v2165, %v2234
  %v2299 = vadd.f32 %v2166, %v2235
  %v2300 = vadd.f32 %v2167, %v2236
  %v2301 = vadd.f32 %v2168, %v2237
  %v2302 = vadd.f32 %v2169, %v2238
  %v2303 = vadd.f32 %v2170, %v2239
  %v2304 = vadd.f32 %v2171, %v2240
  %v2305 = vadd.f32 %v2172, %v2241
  %v2306 = vadd.f32 %v2173, %v2242
  %v2307 = vadd.f32 %v2174, %v2243
  %v2308 = vadd.f32 %v2175, %v2244
  %v2309 = vadd.f32 %v2176, %v2245
  %v2310 = vadd.f32 %v2177, %v2246
  %v2311 = vadd.f32 %v2178, %v2247
  %v2312 = vadd.f32 %v2179, %v2248
  %v2313 = vadd.f32 %v2180, %v2249
  %v2314 = vadd.f32 %v2181, %v2250
  %v2315 = vadd.f32 %v2182, %v2251
  %v2316 = vadd.f32 %v2183, %v2252
  %v2317 = vadd.f32 %v2184, %v2253
  %v2318 = vadd.f32 %v2185, %v2254
  %v2319 = vadd.f32 %v2186, %v2255
  %v2320 = vadd.f32 %v2187, %v2256
  %v2321 = vadd.f32 %v2188, %v2257
  %v2322 = vadd.f32 %v2189, %v2258
  %v2323 = vadd.f32 %v2190, %v2259
  %v2324 = vadd.f32 %v2191, %v2260
  %v2325 = vadd.f32 %v2192, %v2261
  %v2326 = vadd.f32 %v2193, %v2262
  %v2327 = vadd.f32 %v2194, %v2263
  %v2328 = vadd.f32 %v2195, %v2264
  %v2329 = vadd.f32 %v2196, %v2265
  %v2330 = vadd.f32 %v2197, %v2266
  %v2331 = vadd.f32 %v2198, %v2267
  %v2332 = vadd.f32 %v2199, %v2268
  %v2333 = vadd.f32 %v2200, %v2269
  %v2334 = vadd.f32 %v2201, %v2270
  %v2335 = vadd.f32 %v2202, %v2271
  %v2336 = vadd.f32 %v2203, %v2272
  %v2337 = vadd.f32 %v2204, %v2273
  %v2338 = vadd.f32 %v2205, %v2274
  %v2339 = vadd.f32 %v2206, %v2275
  %v2340 = vadd.f32 %v2207, %v2276
  %v2341 = vadd.f32 %v2208, %v2277
  %v2342 = vadd.f32 %v2209, %v2278
  %v2343 = vadd.f32 %v2210, %v2279
  %v2344 = vadd.f32 %v2211, %v2280
  %v2345 = vadd.f32 %v2212, %v2281
  %v2346 = vadd.f32 %v2213, %v2282
  %v2347 = vld [vmem:[%s1 + $0x16] sm:$0x1]
  %v2348 = vlaneseq
  %v2349 = vshrl.u32 %v2348, 7
  %v2350 = vsub.s32 0, %v2349
  %v2351 = vrot.slane %v2347, %v2350
  %v2352 = vmul.f32 %v1743, %v2351
  %v2353 = vmul.f32 %v1744, %v2351
  %v2354 = vmul.f32 %v1745, %v2351
  %v2355 = vmul.f32 %v1746, %v2351
  %v2356 = vmul.f32 %v1747, %v2351
  %v2357 = vmul.f32 %v1748, %v2351
  %v2358 = vmul.f32 %v1749, %v2351
  %v2359 = vmul.f32 %v1750, %v2351
  %v2360 = vmul.f32 %v1751, %v2351
  %v2361 = vmul.f32 %v1752, %v2351
  %v2362 = vmul.f32 %v1753, %v2351
  %v2363 = vmul.f32 %v1754, %v2351
  %v2364 = vmul.f32 %v1755, %v2351
  %v2365 = vmul.f32 %v1756, %v2351
  %v2366 = vmul.f32 %v1757, %v2351
  %v2367 = vmul.f32 %v1758, %v2351
  %v2368 = vmul.f32 %v1759, %v2351
  %v2369 = vmul.f32 %v1760, %v2351
  %v2370 = vmul.f32 %v1761, %v2351
  %v2371 = vmul.f32 %v1762, %v2351
  %v2372 = vmul.f32 %v1763, %v2351
  %v2373 = vmul.f32 %v1764, %v2351
  %v2374 = vmul.f32 %v1765, %v2351
  %v2375 = vmul.f32 %v1766, %v2351
  %v2376 = vmul.f32 %v1767, %v2351
  %v2377 = vmul.f32 %v1768, %v2351
  %v2378 = vmul.f32 %v1769, %v2351
  %v2379 = vmul.f32 %v1770, %v2351
  %v2380 = vmul.f32 %v1771, %v2351
  %v2381 = vmul.f32 %v1772, %v2351
  %v2382 = vmul.f32 %v1773, %v2351
  %v2383 = vmul.f32 %v1774, %v2351
  %v2384 = vmul.f32 %v1783, %v2351
  %v2385 = vmul.f32 %v1784, %v2351
  %v2386 = vmul.f32 %v1785, %v2351
  %v2387 = vmul.f32 %v1786, %v2351
  %v2388 = vmul.f32 %v1787, %v2351
  %v2389 = vmul.f32 %v1788, %v2351
  %v2390 = vmul.f32 %v1789, %v2351
  %v2391 = vmul.f32 %v1790, %v2351
  %v2392 = vmul.f32 %v1791, %v2351
  %v2393 = vmul.f32 %v1792, %v2351
  %v2394 = vmul.f32 %v1793, %v2351
  %v2395 = vmul.f32 %v1794, %v2351
  %v2396 = vmul.f32 %v1795, %v2351
  %v2397 = vmul.f32 %v1796, %v2351
  %v2398 = vmul.f32 %v1797, %v2351
  %v2399 = vmul.f32 %v1798, %v2351
  %v2400 = vmul.f32 %v1799, %v2351
  %v2401 = vmul.f32 %v1800, %v2351
  %v2402 = vmul.f32 %v1801, %v2351
  %v2403 = vmul.f32 %v1802, %v2351
  %v2404 = vmul.f32 %v1803, %v2351
  %v2405 = vmul.f32 %v1804, %v2351
  %v2406 = vmul.f32 %v1805, %v2351
  %v2407 = vmul.f32 %v1806, %v2351
  %v2408 = vmul.f32 %v1807, %v2351
  %v2409 = vmul.f32 %v1808, %v2351
  %v2410 = vmul.f32 %v1809, %v2351
  %v2411 = vmul.f32 %v1810, %v2351
  %v2412 = vmul.f32 %v1811, %v2351
  %v2413 = vmul.f32 %v1812, %v2351
  %v2414 = vmul.f32 %v1813, %v2351
  %v2415 = vmul.f32 %v1814, %v2351
  %v2416 = vadd.f32 %v2283, %v2352
  %v2417 = vadd.f32 %v2284, %v2353
  %v2418 = vadd.f32 %v2285, %v2354
  %v2419 = vadd.f32 %v2286, %v2355
  %v2420 = vadd.f32 %v2287, %v2356
  %v2421 = vadd.f32 %v2288, %v2357
  %v2422 = vadd.f32 %v2289, %v2358
  %v2423 = vadd.f32 %v2290, %v2359
  %v2424 = vadd.f32 %v2291, %v2360
  %v2425 = vadd.f32 %v2292, %v2361
  %v2426 = vadd.f32 %v2293, %v2362
  %v2427 = vadd.f32 %v2294, %v2363
  %v2428 = vadd.f32 %v2295, %v2364
  %v2429 = vadd.f32 %v2296, %v2365
  %v2430 = vadd.f32 %v2297, %v2366
  %v2431 = vadd.f32 %v2298, %v2367
  %v2432 = vadd.f32 %v2299, %v2368
  %v2433 = vadd.f32 %v2300, %v2369
  %v2434 = vadd.f32 %v2301, %v2370
  %v2435 = vadd.f32 %v2302, %v2371
  %v2436 = vadd.f32 %v2303, %v2372
  %v2437 = vadd.f32 %v2304, %v2373
  %v2438 = vadd.f32 %v2305, %v2374
  %v2439 = vadd.f32 %v2306, %v2375
  %v2440 = vadd.f32 %v2307, %v2376
  %v2441 = vadd.f32 %v2308, %v2377
  %v2442 = vadd.f32 %v2309, %v2378
  %v2443 = vadd.f32 %v2310, %v2379
  %v2444 = vadd.f32 %v2311, %v2380
  %v2445 = vadd.f32 %v2312, %v2381
  %v2446 = vadd.f32 %v2313, %v2382
  %v2447 = vadd.f32 %v2314, %v2383
  %v2448 = vadd.f32 %v2315, %v2384
  %v2449 = vadd.f32 %v2316, %v2385
  %v2450 = vadd.f32 %v2317, %v2386
  %v2451 = vadd.f32 %v2318, %v2387
  %v2452 = vadd.f32 %v2319, %v2388
  %v2453 = vadd.f32 %v2320, %v2389
  %v2454 = vadd.f32 %v2321, %v2390
  %v2455 = vadd.f32 %v2322, %v2391
  %v2456 = vadd.f32 %v2323, %v2392
  %v2457 = vadd.f32 %v2324, %v2393
  %v2458 = vadd.f32 %v2325, %v2394
  %v2459 = vadd.f32 %v2326, %v2395
  %v2460 = vadd.f32 %v2327, %v2396
  %v2461 = vadd.f32 %v2328, %v2397
  %v2462 = vadd.f32 %v2329, %v2398
  %v2463 = vadd.f32 %v2330, %v2399
  %v2464 = vadd.f32 %v2331, %v2400
  %v2465 = vadd.f32 %v2332, %v2401
  %v2466 = vadd.f32 %v2333, %v2402
  %v2467 = vadd.f32 %v2334, %v2403
  %v2468 = vadd.f32 %v2335, %v2404
  %v2469 = vadd.f32 %v2336, %v2405
  %v2470 = vadd.f32 %v2337, %v2406
  %v2471 = vadd.f32 %v2338, %v2407
  %v2472 = vadd.f32 %v2339, %v2408
  %v2473 = vadd.f32 %v2340, %v2409
  %v2474 = vadd.f32 %v2341, %v2410
  %v2475 = vadd.f32 %v2342, %v2411
  %v2476 = vadd.f32 %v2343, %v2412
  %v2477 = vadd.f32 %v2344, %v2413
  %v2478 = vadd.f32 %v2345, %v2414
  %v2479 = vadd.f32 %v2346, %v2415
  %v2480 = vld [vmem:[#allocation2 + $0x3] sm:$0xff]
  %v2481 = vld [vmem:[#allocation2 + $0xb] sm:$0xff]
  %v2482 = vld [vmem:[#allocation2 + $0x1b] sm:$0xff]
  %v2483 = vld [vmem:[#allocation2 + $0x23] sm:$0xff]
  %v2484 = vld [vmem:[#allocation2 + $0x33] sm:$0xff]
  %v2485 = vld [vmem:[#allocation2 + $0x3b] sm:$0xff]
  %v2486 = vld [vmem:[#allocation2 + $0x4b] sm:$0xff]
  %v2487 = vld [vmem:[#allocation2 + $0x53] sm:$0xff]
  %v2488 = vld [vmem:[#allocation2 + $0x63] sm:$0xff]
  %v2489 = vld [vmem:[#allocation2 + $0x6b] sm:$0xff]
  %v2490 = vld [vmem:[#allocation2 + $0x7b] sm:$0xff]
  %v2491 = vld [vmem:[#allocation2 + $0x83] sm:$0xff]
  %v2492 = vld [vmem:[#allocation2 + $0x93] sm:$0xff]
  %v2493 = vld [vmem:[#allocation2 + $0x9b] sm:$0xff]
  %v2494 = vld [vmem:[#allocation2 + $0xab] sm:$0xff]
  %v2495 = vld [vmem:[#allocation2 + $0xb3] sm:$0xff]
  %v2496 = vld [vmem:[#allocation2 + $0xc3] sm:$0xff]
  %v2497 = vld [vmem:[#allocation2 + $0xcb] sm:$0xff]
  %v2498 = vld [vmem:[#allocation2 + $0xdb] sm:$0xff]
  %v2499 = vld [vmem:[#allocation2 + $0xe3] sm:$0xff]
  %v2500 = vld [vmem:[#allocation2 + $0xf3] sm:$0xff]
  %v2501 = vld [vmem:[#allocation2 + $0xfb] sm:$0xff]
  %v2502 = vld [vmem:[#allocation2 + $0x10b] sm:$0xff]
  %v2503 = vld [vmem:[#allocation2 + $0x113] sm:$0xff]
  %v2504 = vld [vmem:[#allocation2 + $0x123] sm:$0xff]
  %v2505 = vld [vmem:[#allocation2 + $0x12b] sm:$0xff]
  %v2506 = vld [vmem:[#allocation2 + $0x13b] sm:$0xff]
  %v2507 = vld [vmem:[#allocation2 + $0x143] sm:$0xff]
  %v2508 = vld [vmem:[#allocation2 + $0x153] sm:$0xff]
  %v2509 = vld [vmem:[#allocation2 + $0x15b] sm:$0xff]
  %v2510 = vld [vmem:[#allocation2 + $0x16b] sm:$0xff]
  %v2511 = vld [vmem:[#allocation2 + $0x173] sm:$0xff]
  %v2512 = vld [vmem:[#allocation2 + $0x183] sm:$0xff]
  %v2513 = vld [vmem:[#allocation2 + $0x18b] sm:$0xff]
  %v2514 = vld [vmem:[#allocation2 + $0x19b] sm:$0xff]
  %v2515 = vld [vmem:[#allocation2 + $0x1a3] sm:$0xff]
  %v2516 = vld [vmem:[#allocation2 + $0x1b3] sm:$0xff]
  %v2517 = vld [vmem:[#allocation2 + $0x1bb] sm:$0xff]
  %v2518 = vld [vmem:[#allocation2 + $0x1cb] sm:$0xff]
  %v2519 = vld [vmem:[#allocation2 + $0x1d3] sm:$0xff]
  %v2520 = vld [vmem:[#allocation2 + $0x1e3] sm:$0xff]
  %v2521 = vld [vmem:[#allocation2 + $0x1eb] sm:$0xff]
  %v2522 = vld [vmem:[#allocation2 + $0x1fb] sm:$0xff]
  %v2523 = vld [vmem:[#allocation2 + $0x203] sm:$0xff]
  %v2524 = vld [vmem:[#allocation2 + $0x213] sm:$0xff]
  %v2525 = vld [vmem:[#allocation2 + $0x21b] sm:$0xff]
  %v2526 = vld [vmem:[#allocation2 + $0x22b] sm:$0xff]
  %v2527 = vld [vmem:[#allocation2 + $0x233] sm:$0xff]
  %v2528 = vld [vmem:[#allocation2 + $0x243] sm:$0xff]
  %v2529 = vld [vmem:[#allocation2 + $0x24b] sm:$0xff]
  %v2530 = vld [vmem:[#allocation2 + $0x25b] sm:$0xff]
  %v2531 = vld [vmem:[#allocation2 + $0x263] sm:$0xff]
  %v2532 = vld [vmem:[#allocation2 + $0x273] sm:$0xff]
  %v2533 = vld [vmem:[#allocation2 + $0x27b] sm:$0xff]
  %v2534 = vld [vmem:[#allocation2 + $0x28b] sm:$0xff]
  %v2535 = vld [vmem:[#allocation2 + $0x293] sm:$0xff]
  %v2536 = vld [vmem:[#allocation2 + $0x2a3] sm:$0xff]
  %v2537 = vld [vmem:[#allocation2 + $0x2ab] sm:$0xff]
  %v2538 = vld [vmem:[#allocation2 + $0x2bb] sm:$0xff]
  %v2539 = vld [vmem:[#allocation2 + $0x2c3] sm:$0xff]
  %v2540 = vld [vmem:[#allocation2 + $0x2d3] sm:$0xff]
  %v2541 = vld [vmem:[#allocation2 + $0x2db] sm:$0xff]
  %v2542 = vld [vmem:[#allocation2 + $0x2eb] sm:$0xff]
  %v2543 = vld [vmem:[#allocation2 + $0x2f3] sm:$0xff]
  %v2544 = vld [vmem:[#allocation2 + $0x303] sm:$0xff]
  %v2545 = vld [vmem:[#allocation2 + $0x30b] sm:$0xff]
  %v2546 = vld [vmem:[#allocation2 + $0x31b] sm:$0xff]
  %v2547 = vld [vmem:[#allocation2 + $0x323] sm:$0xff]
  %v2548 = vld [vmem:[#allocation2 + $0x333] sm:$0xff]
  %v2549 = vld [vmem:[#allocation2 + $0x33b] sm:$0xff]
  %v2550 = vld [vmem:[#allocation2 + $0x34b] sm:$0xff]
  %v2551 = vld [vmem:[#allocation2 + $0x353] sm:$0xff]
  %v2552 = vld [vmem:[#allocation2 + $0x363] sm:$0xff]
  %v2553 = vld [vmem:[#allocation2 + $0x36b] sm:$0xff]
  %v2554 = vld [vmem:[#allocation2 + $0x37b] sm:$0xff]
  %v2555 = vld [vmem:[#allocation2 + $0x383] sm:$0xff]
  %v2556 = vld [vmem:[#allocation2 + $0x393] sm:$0xff]
  %v2557 = vld [vmem:[#allocation2 + $0x39b] sm:$0xff]
  %v2558 = vld [vmem:[#allocation2 + $0x3ab] sm:$0xff]
  %v2559 = vld [vmem:[#allocation2 + $0x3b3] sm:$0xff]
  %v2560 = vld [vmem:[%s1 + $0x3] sm:$0x1]
  %v2561 = vlaneseq
  %v2562 = vshrl.u32 %v2561, 7
  %v2563 = vsub.s32 0, %v2562
  %v2564 = vrot.slane %v2560, %v2563
  %v2565 = vmul.f32 %v2480, %v2564
  %v2566 = vmul.f32 %v2481, %v2564
  %v2567 = vmul.f32 %v2482, %v2564
  %v2568 = vmul.f32 %v2483, %v2564
  %v2569 = vmul.f32 %v2484, %v2564
  %v2570 = vmul.f32 %v2485, %v2564
  %v2571 = vmul.f32 %v2486, %v2564
  %v2572 = vmul.f32 %v2487, %v2564
  %v2573 = vmul.f32 %v2488, %v2564
  %v2574 = vmul.f32 %v2489, %v2564
  %v2575 = vmul.f32 %v2490, %v2564
  %v2576 = vmul.f32 %v2491, %v2564
  %v2577 = vmul.f32 %v2492, %v2564
  %v2578 = vmul.f32 %v2493, %v2564
  %v2579 = vmul.f32 %v2494, %v2564
  %v2580 = vmul.f32 %v2495, %v2564
  %v2581 = vmul.f32 %v2496, %v2564
  %v2582 = vmul.f32 %v2497, %v2564
  %v2583 = vmul.f32 %v2498, %v2564
  %v2584 = vmul.f32 %v2499, %v2564
  %v2585 = vmul.f32 %v2500, %v2564
  %v2586 = vmul.f32 %v2501, %v2564
  %v2587 = vmul.f32 %v2502, %v2564
  %v2588 = vmul.f32 %v2503, %v2564
  %v2589 = vmul.f32 %v2504, %v2564
  %v2590 = vmul.f32 %v2505, %v2564
  %v2591 = vmul.f32 %v2506, %v2564
  %v2592 = vmul.f32 %v2507, %v2564
  %v2593 = vmul.f32 %v2508, %v2564
  %v2594 = vmul.f32 %v2509, %v2564
  %v2595 = vmul.f32 %v2510, %v2564
  %v2596 = vmul.f32 %v2511, %v2564
  %v2597 = vmul.f32 %v2520, %v2564
  %v2598 = vmul.f32 %v2521, %v2564
  %v2599 = vmul.f32 %v2522, %v2564
  %v2600 = vmul.f32 %v2523, %v2564
  %v2601 = vmul.f32 %v2524, %v2564
  %v2602 = vmul.f32 %v2525, %v2564
  %v2603 = vmul.f32 %v2526, %v2564
  %v2604 = vmul.f32 %v2527, %v2564
  %v2605 = vmul.f32 %v2528, %v2564
  %v2606 = vmul.f32 %v2529, %v2564
  %v2607 = vmul.f32 %v2530, %v2564
  %v2608 = vmul.f32 %v2531, %v2564
  %v2609 = vmul.f32 %v2532, %v2564
  %v2610 = vmul.f32 %v2533, %v2564
  %v2611 = vmul.f32 %v2534, %v2564
  %v2612 = vmul.f32 %v2535, %v2564
  %v2613 = vmul.f32 %v2536, %v2564
  %v2614 = vmul.f32 %v2537, %v2564
  %v2615 = vmul.f32 %v2538, %v2564
  %v2616 = vmul.f32 %v2539, %v2564
  %v2617 = vmul.f32 %v2540, %v2564
  %v2618 = vmul.f32 %v2541, %v2564
  %v2619 = vmul.f32 %v2542, %v2564
  %v2620 = vmul.f32 %v2543, %v2564
  %v2621 = vmul.f32 %v2544, %v2564
  %v2622 = vmul.f32 %v2545, %v2564
  %v2623 = vmul.f32 %v2546, %v2564
  %v2624 = vmul.f32 %v2547, %v2564
  %v2625 = vmul.f32 %v2548, %v2564
  %v2626 = vmul.f32 %v2549, %v2564
  %v2627 = vmul.f32 %v2550, %v2564
  %v2628 = vmul.f32 %v2551, %v2564
  %v2629 = vadd.f32 %v2416, %v2565
  %v2630 = vadd.f32 %v2417, %v2566
  %v2631 = vadd.f32 %v2418, %v2567
  %v2632 = vadd.f32 %v2419, %v2568
  %v2633 = vadd.f32 %v2420, %v2569
  %v2634 = vadd.f32 %v2421, %v2570
  %v2635 = vadd.f32 %v2422, %v2571
  %v2636 = vadd.f32 %v2423, %v2572
  %v2637 = vadd.f32 %v2424, %v2573
  %v2638 = vadd.f32 %v2425, %v2574
  %v2639 = vadd.f32 %v2426, %v2575
  %v2640 = vadd.f32 %v2427, %v2576
  %v2641 = vadd.f32 %v2428, %v2577
  %v2642 = vadd.f32 %v2429, %v2578
  %v2643 = vadd.f32 %v2430, %v2579
  %v2644 = vadd.f32 %v2431, %v2580
  %v2645 = vadd.f32 %v2432, %v2581
  %v2646 = vadd.f32 %v2433, %v2582
  %v2647 = vadd.f32 %v2434, %v2583
  %v2648 = vadd.f32 %v2435, %v2584
  %v2649 = vadd.f32 %v2436, %v2585
  %v2650 = vadd.f32 %v2437, %v2586
  %v2651 = vadd.f32 %v2438, %v2587
  %v2652 = vadd.f32 %v2439, %v2588
  %v2653 = vadd.f32 %v2440, %v2589
  %v2654 = vadd.f32 %v2441, %v2590
  %v2655 = vadd.f32 %v2442, %v2591
  %v2656 = vadd.f32 %v2443, %v2592
  %v2657 = vadd.f32 %v2444, %v2593
  %v2658 = vadd.f32 %v2445, %v2594
  %v2659 = vadd.f32 %v2446, %v2595
  %v2660 = vadd.f32 %v2447, %v2596
  %v2661 = vadd.f32 %v2448, %v2597
  %v2662 = vadd.f32 %v2449, %v2598
  %v2663 = vadd.f32 %v2450, %v2599
  %v2664 = vadd.f32 %v2451, %v2600
  %v2665 = vadd.f32 %v2452, %v2601
  %v2666 = vadd.f32 %v2453, %v2602
  %v2667 = vadd.f32 %v2454, %v2603
  %v2668 = vadd.f32 %v2455, %v2604
  %v2669 = vadd.f32 %v2456, %v2605
  %v2670 = vadd.f32 %v2457, %v2606
  %v2671 = vadd.f32 %v2458, %v2607
  %v2672 = vadd.f32 %v2459, %v2608
  %v2673 = vadd.f32 %v2460, %v2609
  %v2674 = vadd.f32 %v2461, %v2610
  %v2675 = vadd.f32 %v2462, %v2611
  %v2676 = vadd.f32 %v2463, %v2612
  %v2677 = vadd.f32 %v2464, %v2613
  %v2678 = vadd.f32 %v2465, %v2614
  %v2679 = vadd.f32 %v2466, %v2615
  %v2680 = vadd.f32 %v2467, %v2616
  %v2681 = vadd.f32 %v2468, %v2617
  %v2682 = vadd.f32 %v2469, %v2618
  %v2683 = vadd.f32 %v2470, %v2619
  %v2684 = vadd.f32 %v2471, %v2620
  %v2685 = vadd.f32 %v2472, %v2621
  %v2686 = vadd.f32 %v2473, %v2622
  %v2687 = vadd.f32 %v2474, %v2623
  %v2688 = vadd.f32 %v2475, %v2624
  %v2689 = vadd.f32 %v2476, %v2625
  %v2690 = vadd.f32 %v2477, %v2626
  %v2691 = vadd.f32 %v2478, %v2627
  %v2692 = vadd.f32 %v2479, %v2628
  %v2693 = vld [vmem:[%s1 + $0x8] sm:$0x1]
  %v2694 = vlaneseq
  %v2695 = vshrl.u32 %v2694, 7
  %v2696 = vsub.s32 0, %v2695
  %v2697 = vrot.slane %v2693, %v2696
  %v2698 = vmul.f32 %v2482, %v2697
  %v2699 = vmul.f32 %v2483, %v2697
  %v2700 = vmul.f32 %v2484, %v2697
  %v2701 = vmul.f32 %v2485, %v2697
  %v2702 = vmul.f32 %v2486, %v2697
  %v2703 = vmul.f32 %v2487, %v2697
  %v2704 = vmul.f32 %v2488, %v2697
  %v2705 = vmul.f32 %v2489, %v2697
  %v2706 = vmul.f32 %v2490, %v2697
  %v2707 = vmul.f32 %v2491, %v2697
  %v2708 = vmul.f32 %v2492, %v2697
  %v2709 = vmul.f32 %v2493, %v2697
  %v2710 = vmul.f32 %v2494, %v2697
  %v2711 = vmul.f32 %v2495, %v2697
  %v2712 = vmul.f32 %v2496, %v2697
  %v2713 = vmul.f32 %v2497, %v2697
  %v2714 = vmul.f32 %v2498, %v2697
  %v2715 = vmul.f32 %v2499, %v2697
  %v2716 = vmul.f32 %v2500, %v2697
  %v2717 = vmul.f32 %v2501, %v2697
  %v2718 = vmul.f32 %v2502, %v2697
  %v2719 = vmul.f32 %v2503, %v2697
  %v2720 = vmul.f32 %v2504, %v2697
  %v2721 = vmul.f32 %v2505, %v2697
  %v2722 = vmul.f32 %v2506, %v2697
  %v2723 = vmul.f32 %v2507, %v2697
  %v2724 = vmul.f32 %v2508, %v2697
  %v2725 = vmul.f32 %v2509, %v2697
  %v2726 = vmul.f32 %v2510, %v2697
  %v2727 = vmul.f32 %v2511, %v2697
  %v2728 = vmul.f32 %v2512, %v2697
  %v2729 = vmul.f32 %v2513, %v2697
  %v2730 = vmul.f32 %v2522, %v2697
  %v2731 = vmul.f32 %v2523, %v2697
  %v2732 = vmul.f32 %v2524, %v2697
  %v2733 = vmul.f32 %v2525, %v2697
  %v2734 = vmul.f32 %v2526, %v2697
  %v2735 = vmul.f32 %v2527, %v2697
  %v2736 = vmul.f32 %v2528, %v2697
  %v2737 = vmul.f32 %v2529, %v2697
  %v2738 = vmul.f32 %v2530, %v2697
  %v2739 = vmul.f32 %v2531, %v2697
  %v2740 = vmul.f32 %v2532, %v2697
  %v2741 = vmul.f32 %v2533, %v2697
  %v2742 = vmul.f32 %v2534, %v2697
  %v2743 = vmul.f32 %v2535, %v2697
  %v2744 = vmul.f32 %v2536, %v2697
  %v2745 = vmul.f32 %v2537, %v2697
  %v2746 = vmul.f32 %v2538, %v2697
  %v2747 = vmul.f32 %v2539, %v2697
  %v2748 = vmul.f32 %v2540, %v2697
  %v2749 = vmul.f32 %v2541, %v2697
  %v2750 = vmul.f32 %v2542, %v2697
  %v2751 = vmul.f32 %v2543, %v2697
  %v2752 = vmul.f32 %v2544, %v2697
  %v2753 = vmul.f32 %v2545, %v2697
  %v2754 = vmul.f32 %v2546, %v2697
  %v2755 = vmul.f32 %v2547, %v2697
  %v2756 = vmul.f32 %v2548, %v2697
  %v2757 = vmul.f32 %v2549, %v2697
  %v2758 = vmul.f32 %v2550, %v2697
  %v2759 = vmul.f32 %v2551, %v2697
  %v2760 = vmul.f32 %v2552, %v2697
  %v2761 = vmul.f32 %v2553, %v2697
  %v2762 = vadd.f32 %v2629, %v2698
  %v2763 = vadd.f32 %v2630, %v2699
  %v2764 = vadd.f32 %v2631, %v2700
  %v2765 = vadd.f32 %v2632, %v2701
  %v2766 = vadd.f32 %v2633, %v2702
  %v2767 = vadd.f32 %v2634, %v2703
  %v2768 = vadd.f32 %v2635, %v2704
  %v2769 = vadd.f32 %v2636, %v2705
  %v2770 = vadd.f32 %v2637, %v2706
  %v2771 = vadd.f32 %v2638, %v2707
  %v2772 = vadd.f32 %v2639, %v2708
  %v2773 = vadd.f32 %v2640, %v2709
  %v2774 = vadd.f32 %v2641, %v2710
  %v2775 = vadd.f32 %v2642, %v2711
  %v2776 = vadd.f32 %v2643, %v2712
  %v2777 = vadd.f32 %v2644, %v2713
  %v2778 = vadd.f32 %v2645, %v2714
  %v2779 = vadd.f32 %v2646, %v2715
  %v2780 = vadd.f32 %v2647, %v2716
  %v2781 = vadd.f32 %v2648, %v2717
  %v2782 = vadd.f32 %v2649, %v2718
  %v2783 = vadd.f32 %v2650, %v2719
  %v2784 = vadd.f32 %v2651, %v2720
  %v2785 = vadd.f32 %v2652, %v2721
  %v2786 = vadd.f32 %v2653, %v2722
  %v2787 = vadd.f32 %v2654, %v2723
  %v2788 = vadd.f32 %v2655, %v2724
  %v2789 = vadd.f32 %v2656, %v2725
  %v2790 = vadd.f32 %v2657, %v2726
  %v2791 = vadd.f32 %v2658, %v2727
  %v2792 = vadd.f32 %v2659, %v2728
  %v2793 = vadd.f32 %v2660, %v2729
  %v2794 = vadd.f32 %v2661, %v2730
  %v2795 = vadd.f32 %v2662, %v2731
  %v2796 = vadd.f32 %v2663, %v2732
  %v2797 = vadd.f32 %v2664, %v2733
  %v2798 = vadd.f32 %v2665, %v2734
  %v2799 = vadd.f32 %v2666, %v2735
  %v2800 = vadd.f32 %v2667, %v2736
  %v2801 = vadd.f32 %v2668, %v2737
  %v2802 = vadd.f32 %v2669, %v2738
  %v2803 = vadd.f32 %v2670, %v2739
  %v2804 = vadd.f32 %v2671, %v2740
  %v2805 = vadd.f32 %v2672, %v2741
  %v2806 = vadd.f32 %v2673, %v2742
  %v2807 = vadd.f32 %v2674, %v2743
  %v2808 = vadd.f32 %v2675, %v2744
  %v2809 = vadd.f32 %v2676, %v2745
  %v2810 = vadd.f32 %v2677, %v2746
  %v2811 = vadd.f32 %v2678, %v2747
  %v2812 = vadd.f32 %v2679, %v2748
  %v2813 = vadd.f32 %v2680, %v2749
  %v2814 = vadd.f32 %v2681, %v2750
  %v2815 = vadd.f32 %v2682, %v2751
  %v2816 = vadd.f32 %v2683, %v2752
  %v2817 = vadd.f32 %v2684, %v2753
  %v2818 = vadd.f32 %v2685, %v2754
  %v2819 = vadd.f32 %v2686, %v2755
  %v2820 = vadd.f32 %v2687, %v2756
  %v2821 = vadd.f32 %v2688, %v2757
  %v2822 = vadd.f32 %v2689, %v2758
  %v2823 = vadd.f32 %v2690, %v2759
  %v2824 = vadd.f32 %v2691, %v2760
  %v2825 = vadd.f32 %v2692, %v2761
  %v2826 = vld [vmem:[%s1 + $0xd] sm:$0x1]
  %v2827 = vlaneseq
  %v2828 = vshrl.u32 %v2827, 7
  %v2829 = vsub.s32 0, %v2828
  %v2830 = vrot.slane %v2826, %v2829
  %v2831 = vmul.f32 %v2484, %v2830
  %v2832 = vmul.f32 %v2485, %v2830
  %v2833 = vmul.f32 %v2486, %v2830
  %v2834 = vmul.f32 %v2487, %v2830
  %v2835 = vmul.f32 %v2488, %v2830
  %v2836 = vmul.f32 %v2489, %v2830
  %v2837 = vmul.f32 %v2490, %v2830
  %v2838 = vmul.f32 %v2491, %v2830
  %v2839 = vmul.f32 %v2492, %v2830
  %v2840 = vmul.f32 %v2493, %v2830
  %v2841 = vmul.f32 %v2494, %v2830
  %v2842 = vmul.f32 %v2495, %v2830
  %v2843 = vmul.f32 %v2496, %v2830
  %v2844 = vmul.f32 %v2497, %v2830
  %v2845 = vmul.f32 %v2498, %v2830
  %v2846 = vmul.f32 %v2499, %v2830
  %v2847 = vmul.f32 %v2500, %v2830
  %v2848 = vmul.f32 %v2501, %v2830
  %v2849 = vmul.f32 %v2502, %v2830
  %v2850 = vmul.f32 %v2503, %v2830
  %v2851 = vmul.f32 %v2504, %v2830
  %v2852 = vmul.f32 %v2505, %v2830
  %v2853 = vmul.f32 %v2506, %v2830
  %v2854 = vmul.f32 %v2507, %v2830
  %v2855 = vmul.f32 %v2508, %v2830
  %v2856 = vmul.f32 %v2509, %v2830
  %v2857 = vmul.f32 %v2510, %v2830
  %v2858 = vmul.f32 %v2511, %v2830
  %v2859 = vmul.f32 %v2512, %v2830
  %v2860 = vmul.f32 %v2513, %v2830
  %v2861 = vmul.f32 %v2514, %v2830
  %v2862 = vmul.f32 %v2515, %v2830
  %v2863 = vmul.f32 %v2524, %v2830
  %v2864 = vmul.f32 %v2525, %v2830
  %v2865 = vmul.f32 %v2526, %v2830
  %v2866 = vmul.f32 %v2527, %v2830
  %v2867 = vmul.f32 %v2528, %v2830
  %v2868 = vmul.f32 %v2529, %v2830
  %v2869 = vmul.f32 %v2530, %v2830
  %v2870 = vmul.f32 %v2531, %v2830
  %v2871 = vmul.f32 %v2532, %v2830
  %v2872 = vmul.f32 %v2533, %v2830
  %v2873 = vmul.f32 %v2534, %v2830
  %v2874 = vmul.f32 %v2535, %v2830
  %v2875 = vmul.f32 %v2536, %v2830
  %v2876 = vmul.f32 %v2537, %v2830
  %v2877 = vmul.f32 %v2538, %v2830
  %v2878 = vmul.f32 %v2539, %v2830
  %v2879 = vmul.f32 %v2540, %v2830
  %v2880 = vmul.f32 %v2541, %v2830
  %v2881 = vmul.f32 %v2542, %v2830
  %v2882 = vmul.f32 %v2543, %v2830
  %v2883 = vmul.f32 %v2544, %v2830
  %v2884 = vmul.f32 %v2545, %v2830
  %v2885 = vmul.f32 %v2546, %v2830
  %v2886 = vmul.f32 %v2547, %v2830
  %v2887 = vmul.f32 %v2548, %v2830
  %v2888 = vmul.f32 %v2549, %v2830
  %v2889 = vmul.f32 %v2550, %v2830
  %v2890 = vmul.f32 %v2551, %v2830
  %v2891 = vmul.f32 %v2552, %v2830
  %v2892 = vmul.f32 %v2553, %v2830
  %v2893 = vmul.f32 %v2554, %v2830
  %v2894 = vmul.f32 %v2555, %v2830
  %v2895 = vadd.f32 %v2762, %v2831
  %v2896 = vadd.f32 %v2763, %v2832
  %v2897 = vadd.f32 %v2764, %v2833
  %v2898 = vadd.f32 %v2765, %v2834
  %v2899 = vadd.f32 %v2766, %v2835
  %v2900 = vadd.f32 %v2767, %v2836
  %v2901 = vadd.f32 %v2768, %v2837
  %v2902 = vadd.f32 %v2769, %v2838
  %v2903 = vadd.f32 %v2770, %v2839
  %v2904 = vadd.f32 %v2771, %v2840
  %v2905 = vadd.f32 %v2772, %v2841
  %v2906 = vadd.f32 %v2773, %v2842
  %v2907 = vadd.f32 %v2774, %v2843
  %v2908 = vadd.f32 %v2775, %v2844
  %v2909 = vadd.f32 %v2776, %v2845
  %v2910 = vadd.f32 %v2777, %v2846
  %v2911 = vadd.f32 %v2778, %v2847
  %v2912 = vadd.f32 %v2779, %v2848
  %v2913 = vadd.f32 %v2780, %v2849
  %v2914 = vadd.f32 %v2781, %v2850
  %v2915 = vadd.f32 %v2782, %v2851
  %v2916 = vadd.f32 %v2783, %v2852
  %v2917 = vadd.f32 %v2784, %v2853
  %v2918 = vadd.f32 %v2785, %v2854
  %v2919 = vadd.f32 %v2786, %v2855
  %v2920 = vadd.f32 %v2787, %v2856
  %v2921 = vadd.f32 %v2788, %v2857
  %v2922 = vadd.f32 %v2789, %v2858
  %v2923 = vadd.f32 %v2790, %v2859
  %v2924 = vadd.f32 %v2791, %v2860
  %v2925 = vadd.f32 %v2792, %v2861
  %v2926 = vadd.f32 %v2793, %v2862
  %v2927 = vadd.f32 %v2794, %v2863
  %v2928 = vadd.f32 %v2795, %v2864
  %v2929 = vadd.f32 %v2796, %v2865
  %v2930 = vadd.f32 %v2797, %v2866
  %v2931 = vadd.f32 %v2798, %v2867
  %v2932 = vadd.f32 %v2799, %v2868
  %v2933 = vadd.f32 %v2800, %v2869
  %v2934 = vadd.f32 %v2801, %v2870
  %v2935 = vadd.f32 %v2802, %v2871
  %v2936 = vadd.f32 %v2803, %v2872
  %v2937 = vadd.f32 %v2804, %v2873
  %v2938 = vadd.f32 %v2805, %v2874
  %v2939 = vadd.f32 %v2806, %v2875
  %v2940 = vadd.f32 %v2807, %v2876
  %v2941 = vadd.f32 %v2808, %v2877
  %v2942 = vadd.f32 %v2809, %v2878
  %v2943 = vadd.f32 %v2810, %v2879
  %v2944 = vadd.f32 %v2811, %v2880
  %v2945 = vadd.f32 %v2812, %v2881
  %v2946 = vadd.f32 %v2813, %v2882
  %v2947 = vadd.f32 %v2814, %v2883
  %v2948 = vadd.f32 %v2815, %v2884
  %v2949 = vadd.f32 %v2816, %v2885
  %v2950 = vadd.f32 %v2817, %v2886
  %v2951 = vadd.f32 %v2818, %v2887
  %v2952 = vadd.f32 %v2819, %v2888
  %v2953 = vadd.f32 %v2820, %v2889
  %v2954 = vadd.f32 %v2821, %v2890
  %v2955 = vadd.f32 %v2822, %v2891
  %v2956 = vadd.f32 %v2823, %v2892
  %v2957 = vadd.f32 %v2824, %v2893
  %v2958 = vadd.f32 %v2825, %v2894
  %v2959 = vld [vmem:[%s1 + $0x12] sm:$0x1]
  %v2960 = vlaneseq
  %v2961 = vshrl.u32 %v2960, 7
  %v2962 = vsub.s32 0, %v2961
  %v2963 = vrot.slane %v2959, %v2962
  %v2964 = vmul.f32 %v2486, %v2963
  %v2965 = vmul.f32 %v2487, %v2963
  %v2966 = vmul.f32 %v2488, %v2963
  %v2967 = vmul.f32 %v2489, %v2963
  %v2968 = vmul.f32 %v2490, %v2963
  %v2969 = vmul.f32 %v2491, %v2963
  %v2970 = vmul.f32 %v2492, %v2963
  %v2971 = vmul.f32 %v2493, %v2963
  %v2972 = vmul.f32 %v2494, %v2963
  %v2973 = vmul.f32 %v2495, %v2963
  %v2974 = vmul.f32 %v2496, %v2963
  %v2975 = vmul.f32 %v2497, %v2963
  %v2976 = vmul.f32 %v2498, %v2963
  %v2977 = vmul.f32 %v2499, %v2963
  %v2978 = vmul.f32 %v2500, %v2963
  %v2979 = vmul.f32 %v2501, %v2963
  %v2980 = vmul.f32 %v2502, %v2963
  %v2981 = vmul.f32 %v2503, %v2963
  %v2982 = vmul.f32 %v2504, %v2963
  %v2983 = vmul.f32 %v2505, %v2963
  %v2984 = vmul.f32 %v2506, %v2963
  %v2985 = vmul.f32 %v2507, %v2963
  %v2986 = vmul.f32 %v2508, %v2963
  %v2987 = vmul.f32 %v2509, %v2963
  %v2988 = vmul.f32 %v2510, %v2963
  %v2989 = vmul.f32 %v2511, %v2963
  %v2990 = vmul.f32 %v2512, %v2963
  %v2991 = vmul.f32 %v2513, %v2963
  %v2992 = vmul.f32 %v2514, %v2963
  %v2993 = vmul.f32 %v2515, %v2963
  %v2994 = vmul.f32 %v2516, %v2963
  %v2995 = vmul.f32 %v2517, %v2963
  %v2996 = vmul.f32 %v2526, %v2963
  %v2997 = vmul.f32 %v2527, %v2963
  %v2998 = vmul.f32 %v2528, %v2963
  %v2999 = vmul.f32 %v2529, %v2963
  %v3000 = vmul.f32 %v2530, %v2963
  %v3001 = vmul.f32 %v2531, %v2963
  %v3002 = vmul.f32 %v2532, %v2963
  %v3003 = vmul.f32 %v2533, %v2963
  %v3004 = vmul.f32 %v2534, %v2963
  %v3005 = vmul.f32 %v2535, %v2963
  %v3006 = vmul.f32 %v2536, %v2963
  %v3007 = vmul.f32 %v2537, %v2963
  %v3008 = vmul.f32 %v2538, %v2963
  %v3009 = vmul.f32 %v2539, %v2963
  %v3010 = vmul.f32 %v2540, %v2963
  %v3011 = vmul.f32 %v2541, %v2963
  %v3012 = vmul.f32 %v2542, %v2963
  %v3013 = vmul.f32 %v2543, %v2963
  %v3014 = vmul.f32 %v2544, %v2963
  %v3015 = vmul.f32 %v2545, %v2963
  %v3016 = vmul.f32 %v2546, %v2963
  %v3017 = vmul.f32 %v2547, %v2963
  %v3018 = vmul.f32 %v2548, %v2963
  %v3019 = vmul.f32 %v2549, %v2963
  %v3020 = vmul.f32 %v2550, %v2963
  %v3021 = vmul.f32 %v2551, %v2963
  %v3022 = vmul.f32 %v2552, %v2963
  %v3023 = vmul.f32 %v2553, %v2963
  %v3024 = vmul.f32 %v2554, %v2963
  %v3025 = vmul.f32 %v2555, %v2963
  %v3026 = vmul.f32 %v2556, %v2963
  %v3027 = vmul.f32 %v2557, %v2963
  %v3028 = vadd.f32 %v2895, %v2964
  %v3029 = vadd.f32 %v2896, %v2965
  %v3030 = vadd.f32 %v2897, %v2966
  %v3031 = vadd.f32 %v2898, %v2967
  %v3032 = vadd.f32 %v2899, %v2968
  %v3033 = vadd.f32 %v2900, %v2969
  %v3034 = vadd.f32 %v2901, %v2970
  %v3035 = vadd.f32 %v2902, %v2971
  %v3036 = vadd.f32 %v2903, %v2972
  %v3037 = vadd.f32 %v2904, %v2973
  %v3038 = vadd.f32 %v2905, %v2974
  %v3039 = vadd.f32 %v2906, %v2975
  %v3040 = vadd.f32 %v2907, %v2976
  %v3041 = vadd.f32 %v2908, %v2977
  %v3042 = vadd.f32 %v2909, %v2978
  %v3043 = vadd.f32 %v2910, %v2979
  %v3044 = vadd.f32 %v2911, %v2980
  %v3045 = vadd.f32 %v2912, %v2981
  %v3046 = vadd.f32 %v2913, %v2982
  %v3047 = vadd.f32 %v2914, %v2983
  %v3048 = vadd.f32 %v2915, %v2984
  %v3049 = vadd.f32 %v2916, %v2985
  %v3050 = vadd.f32 %v2917, %v2986
  %v3051 = vadd.f32 %v2918, %v2987
  %v3052 = vadd.f32 %v2919, %v2988
  %v3053 = vadd.f32 %v2920, %v2989
  %v3054 = vadd.f32 %v2921, %v2990
  %v3055 = vadd.f32 %v2922, %v2991
  %v3056 = vadd.f32 %v2923, %v2992
  %v3057 = vadd.f32 %v2924, %v2993
  %v3058 = vadd.f32 %v2925, %v2994
  %v3059 = vadd.f32 %v2926, %v2995
  %v3060 = vadd.f32 %v2927, %v2996
  %v3061 = vadd.f32 %v2928, %v2997
  %v3062 = vadd.f32 %v2929, %v2998
  %v3063 = vadd.f32 %v2930, %v2999
  %v3064 = vadd.f32 %v2931, %v3000
  %v3065 = vadd.f32 %v2932, %v3001
  %v3066 = vadd.f32 %v2933, %v3002
  %v3067 = vadd.f32 %v2934, %v3003
  %v3068 = vadd.f32 %v2935, %v3004
  %v3069 = vadd.f32 %v2936, %v3005
  %v3070 = vadd.f32 %v2937, %v3006
  %v3071 = vadd.f32 %v2938, %v3007
  %v3072 = vadd.f32 %v2939, %v3008
  %v3073 = vadd.f32 %v2940, %v3009
  %v3074 = vadd.f32 %v2941, %v3010
  %v3075 = vadd.f32 %v2942, %v3011
  %v3076 = vadd.f32 %v2943, %v3012
  %v3077 = vadd.f32 %v2944, %v3013
  %v3078 = vadd.f32 %v2945, %v3014
  %v3079 = vadd.f32 %v2946, %v3015
  %v3080 = vadd.f32 %v2947, %v3016
  %v3081 = vadd.f32 %v2948, %v3017
  %v3082 = vadd.f32 %v2949, %v3018
  %v3083 = vadd.f32 %v2950, %v3019
  %v3084 = vadd.f32 %v2951, %v3020
  %v3085 = vadd.f32 %v2952, %v3021
  %v3086 = vadd.f32 %v2953, %v3022
  %v3087 = vadd.f32 %v2954, %v3023
  %v3088 = vadd.f32 %v2955, %v3024
  %v3089 = vadd.f32 %v2956, %v3025
  %v3090 = vadd.f32 %v2957, %v3026
  %v3091 = vadd.f32 %v2958, %v3027
  %v3092 = vld [vmem:[%s1 + $0x17] sm:$0x1]
  %v3093 = vlaneseq
  %v3094 = vshrl.u32 %v3093, 7
  %v3095 = vsub.s32 0, %v3094
  %v3096 = vrot.slane %v3092, %v3095
  %v3097 = vmul.f32 %v2488, %v3096
  %v3098 = vmul.f32 %v2489, %v3096
  %v3099 = vmul.f32 %v2490, %v3096
  %v3100 = vmul.f32 %v2491, %v3096
  %v3101 = vmul.f32 %v2492, %v3096
  %v3102 = vmul.f32 %v2493, %v3096
  %v3103 = vmul.f32 %v2494, %v3096
  %v3104 = vmul.f32 %v2495, %v3096
  %v3105 = vmul.f32 %v2496, %v3096
  %v3106 = vmul.f32 %v2497, %v3096
  %v3107 = vmul.f32 %v2498, %v3096
  %v3108 = vmul.f32 %v2499, %v3096
  %v3109 = vmul.f32 %v2500, %v3096
  %v3110 = vmul.f32 %v2501, %v3096
  %v3111 = vmul.f32 %v2502, %v3096
  %v3112 = vmul.f32 %v2503, %v3096
  %v3113 = vmul.f32 %v2504, %v3096
  %v3114 = vmul.f32 %v2505, %v3096
  %v3115 = vmul.f32 %v2506, %v3096
  %v3116 = vmul.f32 %v2507, %v3096
  %v3117 = vmul.f32 %v2508, %v3096
  %v3118 = vmul.f32 %v2509, %v3096
  %v3119 = vmul.f32 %v2510, %v3096
  %v3120 = vmul.f32 %v2511, %v3096
  %v3121 = vmul.f32 %v2512, %v3096
  %v3122 = vmul.f32 %v2513, %v3096
  %v3123 = vmul.f32 %v2514, %v3096
  %v3124 = vmul.f32 %v2515, %v3096
  %v3125 = vmul.f32 %v2516, %v3096
  %v3126 = vmul.f32 %v2517, %v3096
  %v3127 = vmul.f32 %v2518, %v3096
  %v3128 = vmul.f32 %v2519, %v3096
  %v3129 = vmul.f32 %v2528, %v3096
  %v3130 = vmul.f32 %v2529, %v3096
  %v3131 = vmul.f32 %v2530, %v3096
  %v3132 = vmul.f32 %v2531, %v3096
  %v3133 = vmul.f32 %v2532, %v3096
  %v3134 = vmul.f32 %v2533, %v3096
  %v3135 = vmul.f32 %v2534, %v3096
  %v3136 = vmul.f32 %v2535, %v3096
  %v3137 = vmul.f32 %v2536, %v3096
  %v3138 = vmul.f32 %v2537, %v3096
  %v3139 = vmul.f32 %v2538, %v3096
  %v3140 = vmul.f32 %v2539, %v3096
  %v3141 = vmul.f32 %v2540, %v3096
  %v3142 = vmul.f32 %v2541, %v3096
  %v3143 = vmul.f32 %v2542, %v3096
  %v3144 = vmul.f32 %v2543, %v3096
  %v3145 = vmul.f32 %v2544, %v3096
  %v3146 = vmul.f32 %v2545, %v3096
  %v3147 = vmul.f32 %v2546, %v3096
  %v3148 = vmul.f32 %v2547, %v3096
  %v3149 = vmul.f32 %v2548, %v3096
  %v3150 = vmul.f32 %v2549, %v3096
  %v3151 = vmul.f32 %v2550, %v3096
  %v3152 = vmul.f32 %v2551, %v3096
  %v3153 = vmul.f32 %v2552, %v3096
  %v3154 = vmul.f32 %v2553, %v3096
  %v3155 = vmul.f32 %v2554, %v3096
  %v3156 = vmul.f32 %v2555, %v3096
  %v3157 = vmul.f32 %v2556, %v3096
  %v3158 = vmul.f32 %v2557, %v3096
  %v3159 = vmul.f32 %v2558, %v3096
  %v3160 = vmul.f32 %v2559, %v3096
  %v3161 = vadd.f32 %v3028, %v3097
  %v3162 = vadd.f32 %v3029, %v3098
  %v3163 = vadd.f32 %v3030, %v3099
  %v3164 = vadd.f32 %v3031, %v3100
  %v3165 = vadd.f32 %v3032, %v3101
  %v3166 = vadd.f32 %v3033, %v3102
  %v3167 = vadd.f32 %v3034, %v3103
  %v3168 = vadd.f32 %v3035, %v3104
  %v3169 = vadd.f32 %v3036, %v3105
  %v3170 = vadd.f32 %v3037, %v3106
  %v3171 = vadd.f32 %v3038, %v3107
  %v3172 = vadd.f32 %v3039, %v3108
  %v3173 = vadd.f32 %v3040, %v3109
  %v3174 = vadd.f32 %v3041, %v3110
  %v3175 = vadd.f32 %v3042, %v3111
  %v3176 = vadd.f32 %v3043, %v3112
  %v3177 = vadd.f32 %v3044, %v3113
  %v3178 = vadd.f32 %v3045, %v3114
  %v3179 = vadd.f32 %v3046, %v3115
  %v3180 = vadd.f32 %v3047, %v3116
  %v3181 = vadd.f32 %v3048, %v3117
  %v3182 = vadd.f32 %v3049, %v3118
  %v3183 = vadd.f32 %v3050, %v3119
  %v3184 = vadd.f32 %v3051, %v3120
  %v3185 = vadd.f32 %v3052, %v3121
  %v3186 = vadd.f32 %v3053, %v3122
  %v3187 = vadd.f32 %v3054, %v3123
  %v3188 = vadd.f32 %v3055, %v3124
  %v3189 = vadd.f32 %v3056, %v3125
  %v3190 = vadd.f32 %v3057, %v3126
  %v3191 = vadd.f32 %v3058, %v3127
  %v3192 = vadd.f32 %v3059, %v3128
  %v3193 = vadd.f32 %v3060, %v3129
  %v3194 = vadd.f32 %v3061, %v3130
  %v3195 = vadd.f32 %v3062, %v3131
  %v3196 = vadd.f32 %v3063, %v3132
  %v3197 = vadd.f32 %v3064, %v3133
  %v3198 = vadd.f32 %v3065, %v3134
  %v3199 = vadd.f32 %v3066, %v3135
  %v3200 = vadd.f32 %v3067, %v3136
  %v3201 = vadd.f32 %v3068, %v3137
  %v3202 = vadd.f32 %v3069, %v3138
  %v3203 = vadd.f32 %v3070, %v3139
  %v3204 = vadd.f32 %v3071, %v3140
  %v3205 = vadd.f32 %v3072, %v3141
  %v3206 = vadd.f32 %v3073, %v3142
  %v3207 = vadd.f32 %v3074, %v3143
  %v3208 = vadd.f32 %v3075, %v3144
  %v3209 = vadd.f32 %v3076, %v3145
  %v3210 = vadd.f32 %v3077, %v3146
  %v3211 = vadd.f32 %v3078, %v3147
  %v3212 = vadd.f32 %v3079, %v3148
  %v3213 = vadd.f32 %v3080, %v3149
  %v3214 = vadd.f32 %v3081, %v3150
  %v3215 = vadd.f32 %v3082, %v3151
  %v3216 = vadd.f32 %v3083, %v3152
  %v3217 = vadd.f32 %v3084, %v3153
  %v3218 = vadd.f32 %v3085, %v3154
  %v3219 = vadd.f32 %v3086, %v3155
  %v3220 = vadd.f32 %v3087, %v3156
  %v3221 = vadd.f32 %v3088, %v3157
  %v3222 = vadd.f32 %v3089, %v3158
  %v3223 = vadd.f32 %v3090, %v3159
  %v3224 = vadd.f32 %v3091, %v3160
  %v3225 = vld [vmem:[#allocation2 + $0x4] sm:$0xff]
  %v3226 = vld [vmem:[#allocation2 + $0xc] sm:$0xff]
  %v3227 = vld [vmem:[#allocation2 + $0x1c] sm:$0xff]
  %v3228 = vld [vmem:[#allocation2 + $0x24] sm:$0xff]
  %v3229 = vld [vmem:[#allocation2 + $0x34] sm:$0xff]
  %v3230 = vld [vmem:[#allocation2 + $0x3c] sm:$0xff]
  %v3231 = vld [vmem:[#allocation2 + $0x4c] sm:$0xff]
  %v3232 = vld [vmem:[#allocation2 + $0x54] sm:$0xff]
  %v3233 = vld [vmem:[#allocation2 + $0x64] sm:$0xff]
  %v3234 = vld [vmem:[#allocation2 + $0x6c] sm:$0xff]
  %v3235 = vld [vmem:[#allocation2 + $0x7c] sm:$0xff]
  %v3236 = vld [vmem:[#allocation2 + $0x84] sm:$0xff]
  %v3237 = vld [vmem:[#allocation2 + $0x94] sm:$0xff]
  %v3238 = vld [vmem:[#allocation2 + $0x9c] sm:$0xff]
  %v3239 = vld [vmem:[#allocation2 + $0xac] sm:$0xff]
  %v3240 = vld [vmem:[#allocation2 + $0xb4] sm:$0xff]
  %v3241 = vld [vmem:[#allocation2 + $0xc4] sm:$0xff]
  %v3242 = vld [vmem:[#allocation2 + $0xcc] sm:$0xff]
  %v3243 = vld [vmem:[#allocation2 + $0xdc] sm:$0xff]
  %v3244 = vld [vmem:[#allocation2 + $0xe4] sm:$0xff]
  %v3245 = vld [vmem:[#allocation2 + $0xf4] sm:$0xff]
  %v3246 = vld [vmem:[#allocation2 + $0xfc] sm:$0xff]
  %v3247 = vld [vmem:[#allocation2 + $0x10c] sm:$0xff]
  %v3248 = vld [vmem:[#allocation2 + $0x114] sm:$0xff]
  %v3249 = vld [vmem:[#allocation2 + $0x124] sm:$0xff]
  %v3250 = vld [vmem:[#allocation2 + $0x12c] sm:$0xff]
  %v3251 = vld [vmem:[#allocation2 + $0x13c] sm:$0xff]
  %v3252 = vld [vmem:[#allocation2 + $0x144] sm:$0xff]
  %v3253 = vld [vmem:[#allocation2 + $0x154] sm:$0xff]
  %v3254 = vld [vmem:[#allocation2 + $0x15c] sm:$0xff]
  %v3255 = vld [vmem:[#allocation2 + $0x16c] sm:$0xff]
  %v3256 = vld [vmem:[#allocation2 + $0x174] sm:$0xff]
  %v3257 = vld [vmem:[#allocation2 + $0x184] sm:$0xff]
  %v3258 = vld [vmem:[#allocation2 + $0x18c] sm:$0xff]
  %v3259 = vld [vmem:[#allocation2 + $0x19c] sm:$0xff]
  %v3260 = vld [vmem:[#allocation2 + $0x1a4] sm:$0xff]
  %v3261 = vld [vmem:[#allocation2 + $0x1b4] sm:$0xff]
  %v3262 = vld [vmem:[#allocation2 + $0x1bc] sm:$0xff]
  %v3263 = vld [vmem:[#allocation2 + $0x1cc] sm:$0xff]
  %v3264 = vld [vmem:[#allocation2 + $0x1d4] sm:$0xff]
  %v3265 = vld [vmem:[#allocation2 + $0x1e4] sm:$0xff]
  %v3266 = vld [vmem:[#allocation2 + $0x1ec] sm:$0xff]
  %v3267 = vld [vmem:[#allocation2 + $0x1fc] sm:$0xff]
  %v3268 = vld [vmem:[#allocation2 + $0x204] sm:$0xff]
  %v3269 = vld [vmem:[#allocation2 + $0x214] sm:$0xff]
  %v3270 = vld [vmem:[#allocation2 + $0x21c] sm:$0xff]
  %v3271 = vld [vmem:[#allocation2 + $0x22c] sm:$0xff]
  %v3272 = vld [vmem:[#allocation2 + $0x234] sm:$0xff]
  %v3273 = vld [vmem:[#allocation2 + $0x244] sm:$0xff]
  %v3274 = vld [vmem:[#allocation2 + $0x24c] sm:$0xff]
  %v3275 = vld [vmem:[#allocation2 + $0x25c] sm:$0xff]
  %v3276 = vld [vmem:[#allocation2 + $0x264] sm:$0xff]
  %v3277 = vld [vmem:[#allocation2 + $0x274] sm:$0xff]
  %v3278 = vld [vmem:[#allocation2 + $0x27c] sm:$0xff]
  %v3279 = vld [vmem:[#allocation2 + $0x28c] sm:$0xff]
  %v3280 = vld [vmem:[#allocation2 + $0x294] sm:$0xff]
  %v3281 = vld [vmem:[#allocation2 + $0x2a4] sm:$0xff]
  %v3282 = vld [vmem:[#allocation2 + $0x2ac] sm:$0xff]
  %v3283 = vld [vmem:[#allocation2 + $0x2bc] sm:$0xff]
  %v3284 = vld [vmem:[#allocation2 + $0x2c4] sm:$0xff]
  %v3285 = vld [vmem:[#allocation2 + $0x2d4] sm:$0xff]
  %v3286 = vld [vmem:[#allocation2 + $0x2dc] sm:$0xff]
  %v3287 = vld [vmem:[#allocation2 + $0x2ec] sm:$0xff]
  %v3288 = vld [vmem:[#allocation2 + $0x2f4] sm:$0xff]
  %v3289 = vld [vmem:[#allocation2 + $0x304] sm:$0xff]
  %v3290 = vld [vmem:[#allocation2 + $0x30c] sm:$0xff]
  %v3291 = vld [vmem:[#allocation2 + $0x31c] sm:$0xff]
  %v3292 = vld [vmem:[#allocation2 + $0x324] sm:$0xff]
  %v3293 = vld [vmem:[#allocation2 + $0x334] sm:$0xff]
  %v3294 = vld [vmem:[#allocation2 + $0x33c] sm:$0xff]
  %v3295 = vld [vmem:[#allocation2 + $0x34c] sm:$0xff]
  %v3296 = vld [vmem:[#allocation2 + $0x354] sm:$0xff]
  %v3297 = vld [vmem:[#allocation2 + $0x364] sm:$0xff]
  %v3298 = vld [vmem:[#allocation2 + $0x36c] sm:$0xff]
  %v3299 = vld [vmem:[#allocation2 + $0x37c] sm:$0xff]
  %v3300 = vld [vmem:[#allocation2 + $0x384] sm:$0xff]
  %v3301 = vld [vmem:[#allocation2 + $0x394] sm:$0xff]
  %v3302 = vld [vmem:[#allocation2 + $0x39c] sm:$0xff]
  %v3303 = vld [vmem:[#allocation2 + $0x3ac] sm:$0xff]
  %v3304 = vld [vmem:[#allocation2 + $0x3b4] sm:$0xff]
  %v3305 = vld [vmem:[%s1 + $0x4] sm:$0x1]
  %v3306 = vlaneseq
  %v3307 = vshrl.u32 %v3306, 7
  %v3308 = vsub.s32 0, %v3307
  %v3309 = vrot.slane %v3305, %v3308
  %v3310 = vmul.f32 %v3225, %v3309
  %v3311 = vmul.f32 %v3226, %v3309
  %v3312 = vmul.f32 %v3227, %v3309
  %v3313 = vmul.f32 %v3228, %v3309
  %v3314 = vmul.f32 %v3229, %v3309
  %v3315 = vmul.f32 %v3230, %v3309
  %v3316 = vmul.f32 %v3231, %v3309
  %v3317 = vmul.f32 %v3232, %v3309
  %v3318 = vmul.f32 %v3233, %v3309
  %v3319 = vmul.f32 %v3234, %v3309
  %v3320 = vmul.f32 %v3235, %v3309
  %v3321 = vmul.f32 %v3236, %v3309
  %v3322 = vmul.f32 %v3237, %v3309
  %v3323 = vmul.f32 %v3238, %v3309
  %v3324 = vmul.f32 %v3239, %v3309
  %v3325 = vmul.f32 %v3240, %v3309
  %v3326 = vmul.f32 %v3241, %v3309
  %v3327 = vmul.f32 %v3242, %v3309
  %v3328 = vmul.f32 %v3243, %v3309
  %v3329 = vmul.f32 %v3244, %v3309
  %v3330 = vmul.f32 %v3245, %v3309
  %v3331 = vmul.f32 %v3246, %v3309
  %v3332 = vmul.f32 %v3247, %v3309
  %v3333 = vmul.f32 %v3248, %v3309
  %v3334 = vmul.f32 %v3249, %v3309
  %v3335 = vmul.f32 %v3250, %v3309
  %v3336 = vmul.f32 %v3251, %v3309
  %v3337 = vmul.f32 %v3252, %v3309
  %v3338 = vmul.f32 %v3253, %v3309
  %v3339 = vmul.f32 %v3254, %v3309
  %v3340 = vmul.f32 %v3255, %v3309
  %v3341 = vmul.f32 %v3256, %v3309
  %v3342 = vmul.f32 %v3265, %v3309
  %v3343 = vmul.f32 %v3266, %v3309
  %v3344 = vmul.f32 %v3267, %v3309
  %v3345 = vmul.f32 %v3268, %v3309
  %v3346 = vmul.f32 %v3269, %v3309
  %v3347 = vmul.f32 %v3270, %v3309
  %v3348 = vmul.f32 %v3271, %v3309
  %v3349 = vmul.f32 %v3272, %v3309
  %v3350 = vmul.f32 %v3273, %v3309
  %v3351 = vmul.f32 %v3274, %v3309
  %v3352 = vmul.f32 %v3275, %v3309
  %v3353 = vmul.f32 %v3276, %v3309
  %v3354 = vmul.f32 %v3277, %v3309
  %v3355 = vmul.f32 %v3278, %v3309
  %v3356 = vmul.f32 %v3279, %v3309
  %v3357 = vmul.f32 %v3280, %v3309
  %v3358 = vmul.f32 %v3281, %v3309
  %v3359 = vmul.f32 %v3282, %v3309
  %v3360 = vmul.f32 %v3283, %v3309
  %v3361 = vmul.f32 %v3284, %v3309
  %v3362 = vmul.f32 %v3285, %v3309
  %v3363 = vmul.f32 %v3286, %v3309
  %v3364 = vmul.f32 %v3287, %v3309
  %v3365 = vmul.f32 %v3288, %v3309
  %v3366 = vmul.f32 %v3289, %v3309
  %v3367 = vmul.f32 %v3290, %v3309
  %v3368 = vmul.f32 %v3291, %v3309
  %v3369 = vmul.f32 %v3292, %v3309
  %v3370 = vmul.f32 %v3293, %v3309
  %v3371 = vmul.f32 %v3294, %v3309
  %v3372 = vmul.f32 %v3295, %v3309
  %v3373 = vmul.f32 %v3296, %v3309
  %v3374 = vadd.f32 %v3161, %v3310
  %v3375 = vadd.f32 %v3162, %v3311
  %v3376 = vadd.f32 %v3163, %v3312
  %v3377 = vadd.f32 %v3164, %v3313
  %v3378 = vadd.f32 %v3165, %v3314
  %v3379 = vadd.f32 %v3166, %v3315
  %v3380 = vadd.f32 %v3167, %v3316
  %v3381 = vadd.f32 %v3168, %v3317
  %v3382 = vadd.f32 %v3169, %v3318
  %v3383 = vadd.f32 %v3170, %v3319
  %v3384 = vadd.f32 %v3171, %v3320
  %v3385 = vadd.f32 %v3172, %v3321
  %v3386 = vadd.f32 %v3173, %v3322
  %v3387 = vadd.f32 %v3174, %v3323
  %v3388 = vadd.f32 %v3175, %v3324
  %v3389 = vadd.f32 %v3176, %v3325
  %v3390 = vadd.f32 %v3177, %v3326
  %v3391 = vadd.f32 %v3178, %v3327
  %v3392 = vadd.f32 %v3179, %v3328
  %v3393 = vadd.f32 %v3180, %v3329
  %v3394 = vadd.f32 %v3181, %v3330
  %v3395 = vadd.f32 %v3182, %v3331
  %v3396 = vadd.f32 %v3183, %v3332
  %v3397 = vadd.f32 %v3184, %v3333
  %v3398 = vadd.f32 %v3185, %v3334
  %v3399 = vadd.f32 %v3186, %v3335
  %v3400 = vadd.f32 %v3187, %v3336
  %v3401 = vadd.f32 %v3188, %v3337
  %v3402 = vadd.f32 %v3189, %v3338
  %v3403 = vadd.f32 %v3190, %v3339
  %v3404 = vadd.f32 %v3191, %v3340
  %v3405 = vadd.f32 %v3192, %v3341
  %v3406 = vadd.f32 %v3193, %v3342
  %v3407 = vadd.f32 %v3194, %v3343
  %v3408 = vadd.f32 %v3195, %v3344
  %v3409 = vadd.f32 %v3196, %v3345
  %v3410 = vadd.f32 %v3197, %v3346
  %v3411 = vadd.f32 %v3198, %v3347
  %v3412 = vadd.f32 %v3199, %v3348
  %v3413 = vadd.f32 %v3200, %v3349
  %v3414 = vadd.f32 %v3201, %v3350
  %v3415 = vadd.f32 %v3202, %v3351
  %v3416 = vadd.f32 %v3203, %v3352
  %v3417 = vadd.f32 %v3204, %v3353
  %v3418 = vadd.f32 %v3205, %v3354
  %v3419 = vadd.f32 %v3206, %v3355
  %v3420 = vadd.f32 %v3207, %v3356
  %v3421 = vadd.f32 %v3208, %v3357
  %v3422 = vadd.f32 %v3209, %v3358
  %v3423 = vadd.f32 %v3210, %v3359
  %v3424 = vadd.f32 %v3211, %v3360
  %v3425 = vadd.f32 %v3212, %v3361
  %v3426 = vadd.f32 %v3213, %v3362
  %v3427 = vadd.f32 %v3214, %v3363
  %v3428 = vadd.f32 %v3215, %v3364
  %v3429 = vadd.f32 %v3216, %v3365
  %v3430 = vadd.f32 %v3217, %v3366
  %v3431 = vadd.f32 %v3218, %v3367
  %v3432 = vadd.f32 %v3219, %v3368
  %v3433 = vadd.f32 %v3220, %v3369
  %v3434 = vadd.f32 %v3221, %v3370
  %v3435 = vadd.f32 %v3222, %v3371
  %v3436 = vadd.f32 %v3223, %v3372
  %v3437 = vadd.f32 %v3224, %v3373
  %v3438 = vld [vmem:[%s1 + $0x9] sm:$0x1]
  %v3439 = vlaneseq
  %v3440 = vshrl.u32 %v3439, 7
  %v3441 = vsub.s32 0, %v3440
  %v3442 = vrot.slane %v3438, %v3441
  %v3443 = vmul.f32 %v3227, %v3442
  %v3444 = vmul.f32 %v3228, %v3442
  %v3445 = vmul.f32 %v3229, %v3442
  %v3446 = vmul.f32 %v3230, %v3442
  %v3447 = vmul.f32 %v3231, %v3442
  %v3448 = vmul.f32 %v3232, %v3442
  %v3449 = vmul.f32 %v3233, %v3442
  %v3450 = vmul.f32 %v3234, %v3442
  %v3451 = vmul.f32 %v3235, %v3442
  %v3452 = vmul.f32 %v3236, %v3442
  %v3453 = vmul.f32 %v3237, %v3442
  %v3454 = vmul.f32 %v3238, %v3442
  %v3455 = vmul.f32 %v3239, %v3442
  %v3456 = vmul.f32 %v3240, %v3442
  %v3457 = vmul.f32 %v3241, %v3442
  %v3458 = vmul.f32 %v3242, %v3442
  %v3459 = vmul.f32 %v3243, %v3442
  %v3460 = vmul.f32 %v3244, %v3442
  %v3461 = vmul.f32 %v3245, %v3442
  %v3462 = vmul.f32 %v3246, %v3442
  %v3463 = vmul.f32 %v3247, %v3442
  %v3464 = vmul.f32 %v3248, %v3442
  %v3465 = vmul.f32 %v3249, %v3442
  %v3466 = vmul.f32 %v3250, %v3442
  %v3467 = vmul.f32 %v3251, %v3442
  %v3468 = vmul.f32 %v3252, %v3442
  %v3469 = vmul.f32 %v3253, %v3442
  %v3470 = vmul.f32 %v3254, %v3442
  %v3471 = vmul.f32 %v3255, %v3442
  %v3472 = vmul.f32 %v3256, %v3442
  %v3473 = vmul.f32 %v3257, %v3442
  %v3474 = vmul.f32 %v3258, %v3442
  %v3475 = vmul.f32 %v3267, %v3442
  %v3476 = vmul.f32 %v3268, %v3442
  %v3477 = vmul.f32 %v3269, %v3442
  %v3478 = vmul.f32 %v3270, %v3442
  %v3479 = vmul.f32 %v3271, %v3442
  %v3480 = vmul.f32 %v3272, %v3442
  %v3481 = vmul.f32 %v3273, %v3442
  %v3482 = vmul.f32 %v3274, %v3442
  %v3483 = vmul.f32 %v3275, %v3442
  %v3484 = vmul.f32 %v3276, %v3442
  %v3485 = vmul.f32 %v3277, %v3442
  %v3486 = vmul.f32 %v3278, %v3442
  %v3487 = vmul.f32 %v3279, %v3442
  %v3488 = vmul.f32 %v3280, %v3442
  %v3489 = vmul.f32 %v3281, %v3442
  %v3490 = vmul.f32 %v3282, %v3442
  %v3491 = vmul.f32 %v3283, %v3442
  %v3492 = vmul.f32 %v3284, %v3442
  %v3493 = vmul.f32 %v3285, %v3442
  %v3494 = vmul.f32 %v3286, %v3442
  %v3495 = vmul.f32 %v3287, %v3442
  %v3496 = vmul.f32 %v3288, %v3442
  %v3497 = vmul.f32 %v3289, %v3442
  %v3498 = vmul.f32 %v3290, %v3442
  %v3499 = vmul.f32 %v3291, %v3442
  %v3500 = vmul.f32 %v3292, %v3442
  %v3501 = vmul.f32 %v3293, %v3442
  %v3502 = vmul.f32 %v3294, %v3442
  %v3503 = vmul.f32 %v3295, %v3442
  %v3504 = vmul.f32 %v3296, %v3442
  %v3505 = vmul.f32 %v3297, %v3442
  %v3506 = vmul.f32 %v3298, %v3442
  %v3507 = vadd.f32 %v3374, %v3443
  %v3508 = vadd.f32 %v3375, %v3444
  %v3509 = vadd.f32 %v3376, %v3445
  %v3510 = vadd.f32 %v3377, %v3446
  %v3511 = vadd.f32 %v3378, %v3447
  %v3512 = vadd.f32 %v3379, %v3448
  %v3513 = vadd.f32 %v3380, %v3449
  %v3514 = vadd.f32 %v3381, %v3450
  %v3515 = vadd.f32 %v3382, %v3451
  %v3516 = vadd.f32 %v3383, %v3452
  %v3517 = vadd.f32 %v3384, %v3453
  %v3518 = vadd.f32 %v3385, %v3454
  %v3519 = vadd.f32 %v3386, %v3455
  %v3520 = vadd.f32 %v3387, %v3456
  %v3521 = vadd.f32 %v3388, %v3457
  %v3522 = vadd.f32 %v3389, %v3458
  %v3523 = vadd.f32 %v3390, %v3459
  %v3524 = vadd.f32 %v3391, %v3460
  %v3525 = vadd.f32 %v3392, %v3461
  %v3526 = vadd.f32 %v3393, %v3462
  %v3527 = vadd.f32 %v3394, %v3463
  %v3528 = vadd.f32 %v3395, %v3464
  %v3529 = vadd.f32 %v3396, %v3465
  %v3530 = vadd.f32 %v3397, %v3466
  %v3531 = vadd.f32 %v3398, %v3467
  %v3532 = vadd.f32 %v3399, %v3468
  %v3533 = vadd.f32 %v3400, %v3469
  %v3534 = vadd.f32 %v3401, %v3470
  %v3535 = vadd.f32 %v3402, %v3471
  %v3536 = vadd.f32 %v3403, %v3472
  %v3537 = vadd.f32 %v3404, %v3473
  %v3538 = vadd.f32 %v3405, %v3474
  %v3539 = vadd.f32 %v3406, %v3475
  %v3540 = vadd.f32 %v3407, %v3476
  %v3541 = vadd.f32 %v3408, %v3477
  %v3542 = vadd.f32 %v3409, %v3478
  %v3543 = vadd.f32 %v3410, %v3479
  %v3544 = vadd.f32 %v3411, %v3480
  %v3545 = vadd.f32 %v3412, %v3481
  %v3546 = vadd.f32 %v3413, %v3482
  %v3547 = vadd.f32 %v3414, %v3483
  %v3548 = vadd.f32 %v3415, %v3484
  %v3549 = vadd.f32 %v3416, %v3485
  %v3550 = vadd.f32 %v3417, %v3486
  %v3551 = vadd.f32 %v3418, %v3487
  %v3552 = vadd.f32 %v3419, %v3488
  %v3553 = vadd.f32 %v3420, %v3489
  %v3554 = vadd.f32 %v3421, %v3490
  %v3555 = vadd.f32 %v3422, %v3491
  %v3556 = vadd.f32 %v3423, %v3492
  %v3557 = vadd.f32 %v3424, %v3493
  %v3558 = vadd.f32 %v3425, %v3494
  %v3559 = vadd.f32 %v3426, %v3495
  %v3560 = vadd.f32 %v3427, %v3496
  %v3561 = vadd.f32 %v3428, %v3497
  %v3562 = vadd.f32 %v3429, %v3498
  %v3563 = vadd.f32 %v3430, %v3499
  %v3564 = vadd.f32 %v3431, %v3500
  %v3565 = vadd.f32 %v3432, %v3501
  %v3566 = vadd.f32 %v3433, %v3502
  %v3567 = vadd.f32 %v3434, %v3503
  %v3568 = vadd.f32 %v3435, %v3504
  %v3569 = vadd.f32 %v3436, %v3505
  %v3570 = vadd.f32 %v3437, %v3506
  %v3571 = vld [vmem:[%s1 + $0xe] sm:$0x1]
  %v3572 = vlaneseq
  %v3573 = vshrl.u32 %v3572, 7
  %v3574 = vsub.s32 0, %v3573
  %v3575 = vrot.slane %v3571, %v3574
  %v3576 = vmul.f32 %v3229, %v3575
  %v3577 = vmul.f32 %v3230, %v3575
  %v3578 = vmul.f32 %v3231, %v3575
  %v3579 = vmul.f32 %v3232, %v3575
  %v3580 = vmul.f32 %v3233, %v3575
  %v3581 = vmul.f32 %v3234, %v3575
  %v3582 = vmul.f32 %v3235, %v3575
  %v3583 = vmul.f32 %v3236, %v3575
  %v3584 = vmul.f32 %v3237, %v3575
  %v3585 = vmul.f32 %v3238, %v3575
  %v3586 = vmul.f32 %v3239, %v3575
  %v3587 = vmul.f32 %v3240, %v3575
  %v3588 = vmul.f32 %v3241, %v3575
  %v3589 = vmul.f32 %v3242, %v3575
  %v3590 = vmul.f32 %v3243, %v3575
  %v3591 = vmul.f32 %v3244, %v3575
  %v3592 = vmul.f32 %v3245, %v3575
  %v3593 = vmul.f32 %v3246, %v3575
  %v3594 = vmul.f32 %v3247, %v3575
  %v3595 = vmul.f32 %v3248, %v3575
  %v3596 = vmul.f32 %v3249, %v3575
  %v3597 = vmul.f32 %v3250, %v3575
  %v3598 = vmul.f32 %v3251, %v3575
  %v3599 = vmul.f32 %v3252, %v3575
  %v3600 = vmul.f32 %v3253, %v3575
  %v3601 = vmul.f32 %v3254, %v3575
  %v3602 = vmul.f32 %v3255, %v3575
  %v3603 = vmul.f32 %v3256, %v3575
  %v3604 = vmul.f32 %v3257, %v3575
  %v3605 = vmul.f32 %v3258, %v3575
  %v3606 = vmul.f32 %v3259, %v3575
  %v3607 = vmul.f32 %v3260, %v3575
  %v3608 = vmul.f32 %v3269, %v3575
  %v3609 = vmul.f32 %v3270, %v3575
  %v3610 = vmul.f32 %v3271, %v3575
  %v3611 = vmul.f32 %v3272, %v3575
  %v3612 = vmul.f32 %v3273, %v3575
  %v3613 = vmul.f32 %v3274, %v3575
  %v3614 = vmul.f32 %v3275, %v3575
  %v3615 = vmul.f32 %v3276, %v3575
  %v3616 = vmul.f32 %v3277, %v3575
  %v3617 = vmul.f32 %v3278, %v3575
  %v3618 = vmul.f32 %v3279, %v3575
  %v3619 = vmul.f32 %v3280, %v3575
  %v3620 = vmul.f32 %v3281, %v3575
  %v3621 = vmul.f32 %v3282, %v3575
  %v3622 = vmul.f32 %v3283, %v3575
  %v3623 = vmul.f32 %v3284, %v3575
  %v3624 = vmul.f32 %v3285, %v3575
  %v3625 = vmul.f32 %v3286, %v3575
  %v3626 = vmul.f32 %v3287, %v3575
  %v3627 = vmul.f32 %v3288, %v3575
  %v3628 = vmul.f32 %v3289, %v3575
  %v3629 = vmul.f32 %v3290, %v3575
  %v3630 = vmul.f32 %v3291, %v3575
  %v3631 = vmul.f32 %v3292, %v3575
  %v3632 = vmul.f32 %v3293, %v3575
  %v3633 = vmul.f32 %v3294, %v3575
  %v3634 = vmul.f32 %v3295, %v3575
  %v3635 = vmul.f32 %v3296, %v3575
  %v3636 = vmul.f32 %v3297, %v3575
  %v3637 = vmul.f32 %v3298, %v3575
  %v3638 = vmul.f32 %v3299, %v3575
  %v3639 = vmul.f32 %v3300, %v3575
  %v3640 = vadd.f32 %v3507, %v3576
  %v3641 = vadd.f32 %v3508, %v3577
  %v3642 = vadd.f32 %v3509, %v3578
  %v3643 = vadd.f32 %v3510, %v3579
  %v3644 = vadd.f32 %v3511, %v3580
  %v3645 = vadd.f32 %v3512, %v3581
  %v3646 = vadd.f32 %v3513, %v3582
  %v3647 = vadd.f32 %v3514, %v3583
  %v3648 = vadd.f32 %v3515, %v3584
  %v3649 = vadd.f32 %v3516, %v3585
  %v3650 = vadd.f32 %v3517, %v3586
  %v3651 = vadd.f32 %v3518, %v3587
  %v3652 = vadd.f32 %v3519, %v3588
  %v3653 = vadd.f32 %v3520, %v3589
  %v3654 = vadd.f32 %v3521, %v3590
  %v3655 = vadd.f32 %v3522, %v3591
  %v3656 = vadd.f32 %v3523, %v3592
  %v3657 = vadd.f32 %v3524, %v3593
  %v3658 = vadd.f32 %v3525, %v3594
  %v3659 = vadd.f32 %v3526, %v3595
  %v3660 = vadd.f32 %v3527, %v3596
  %v3661 = vadd.f32 %v3528, %v3597
  %v3662 = vadd.f32 %v3529, %v3598
  %v3663 = vadd.f32 %v3530, %v3599
  %v3664 = vadd.f32 %v3531, %v3600
  %v3665 = vadd.f32 %v3532, %v3601
  %v3666 = vadd.f32 %v3533, %v3602
  %v3667 = vadd.f32 %v3534, %v3603
  %v3668 = vadd.f32 %v3535, %v3604
  %v3669 = vadd.f32 %v3536, %v3605
  %v3670 = vadd.f32 %v3537, %v3606
  %v3671 = vadd.f32 %v3538, %v3607
  %v3672 = vadd.f32 %v3539, %v3608
  %v3673 = vadd.f32 %v3540, %v3609
  %v3674 = vadd.f32 %v3541, %v3610
  %v3675 = vadd.f32 %v3542, %v3611
  %v3676 = vadd.f32 %v3543, %v3612
  %v3677 = vadd.f32 %v3544, %v3613
  %v3678 = vadd.f32 %v3545, %v3614
  %v3679 = vadd.f32 %v3546, %v3615
  %v3680 = vadd.f32 %v3547, %v3616
  %v3681 = vadd.f32 %v3548, %v3617
  %v3682 = vadd.f32 %v3549, %v3618
  %v3683 = vadd.f32 %v3550, %v3619
  %v3684 = vadd.f32 %v3551, %v3620
  %v3685 = vadd.f32 %v3552, %v3621
  %v3686 = vadd.f32 %v3553, %v3622
  %v3687 = vadd.f32 %v3554, %v3623
  %v3688 = vadd.f32 %v3555, %v3624
  %v3689 = vadd.f32 %v3556, %v3625
  %v3690 = vadd.f32 %v3557, %v3626
  %v3691 = vadd.f32 %v3558, %v3627
  %v3692 = vadd.f32 %v3559, %v3628
  %v3693 = vadd.f32 %v3560, %v3629
  %v3694 = vadd.f32 %v3561, %v3630
  %v3695 = vadd.f32 %v3562, %v3631
  %v3696 = vadd.f32 %v3563, %v3632
  %v3697 = vadd.f32 %v3564, %v3633
  %v3698 = vadd.f32 %v3565, %v3634
  %v3699 = vadd.f32 %v3566, %v3635
  %v3700 = vadd.f32 %v3567, %v3636
  %v3701 = vadd.f32 %v3568, %v3637
  %v3702 = vadd.f32 %v3569, %v3638
  %v3703 = vadd.f32 %v3570, %v3639
  %v3704 = vld [vmem:[%s1 + $0x13] sm:$0x1]
  %v3705 = vlaneseq
  %v3706 = vshrl.u32 %v3705, 7
  %v3707 = vsub.s32 0, %v3706
  %v3708 = vrot.slane %v3704, %v3707
  %v3709 = vmul.f32 %v3231, %v3708
  %v3710 = vmul.f32 %v3232, %v3708
  %v3711 = vmul.f32 %v3233, %v3708
  %v3712 = vmul.f32 %v3234, %v3708
  %v3713 = vmul.f32 %v3235, %v3708
  %v3714 = vmul.f32 %v3236, %v3708
  %v3715 = vmul.f32 %v3237, %v3708
  %v3716 = vmul.f32 %v3238, %v3708
  %v3717 = vmul.f32 %v3239, %v3708
  %v3718 = vmul.f32 %v3240, %v3708
  %v3719 = vmul.f32 %v3241, %v3708
  %v3720 = vmul.f32 %v3242, %v3708
  %v3721 = vmul.f32 %v3243, %v3708
  %v3722 = vmul.f32 %v3244, %v3708
  %v3723 = vmul.f32 %v3245, %v3708
  %v3724 = vmul.f32 %v3246, %v3708
  %v3725 = vmul.f32 %v3247, %v3708
  %v3726 = vmul.f32 %v3248, %v3708
  %v3727 = vmul.f32 %v3249, %v3708
  %v3728 = vmul.f32 %v3250, %v3708
  %v3729 = vmul.f32 %v3251, %v3708
  %v3730 = vmul.f32 %v3252, %v3708
  %v3731 = vmul.f32 %v3253, %v3708
  %v3732 = vmul.f32 %v3254, %v3708
  %v3733 = vmul.f32 %v3255, %v3708
  %v3734 = vmul.f32 %v3256, %v3708
  %v3735 = vmul.f32 %v3257, %v3708
  %v3736 = vmul.f32 %v3258, %v3708
  %v3737 = vmul.f32 %v3259, %v3708
  %v3738 = vmul.f32 %v3260, %v3708
  %v3739 = vmul.f32 %v3261, %v3708
  %v3740 = vmul.f32 %v3262, %v3708
  %v3741 = vmul.f32 %v3271, %v3708
  %v3742 = vmul.f32 %v3272, %v3708
  %v3743 = vmul.f32 %v3273, %v3708
  %v3744 = vmul.f32 %v3274, %v3708
  %v3745 = vmul.f32 %v3275, %v3708
  %v3746 = vmul.f32 %v3276, %v3708
  %v3747 = vmul.f32 %v3277, %v3708
  %v3748 = vmul.f32 %v3278, %v3708
  %v3749 = vmul.f32 %v3279, %v3708
  %v3750 = vmul.f32 %v3280, %v3708
  %v3751 = vmul.f32 %v3281, %v3708
  %v3752 = vmul.f32 %v3282, %v3708
  %v3753 = vmul.f32 %v3283, %v3708
  %v3754 = vmul.f32 %v3284, %v3708
  %v3755 = vmul.f32 %v3285, %v3708
  %v3756 = vmul.f32 %v3286, %v3708
  %v3757 = vmul.f32 %v3287, %v3708
  %v3758 = vmul.f32 %v3288, %v3708
  %v3759 = vmul.f32 %v3289, %v3708
  %v3760 = vmul.f32 %v3290, %v3708
  %v3761 = vmul.f32 %v3291, %v3708
  %v3762 = vmul.f32 %v3292, %v3708
  %v3763 = vmul.f32 %v3293, %v3708
  %v3764 = vmul.f32 %v3294, %v3708
  %v3765 = vmul.f32 %v3295, %v3708
  %v3766 = vmul.f32 %v3296, %v3708
  %v3767 = vmul.f32 %v3297, %v3708
  %v3768 = vmul.f32 %v3298, %v3708
  %v3769 = vmul.f32 %v3299, %v3708
  %v3770 = vmul.f32 %v3300, %v3708
  %v3771 = vmul.f32 %v3301, %v3708
  %v3772 = vmul.f32 %v3302, %v3708
  %v3773 = vadd.f32 %v3640, %v3709
  %v3774 = vadd.f32 %v3641, %v3710
  %v3775 = vadd.f32 %v3642, %v3711
  %v3776 = vadd.f32 %v3643, %v3712
  %v3777 = vadd.f32 %v3644, %v3713
  %v3778 = vadd.f32 %v3645, %v3714
  %v3779 = vadd.f32 %v3646, %v3715
  %v3780 = vadd.f32 %v3647, %v3716
  %v3781 = vadd.f32 %v3648, %v3717
  %v3782 = vadd.f32 %v3649, %v3718
  %v3783 = vadd.f32 %v3650, %v3719
  %v3784 = vadd.f32 %v3651, %v3720
  %v3785 = vadd.f32 %v3652, %v3721
  %v3786 = vadd.f32 %v3653, %v3722
  %v3787 = vadd.f32 %v3654, %v3723
  %v3788 = vadd.f32 %v3655, %v3724
  %v3789 = vadd.f32 %v3656, %v3725
  %v3790 = vadd.f32 %v3657, %v3726
  %v3791 = vadd.f32 %v3658, %v3727
  %v3792 = vadd.f32 %v3659, %v3728
  %v3793 = vadd.f32 %v3660, %v3729
  %v3794 = vadd.f32 %v3661, %v3730
  %v3795 = vadd.f32 %v3662, %v3731
  %v3796 = vadd.f32 %v3663, %v3732
  %v3797 = vadd.f32 %v3664, %v3733
  %v3798 = vadd.f32 %v3665, %v3734
  %v3799 = vadd.f32 %v3666, %v3735
  %v3800 = vadd.f32 %v3667, %v3736
  %v3801 = vadd.f32 %v3668, %v3737
  %v3802 = vadd.f32 %v3669, %v3738
  %v3803 = vadd.f32 %v3670, %v3739
  %v3804 = vadd.f32 %v3671, %v3740
  %v3805 = vadd.f32 %v3672, %v3741
  %v3806 = vadd.f32 %v3673, %v3742
  %v3807 = vadd.f32 %v3674, %v3743
  %v3808 = vadd.f32 %v3675, %v3744
  %v3809 = vadd.f32 %v3676, %v3745
  %v3810 = vadd.f32 %v3677, %v3746
  %v3811 = vadd.f32 %v3678, %v3747
  %v3812 = vadd.f32 %v3679, %v3748
  %v3813 = vadd.f32 %v3680, %v3749
  %v3814 = vadd.f32 %v3681, %v3750
  %v3815 = vadd.f32 %v3682, %v3751
  %v3816 = vadd.f32 %v3683, %v3752
  %v3817 = vadd.f32 %v3684, %v3753
  %v3818 = vadd.f32 %v3685, %v3754
  %v3819 = vadd.f32 %v3686, %v3755
  %v3820 = vadd.f32 %v3687, %v3756
  %v3821 = vadd.f32 %v3688, %v3757
  %v3822 = vadd.f32 %v3689, %v3758
  %v3823 = vadd.f32 %v3690, %v3759
  %v3824 = vadd.f32 %v3691, %v3760
  %v3825 = vadd.f32 %v3692, %v3761
  %v3826 = vadd.f32 %v3693, %v3762
  %v3827 = vadd.f32 %v3694, %v3763
  %v3828 = vadd.f32 %v3695, %v3764
  %v3829 = vadd.f32 %v3696, %v3765
  %v3830 = vadd.f32 %v3697, %v3766
  %v3831 = vadd.f32 %v3698, %v3767
  %v3832 = vadd.f32 %v3699, %v3768
  %v3833 = vadd.f32 %v3700, %v3769
  %v3834 = vadd.f32 %v3701, %v3770
  %v3835 = vadd.f32 %v3702, %v3771
  %v3836 = vadd.f32 %v3703, %v3772
  %v3837 = vld [vmem:[%s1 + $0x18] sm:$0x1]
  %v3838 = vlaneseq
  %v3839 = vshrl.u32 %v3838, 7
  %v3840 = vsub.s32 0, %v3839
  %v3841 = vrot.slane %v3837, %v3840
  %v3842 = vmul.f32 %v3233, %v3841
  %v3843 = vmul.f32 %v3234, %v3841
  %v3844 = vmul.f32 %v3235, %v3841
  %v3845 = vmul.f32 %v3236, %v3841
  %v3846 = vmul.f32 %v3237, %v3841
  %v3847 = vmul.f32 %v3238, %v3841
  %v3848 = vmul.f32 %v3239, %v3841
  %v3849 = vmul.f32 %v3240, %v3841
  %v3850 = vmul.f32 %v3241, %v3841
  %v3851 = vmul.f32 %v3242, %v3841
  %v3852 = vmul.f32 %v3243, %v3841
  %v3853 = vmul.f32 %v3244, %v3841
  %v3854 = vmul.f32 %v3245, %v3841
  %v3855 = vmul.f32 %v3246, %v3841
  %v3856 = vmul.f32 %v3247, %v3841
  %v3857 = vmul.f32 %v3248, %v3841
  %v3858 = vmul.f32 %v3249, %v3841
  %v3859 = vmul.f32 %v3250, %v3841
  %v3860 = vmul.f32 %v3251, %v3841
  %v3861 = vmul.f32 %v3252, %v3841
  %v3862 = vmul.f32 %v3253, %v3841
  %v3863 = vmul.f32 %v3254, %v3841
  %v3864 = vmul.f32 %v3255, %v3841
  %v3865 = vmul.f32 %v3256, %v3841
  %v3866 = vmul.f32 %v3257, %v3841
  %v3867 = vmul.f32 %v3258, %v3841
  %v3868 = vmul.f32 %v3259, %v3841
  %v3869 = vmul.f32 %v3260, %v3841
  %v3870 = vmul.f32 %v3261, %v3841
  %v3871 = vmul.f32 %v3262, %v3841
  %v3872 = vmul.f32 %v3263, %v3841
  %v3873 = vmul.f32 %v3264, %v3841
  %v3874 = vmul.f32 %v3273, %v3841
  %v3875 = vmul.f32 %v3274, %v3841
  %v3876 = vmul.f32 %v3275, %v3841
  %v3877 = vmul.f32 %v3276, %v3841
  %v3878 = vmul.f32 %v3277, %v3841
  %v3879 = vmul.f32 %v3278, %v3841
  %v3880 = vmul.f32 %v3279, %v3841
  %v3881 = vmul.f32 %v3280, %v3841
  %v3882 = vmul.f32 %v3281, %v3841
  %v3883 = vmul.f32 %v3282, %v3841
  %v3884 = vmul.f32 %v3283, %v3841
  %v3885 = vmul.f32 %v3284, %v3841
  %v3886 = vmul.f32 %v3285, %v3841
  %v3887 = vmul.f32 %v3286, %v3841
  %v3888 = vmul.f32 %v3287, %v3841
  %v3889 = vmul.f32 %v3288, %v3841
  %v3890 = vmul.f32 %v3289, %v3841
  %v3891 = vmul.f32 %v3290, %v3841
  %v3892 = vmul.f32 %v3291, %v3841
  %v3893 = vmul.f32 %v3292, %v3841
  %v3894 = vmul.f32 %v3293, %v3841
  %v3895 = vmul.f32 %v3294, %v3841
  %v3896 = vmul.f32 %v3295, %v3841
  %v3897 = vmul.f32 %v3296, %v3841
  %v3898 = vmul.f32 %v3297, %v3841
  %v3899 = vmul.f32 %v3298, %v3841
  %v3900 = vmul.f32 %v3299, %v3841
  %v3901 = vmul.f32 %v3300, %v3841
  %v3902 = vmul.f32 %v3301, %v3841
  %v3903 = vmul.f32 %v3302, %v3841
  %v3904 = vmul.f32 %v3303, %v3841
  %v3905 = vmul.f32 %v3304, %v3841
  %v3906 = vadd.f32 %v3773, %v3842
  %v3907 = vadd.f32 %v3774, %v3843
  %v3908 = vadd.f32 %v3775, %v3844
  %v3909 = vadd.f32 %v3776, %v3845
  %v3910 = vadd.f32 %v3777, %v3846
  %v3911 = vadd.f32 %v3778, %v3847
  %v3912 = vadd.f32 %v3779, %v3848
  %v3913 = vadd.f32 %v3780, %v3849
  %v3914 = vadd.f32 %v3781, %v3850
  %v3915 = vadd.f32 %v3782, %v3851
  %v3916 = vadd.f32 %v3783, %v3852
  %v3917 = vadd.f32 %v3784, %v3853
  %v3918 = vadd.f32 %v3785, %v3854
  %v3919 = vadd.f32 %v3786, %v3855
  %v3920 = vadd.f32 %v3787, %v3856
  %v3921 = vadd.f32 %v3788, %v3857
  %v3922 = vadd.f32 %v3789, %v3858
  %v3923 = vadd.f32 %v3790, %v3859
  %v3924 = vadd.f32 %v3791, %v3860
  %v3925 = vadd.f32 %v3792, %v3861
  %v3926 = vadd.f32 %v3793, %v3862
  %v3927 = vadd.f32 %v3794, %v3863
  %v3928 = vadd.f32 %v3795, %v3864
  %v3929 = vadd.f32 %v3796, %v3865
  %v3930 = vadd.f32 %v3797, %v3866
  %v3931 = vadd.f32 %v3798, %v3867
  %v3932 = vadd.f32 %v3799, %v3868
  %v3933 = vadd.f32 %v3800, %v3869
  %v3934 = vadd.f32 %v3801, %v3870
  %v3935 = vadd.f32 %v3802, %v3871
  %v3936 = vadd.f32 %v3803, %v3872
  %v3937 = vadd.f32 %v3804, %v3873
  %v3938 = vadd.f32 %v3805, %v3874
  %v3939 = vadd.f32 %v3806, %v3875
  %v3940 = vadd.f32 %v3807, %v3876
  %v3941 = vadd.f32 %v3808, %v3877
  %v3942 = vadd.f32 %v3809, %v3878
  %v3943 = vadd.f32 %v3810, %v3879
  %v3944 = vadd.f32 %v3811, %v3880
  %v3945 = vadd.f32 %v3812, %v3881
  %v3946 = vadd.f32 %v3813, %v3882
  %v3947 = vadd.f32 %v3814, %v3883
  %v3948 = vadd.f32 %v3815, %v3884
  %v3949 = vadd.f32 %v3816, %v3885
  %v3950 = vadd.f32 %v3817, %v3886
  %v3951 = vadd.f32 %v3818, %v3887
  %v3952 = vadd.f32 %v3819, %v3888
  %v3953 = vadd.f32 %v3820, %v3889
  %v3954 = vadd.f32 %v3821, %v3890
  %v3955 = vadd.f32 %v3822, %v3891
  %v3956 = vadd.f32 %v3823, %v3892
  %v3957 = vadd.f32 %v3824, %v3893
  %v3958 = vadd.f32 %v3825, %v3894
  %v3959 = vadd.f32 %v3826, %v3895
  %v3960 = vadd.f32 %v3827, %v3896
  %v3961 = vadd.f32 %v3828, %v3897
  %v3962 = vadd.f32 %v3829, %v3898
  %v3963 = vadd.f32 %v3830, %v3899
  %v3964 = vadd.f32 %v3831, %v3900
  %v3965 = vadd.f32 %v3832, %v3901
  %v3966 = vadd.f32 %v3833, %v3902
  %v3967 = vadd.f32 %v3834, %v3903
  %v3968 = vadd.f32 %v3835, %v3904
  %v3969 = vadd.f32 %v3836, %v3905
  %v3970 = vmul.f32 %v3906, %v3906
  %v3971 = vmul.f32 %v3907, %v3907
  %v3972 = vmul.f32 %v3908, %v3908
  %v3973 = vmul.f32 %v3909, %v3909
  %v3974 = vmul.f32 %v3910, %v3910
  %v3975 = vmul.f32 %v3911, %v3911
  %v3976 = vmul.f32 %v3912, %v3912
  %v3977 = vmul.f32 %v3913, %v3913
  %v3978 = vmul.f32 %v3914, %v3914
  %v3979 = vmul.f32 %v3915, %v3915
  %v3980 = vmul.f32 %v3916, %v3916
  %v3981 = vmul.f32 %v3917, %v3917
  %v3982 = vmul.f32 %v3918, %v3918
  %v3983 = vmul.f32 %v3919, %v3919
  %v3984 = vmul.f32 %v3920, %v3920
  %v3985 = vmul.f32 %v3921, %v3921
  %v3986 = vmul.f32 %v3922, %v3922
  %v3987 = vmul.f32 %v3923, %v3923
  %v3988 = vmul.f32 %v3924, %v3924
  %v3989 = vmul.f32 %v3925, %v3925
  %v3990 = vmul.f32 %v3926, %v3926
  %v3991 = vmul.f32 %v3927, %v3927
  %v3992 = vmul.f32 %v3928, %v3928
  %v3993 = vmul.f32 %v3929, %v3929
  %v3994 = vmul.f32 %v3930, %v3930
  %v3995 = vmul.f32 %v3931, %v3931
  %v3996 = vmul.f32 %v3932, %v3932
  %v3997 = vmul.f32 %v3933, %v3933
  %v3998 = vmul.f32 %v3934, %v3934
  %v3999 = vmul.f32 %v3935, %v3935
  %v4000 = vmul.f32 %v3936, %v3936
  %v4001 = vmul.f32 %v3937, %v3937
  %v4002 = vmul.f32 %v3938, %v3938
  %v4003 = vmul.f32 %v3939, %v3939
  %v4004 = vmul.f32 %v3940, %v3940
  %v4005 = vmul.f32 %v3941, %v3941
  %v4006 = vmul.f32 %v3942, %v3942
  %v4007 = vmul.f32 %v3943, %v3943
  %v4008 = vmul.f32 %v3944, %v3944
  %v4009 = vmul.f32 %v3945, %v3945
  %v4010 = vmul.f32 %v3946, %v3946
  %v4011 = vmul.f32 %v3947, %v3947
  %v4012 = vmul.f32 %v3948, %v3948
  %v4013 = vmul.f32 %v3949, %v3949
  %v4014 = vmul.f32 %v3950, %v3950
  %v4015 = vmul.f32 %v3951, %v3951
  %v4016 = vmul.f32 %v3952, %v3952
  %v4017 = vmul.f32 %v3953, %v3953
  %v4018 = vmul.f32 %v3954, %v3954
  %v4019 = vmul.f32 %v3955, %v3955
  %v4020 = vmul.f32 %v3956, %v3956
  %v4021 = vmul.f32 %v3957, %v3957
  %v4022 = vmul.f32 %v3958, %v3958
  %v4023 = vmul.f32 %v3959, %v3959
  %v4024 = vmul.f32 %v3960, %v3960
  %v4025 = vmul.f32 %v3961, %v3961
  %v4026 = vmul.f32 %v3962, %v3962
  %v4027 = vmul.f32 %v3963, %v3963
  %v4028 = vmul.f32 %v3964, %v3964
  %v4029 = vmul.f32 %v3965, %v3965
  %v4030 = vmul.f32 %v3966, %v3966
  %v4031 = vmul.f32 %v3967, %v3967
  %v4032 = vmul.f32 %v3968, %v3968
  %v4033 = vmul.f32 %v3969, %v3969
  %v4034 = vmul.f32 %v3906, %v3970
  %v4035 = vmul.f32 %v3907, %v3971
  %v4036 = vmul.f32 %v3908, %v3972
  %v4037 = vmul.f32 %v3909, %v3973
  %v4038 = vmul.f32 %v3910, %v3974
  %v4039 = vmul.f32 %v3911, %v3975
  %v4040 = vmul.f32 %v3912, %v3976
  %v4041 = vmul.f32 %v3913, %v3977
  %v4042 = vmul.f32 %v3914, %v3978
  %v4043 = vmul.f32 %v3915, %v3979
  %v4044 = vmul.f32 %v3916, %v3980
  %v4045 = vmul.f32 %v3917, %v3981
  %v4046 = vmul.f32 %v3918, %v3982
  %v4047 = vmul.f32 %v3919, %v3983
  %v4048 = vmul.f32 %v3920, %v3984
  %v4049 = vmul.f32 %v3921, %v3985
  %v4050 = vmul.f32 %v3922, %v3986
  %v4051 = vmul.f32 %v3923, %v3987
  %v4052 = vmul.f32 %v3924, %v3988
  %v4053 = vmul.f32 %v3925, %v3989
  %v4054 = vmul.f32 %v3926, %v3990
  %v4055 = vmul.f32 %v3927, %v3991
  %v4056 = vmul.f32 %v3928, %v3992
  %v4057 = vmul.f32 %v3929, %v3993
  %v4058 = vmul.f32 %v3930, %v3994
  %v4059 = vmul.f32 %v3931, %v3995
  %v4060 = vmul.f32 %v3932, %v3996
  %v4061 = vmul.f32 %v3933, %v3997
  %v4062 = vmul.f32 %v3934, %v3998
  %v4063 = vmul.f32 %v3935, %v3999
  %v4064 = vmul.f32 %v3936, %v4000
  %v4065 = vmul.f32 %v3937, %v4001
  %v4066 = vmul.f32 %v3938, %v4002
  %v4067 = vmul.f32 %v3939, %v4003
  %v4068 = vmul.f32 %v3940, %v4004
  %v4069 = vmul.f32 %v3941, %v4005
  %v4070 = vmul.f32 %v3942, %v4006
  %v4071 = vmul.f32 %v3943, %v4007
  %v4072 = vmul.f32 %v3944, %v4008
  %v4073 = vmul.f32 %v3945, %v4009
  %v4074 = vmul.f32 %v3946, %v4010
  %v4075 = vmul.f32 %v3947, %v4011
  %v4076 = vmul.f32 %v3948, %v4012
  %v4077 = vmul.f32 %v3949, %v4013
  %v4078 = vmul.f32 %v3950, %v4014
  %v4079 = vmul.f32 %v3951, %v4015
  %v4080 = vmul.f32 %v3952, %v4016
  %v4081 = vmul.f32 %v3953, %v4017
  %v4082 = vmul.f32 %v3954, %v4018
  %v4083 = vmul.f32 %v3955, %v4019
  %v4084 = vmul.f32 %v3956, %v4020
  %v4085 = vmul.f32 %v3957, %v4021
  %v4086 = vmul.f32 %v3958, %v4022
  %v4087 = vmul.f32 %v3959, %v4023
  %v4088 = vmul.f32 %v3960, %v4024
  %v4089 = vmul.f32 %v3961, %v4025
  %v4090 = vmul.f32 %v3962, %v4026
  %v4091 = vmul.f32 %v3963, %v4027
  %v4092 = vmul.f32 %v3964, %v4028
  %v4093 = vmul.f32 %v3965, %v4029
  %v4094 = vmul.f32 %v3966, %v4030
  %v4095 = vmul.f32 %v3967, %v4031
  %v4096 = vmul.f32 %v3968, %v4032
  %v4097 = vmul.f32 %v3969, %v4033
  %v4098 = vmul.f32 %v4034, 0.044715
  %v4099 = vmul.f32 %v4035, 0.044715
  %v4100 = vmul.f32 %v4036, 0.044715
  %v4101 = vmul.f32 %v4037, 0.044715
  %v4102 = vmul.f32 %v4038, 0.044715
  %v4103 = vmul.f32 %v4039, 0.044715
  %v4104 = vmul.f32 %v4040, 0.044715
  %v4105 = vmul.f32 %v4041, 0.044715
  %v4106 = vmul.f32 %v4042, 0.044715
  %v4107 = vmul.f32 %v4043, 0.044715
  %v4108 = vmul.f32 %v4044, 0.044715
  %v4109 = vmul.f32 %v4045, 0.044715
  %v4110 = vmul.f32 %v4046, 0.044715
  %v4111 = vmul.f32 %v4047, 0.044715
  %v4112 = vmul.f32 %v4048, 0.044715
  %v4113 = vmul.f32 %v4049, 0.044715
  %v4114 = vmul.f32 %v4050, 0.044715
  %v4115 = vmul.f32 %v4051, 0.044715
  %v4116 = vmul.f32 %v4052, 0.044715
  %v4117 = vmul.f32 %v4053, 0.044715
  %v4118 = vmul.f32 %v4054, 0.044715
  %v4119 = vmul.f32 %v4055, 0.044715
  %v4120 = vmul.f32 %v4056, 0.044715
  %v4121 = vmul.f32 %v4057, 0.044715
  %v4122 = vmul.f32 %v4058, 0.044715
  %v4123 = vmul.f32 %v4059, 0.044715
  %v4124 = vmul.f32 %v4060, 0.044715
  %v4125 = vmul.f32 %v4061, 0.044715
  %v4126 = vmul.f32 %v4062, 0.044715
  %v4127 = vmul.f32 %v4063, 0.044715
  %v4128 = vmul.f32 %v4064, 0.044715
  %v4129 = vmul.f32 %v4065, 0.044715
  %v4130 = vmul.f32 %v4066, 0.044715
  %v4131 = vmul.f32 %v4067, 0.044715
  %v4132 = vmul.f32 %v4068, 0.044715
  %v4133 = vmul.f32 %v4069, 0.044715
  %v4134 = vmul.f32 %v4070, 0.044715
  %v4135 = vmul.f32 %v4071, 0.044715
  %v4136 = vmul.f32 %v4072, 0.044715
  %v4137 = vmul.f32 %v4073, 0.044715
  %v4138 = vmul.f32 %v4074, 0.044715
  %v4139 = vmul.f32 %v4075, 0.044715
  %v4140 = vmul.f32 %v4076, 0.044715
  %v4141 = vmul.f32 %v4077, 0.044715
  %v4142 = vmul.f32 %v4078, 0.044715
  %v4143 = vmul.f32 %v4079, 0.044715
  %v4144 = vmul.f32 %v4080, 0.044715
  %v4145 = vmul.f32 %v4081, 0.044715
  %v4146 = vmul.f32 %v4082, 0.044715
  %v4147 = vmul.f32 %v4083, 0.044715
  %v4148 = vmul.f32 %v4084, 0.044715
  %v4149 = vmul.f32 %v4085, 0.044715
  %v4150 = vmul.f32 %v4086, 0.044715
  %v4151 = vmul.f32 %v4087, 0.044715
  %v4152 = vmul.f32 %v4088, 0.044715
  %v4153 = vmul.f32 %v4089, 0.044715
  %v4154 = vmul.f32 %v4090, 0.044715
  %v4155 = vmul.f32 %v4091, 0.044715
  %v4156 = vmul.f32 %v4092, 0.044715
  %v4157 = vmul.f32 %v4093, 0.044715
  %v4158 = vmul.f32 %v4094, 0.044715
  %v4159 = vmul.f32 %v4095, 0.044715
  %v4160 = vmul.f32 %v4096, 0.044715
  %v4161 = vmul.f32 %v4097, 0.044715
  %v4162 = vadd.f32 %v3906, %v4098
  %v4163 = vadd.f32 %v3907, %v4099
  %v4164 = vadd.f32 %v3908, %v4100
  %v4165 = vadd.f32 %v3909, %v4101
  %v4166 = vadd.f32 %v3910, %v4102
  %v4167 = vadd.f32 %v3911, %v4103
  %v4168 = vadd.f32 %v3912, %v4104
  %v4169 = vadd.f32 %v3913, %v4105
  %v4170 = vadd.f32 %v3914, %v4106
  %v4171 = vadd.f32 %v3915, %v4107
  %v4172 = vadd.f32 %v3916, %v4108
  %v4173 = vadd.f32 %v3917, %v4109
  %v4174 = vadd.f32 %v3918, %v4110
  %v4175 = vadd.f32 %v3919, %v4111
  %v4176 = vadd.f32 %v3920, %v4112
  %v4177 = vadd.f32 %v3921, %v4113
  %v4178 = vadd.f32 %v3922, %v4114
  %v4179 = vadd.f32 %v3923, %v4115
  %v4180 = vadd.f32 %v3924, %v4116
  %v4181 = vadd.f32 %v3925, %v4117
  %v4182 = vadd.f32 %v3926, %v4118
  %v4183 = vadd.f32 %v3927, %v4119
  %v4184 = vadd.f32 %v3928, %v4120
  %v4185 = vadd.f32 %v3929, %v4121
  %v4186 = vadd.f32 %v3930, %v4122
  %v4187 = vadd.f32 %v3931, %v4123
  %v4188 = vadd.f32 %v3932, %v4124
  %v4189 = vadd.f32 %v3933, %v4125
  %v4190 = vadd.f32 %v3934, %v4126
  %v4191 = vadd.f32 %v3935, %v4127
  %v4192 = vadd.f32 %v3936, %v4128
  %v4193 = vadd.f32 %v3937, %v4129
  %v4194 = vadd.f32 %v3938, %v4130
  %v4195 = vadd.f32 %v3939, %v4131
  %v4196 = vadd.f32 %v3940, %v4132
  %v4197 = vadd.f32 %v3941, %v4133
  %v4198 = vadd.f32 %v3942, %v4134
  %v4199 = vadd.f32 %v3943, %v4135
  %v4200 = vadd.f32 %v3944, %v4136
  %v4201 = vadd.f32 %v3945, %v4137
  %v4202 = vadd.f32 %v3946, %v4138
  %v4203 = vadd.f32 %v3947, %v4139
  %v4204 = vadd.f32 %v3948, %v4140
  %v4205 = vadd.f32 %v3949, %v4141
  %v4206 = vadd.f32 %v3950, %v4142
  %v4207 = vadd.f32 %v3951, %v4143
  %v4208 = vadd.f32 %v3952, %v4144
  %v4209 = vadd.f32 %v3953, %v4145
  %v4210 = vadd.f32 %v3954, %v4146
  %v4211 = vadd.f32 %v3955, %v4147
  %v4212 = vadd.f32 %v3956, %v4148
  %v4213 = vadd.f32 %v3957, %v4149
  %v4214 = vadd.f32 %v3958, %v4150
  %v4215 = vadd.f32 %v3959, %v4151
  %v4216 = vadd.f32 %v3960, %v4152
  %v4217 = vadd.f32 %v3961, %v4153
  %v4218 = vadd.f32 %v3962, %v4154
  %v4219 = vadd.f32 %v3963, %v4155
  %v4220 = vadd.f32 %v3964, %v4156
  %v4221 = vadd.f32 %v3965, %v4157
  %v4222 = vadd.f32 %v3966, %v4158
  %v4223 = vadd.f32 %v3967, %v4159
  %v4224 = vadd.f32 %v3968, %v4160
  %v4225 = vadd.f32 %v3969, %v4161
  %v4226 = vmul.f32 %v4162, 0.7978846
  %v4227 = vmul.f32 %v4163, 0.7978846
  %v4228 = vmul.f32 %v4164, 0.7978846
  %v4229 = vmul.f32 %v4165, 0.7978846
  %v4230 = vmul.f32 %v4166, 0.7978846
  %v4231 = vmul.f32 %v4167, 0.7978846
  %v4232 = vmul.f32 %v4168, 0.7978846
  %v4233 = vmul.f32 %v4169, 0.7978846
  %v4234 = vmul.f32 %v4170, 0.7978846
  %v4235 = vmul.f32 %v4171, 0.7978846
  %v4236 = vmul.f32 %v4172, 0.7978846
  %v4237 = vmul.f32 %v4173, 0.7978846
  %v4238 = vmul.f32 %v4174, 0.7978846
  %v4239 = vmul.f32 %v4175, 0.7978846
  %v4240 = vmul.f32 %v4176, 0.7978846
  %v4241 = vmul.f32 %v4177, 0.7978846
  %v4242 = vmul.f32 %v4178, 0.7978846
  %v4243 = vmul.f32 %v4179, 0.7978846
  %v4244 = vmul.f32 %v4180, 0.7978846
  %v4245 = vmul.f32 %v4181, 0.7978846
  %v4246 = vmul.f32 %v4182, 0.7978846
  %v4247 = vmul.f32 %v4183, 0.7978846
  %v4248 = vmul.f32 %v4184, 0.7978846
  %v4249 = vmul.f32 %v4185, 0.7978846
  %v4250 = vmul.f32 %v4186, 0.7978846
  %v4251 = vmul.f32 %v4187, 0.7978846
  %v4252 = vmul.f32 %v4188, 0.7978846
  %v4253 = vmul.f32 %v4189, 0.7978846
  %v4254 = vmul.f32 %v4190, 0.7978846
  %v4255 = vmul.f32 %v4191, 0.7978846
  %v4256 = vmul.f32 %v4192, 0.7978846
  %v4257 = vmul.f32 %v4193, 0.7978846
  %v4258 = vmul.f32 %v4194, 0.7978846
  %v4259 = vmul.f32 %v4195, 0.7978846
  %v4260 = vmul.f32 %v4196, 0.7978846
  %v4261 = vmul.f32 %v4197, 0.7978846
  %v4262 = vmul.f32 %v4198, 0.7978846
  %v4263 = vmul.f32 %v4199, 0.7978846
  %v4264 = vmul.f32 %v4200, 0.7978846
  %v4265 = vmul.f32 %v4201, 0.7978846
  %v4266 = vmul.f32 %v4202, 0.7978846
  %v4267 = vmul.f32 %v4203, 0.7978846
  %v4268 = vmul.f32 %v4204, 0.7978846
  %v4269 = vmul.f32 %v4205, 0.7978846
  %v4270 = vmul.f32 %v4206, 0.7978846
  %v4271 = vmul.f32 %v4207, 0.7978846
  %v4272 = vmul.f32 %v4208, 0.7978846
  %v4273 = vmul.f32 %v4209, 0.7978846
  %v4274 = vmul.f32 %v4210, 0.7978846
  %v4275 = vmul.f32 %v4211, 0.7978846
  %v4276 = vmul.f32 %v4212, 0.7978846
  %v4277 = vmul.f32 %v4213, 0.7978846
  %v4278 = vmul.f32 %v4214, 0.7978846
  %v4279 = vmul.f32 %v4215, 0.7978846
  %v4280 = vmul.f32 %v4216, 0.7978846
  %v4281 = vmul.f32 %v4217, 0.7978846
  %v4282 = vmul.f32 %v4218, 0.7978846
  %v4283 = vmul.f32 %v4219, 0.7978846
  %v4284 = vmul.f32 %v4220, 0.7978846
  %v4285 = vmul.f32 %v4221, 0.7978846
  %v4286 = vmul.f32 %v4222, 0.7978846
  %v4287 = vmul.f32 %v4223, 0.7978846
  %v4288 = vmul.f32 %v4224, 0.7978846
  %v4289 = vmul.f32 %v4225, 0.7978846
  %v4290 = vtanh.pop %v4226
  %v4291 = vtanh.pop %v4227
  %v4292 = vtanh.pop %v4228
  %v4293 = vtanh.pop %v4229
  %v4294 = vtanh.pop %v4230
  %v4295 = vtanh.pop %v4231
  %v4296 = vtanh.pop %v4232
  %v4297 = vtanh.pop %v4233
  %v4298 = vtanh.pop %v4234
  %v4299 = vtanh.pop %v4235
  %v4300 = vtanh.pop %v4236
  %v4301 = vtanh.pop %v4237
  %v4302 = vtanh.pop %v4238
  %v4303 = vtanh.pop %v4239
  %v4304 = vtanh.pop %v4240
  %v4305 = vtanh.pop %v4241
  %v4306 = vtanh.pop %v4242
  %v4307 = vtanh.pop %v4243
  %v4308 = vtanh.pop %v4244
  %v4309 = vtanh.pop %v4245
  %v4310 = vtanh.pop %v4246
  %v4311 = vtanh.pop %v4247
  %v4312 = vtanh.pop %v4248
  %v4313 = vtanh.pop %v4249
  %v4314 = vtanh.pop %v4250
  %v4315 = vtanh.pop %v4251
  %v4316 = vtanh.pop %v4252
  %v4317 = vtanh.pop %v4253
  %v4318 = vtanh.pop %v4254
  %v4319 = vtanh.pop %v4255
  %v4320 = vtanh.pop %v4256
  %v4321 = vtanh.pop %v4257
  %v4322 = vtanh.pop %v4258
  %v4323 = vtanh.pop %v4259
  %v4324 = vtanh.pop %v4260
  %v4325 = vtanh.pop %v4261
  %v4326 = vtanh.pop %v4262
  %v4327 = vtanh.pop %v4263
  %v4328 = vtanh.pop %v4264
  %v4329 = vtanh.pop %v4265
  %v4330 = vtanh.pop %v4266
  %v4331 = vtanh.pop %v4267
  %v4332 = vtanh.pop %v4268
  %v4333 = vtanh.pop %v4269
  %v4334 = vtanh.pop %v4270
  %v4335 = vtanh.pop %v4271
  %v4336 = vtanh.pop %v4272
  %v4337 = vtanh.pop %v4273
  %v4338 = vtanh.pop %v4274
  %v4339 = vtanh.pop %v4275
  %v4340 = vtanh.pop %v4276
  %v4341 = vtanh.pop %v4277
  %v4342 = vtanh.pop %v4278
  %v4343 = vtanh.pop %v4279
  %v4344 = vtanh.pop %v4280
  %v4345 = vtanh.pop %v4281
  %v4346 = vtanh.pop %v4282
  %v4347 = vtanh.pop %v4283
  %v4348 = vtanh.pop %v4284
  %v4349 = vtanh.pop %v4285
  %v4350 = vtanh.pop %v4286
  %v4351 = vtanh.pop %v4287
  %v4352 = vtanh.pop %v4288
  %v4353 = vtanh.pop %v4289
  %v4354 = vadd.f32 %v4290, 1.0
  %v4355 = vadd.f32 %v4291, 1.0
  %v4356 = vadd.f32 %v4292, 1.0
  %v4357 = vadd.f32 %v4293, 1.0
  %v4358 = vadd.f32 %v4294, 1.0
  %v4359 = vadd.f32 %v4295, 1.0
  %v4360 = vadd.f32 %v4296, 1.0
  %v4361 = vadd.f32 %v4297, 1.0
  %v4362 = vadd.f32 %v4298, 1.0
  %v4363 = vadd.f32 %v4299, 1.0
  %v4364 = vadd.f32 %v4300, 1.0
  %v4365 = vadd.f32 %v4301, 1.0
  %v4366 = vadd.f32 %v4302, 1.0
  %v4367 = vadd.f32 %v4303, 1.0
  %v4368 = vadd.f32 %v4304, 1.0
  %v4369 = vadd.f32 %v4305, 1.0
  %v4370 = vadd.f32 %v4306, 1.0
  %v4371 = vadd.f32 %v4307, 1.0
  %v4372 = vadd.f32 %v4308, 1.0
  %v4373 = vadd.f32 %v4309, 1.0
  %v4374 = vadd.f32 %v4310, 1.0
  %v4375 = vadd.f32 %v4311, 1.0
  %v4376 = vadd.f32 %v4312, 1.0
  %v4377 = vadd.f32 %v4313, 1.0
  %v4378 = vadd.f32 %v4314, 1.0
  %v4379 = vadd.f32 %v4315, 1.0
  %v4380 = vadd.f32 %v4316, 1.0
  %v4381 = vadd.f32 %v4317, 1.0
  %v4382 = vadd.f32 %v4318, 1.0
  %v4383 = vadd.f32 %v4319, 1.0
  %v4384 = vadd.f32 %v4320, 1.0
  %v4385 = vadd.f32 %v4321, 1.0
  %v4386 = vadd.f32 %v4322, 1.0
  %v4387 = vadd.f32 %v4323, 1.0
  %v4388 = vadd.f32 %v4324, 1.0
  %v4389 = vadd.f32 %v4325, 1.0
  %v4390 = vadd.f32 %v4326, 1.0
  %v4391 = vadd.f32 %v4327, 1.0
  %v4392 = vadd.f32 %v4328, 1.0
  %v4393 = vadd.f32 %v4329, 1.0
  %v4394 = vadd.f32 %v4330, 1.0
  %v4395 = vadd.f32 %v4331, 1.0
  %v4396 = vadd.f32 %v4332, 1.0
  %v4397 = vadd.f32 %v4333, 1.0
  %v4398 = vadd.f32 %v4334, 1.0
  %v4399 = vadd.f32 %v4335, 1.0
  %v4400 = vadd.f32 %v4336, 1.0
  %v4401 = vadd.f32 %v4337, 1.0
  %v4402 = vadd.f32 %v4338, 1.0
  %v4403 = vadd.f32 %v4339, 1.0
  %v4404 = vadd.f32 %v4340, 1.0
  %v4405 = vadd.f32 %v4341, 1.0
  %v4406 = vadd.f32 %v4342, 1.0
  %v4407 = vadd.f32 %v4343, 1.0
  %v4408 = vadd.f32 %v4344, 1.0
  %v4409 = vadd.f32 %v4345, 1.0
  %v4410 = vadd.f32 %v4346, 1.0
  %v4411 = vadd.f32 %v4347, 1.0
  %v4412 = vadd.f32 %v4348, 1.0
  %v4413 = vadd.f32 %v4349, 1.0
  %v4414 = vadd.f32 %v4350, 1.0
  %v4415 = vadd.f32 %v4351, 1.0
  %v4416 = vadd.f32 %v4352, 1.0
  %v4417 = vadd.f32 %v4353, 1.0
  %v4418 = vmul.f32 %v4354, 0.5
  %v4419 = vmul.f32 %v4355, 0.5
  %v4420 = vmul.f32 %v4356, 0.5
  %v4421 = vmul.f32 %v4357, 0.5
  %v4422 = vmul.f32 %v4358, 0.5
  %v4423 = vmul.f32 %v4359, 0.5
  %v4424 = vmul.f32 %v4360, 0.5
  %v4425 = vmul.f32 %v4361, 0.5
  %v4426 = vmul.f32 %v4362, 0.5
  %v4427 = vmul.f32 %v4363, 0.5
  %v4428 = vmul.f32 %v4364, 0.5
  %v4429 = vmul.f32 %v4365, 0.5
  %v4430 = vmul.f32 %v4366, 0.5
  %v4431 = vmul.f32 %v4367, 0.5
  %v4432 = vmul.f32 %v4368, 0.5
  %v4433 = vmul.f32 %v4369, 0.5
  %v4434 = vmul.f32 %v4370, 0.5
  %v4435 = vmul.f32 %v4371, 0.5
  %v4436 = vmul.f32 %v4372, 0.5
  %v4437 = vmul.f32 %v4373, 0.5
  %v4438 = vmul.f32 %v4374, 0.5
  %v4439 = vmul.f32 %v4375, 0.5
  %v4440 = vmul.f32 %v4376, 0.5
  %v4441 = vmul.f32 %v4377, 0.5
  %v4442 = vmul.f32 %v4378, 0.5
  %v4443 = vmul.f32 %v4379, 0.5
  %v4444 = vmul.f32 %v4380, 0.5
  %v4445 = vmul.f32 %v4381, 0.5
  %v4446 = vmul.f32 %v4382, 0.5
  %v4447 = vmul.f32 %v4383, 0.5
  %v4448 = vmul.f32 %v4384, 0.5
  %v4449 = vmul.f32 %v4385, 0.5
  %v4450 = vmul.f32 %v4386, 0.5
  %v4451 = vmul.f32 %v4387, 0.5
  %v4452 = vmul.f32 %v4388, 0.5
  %v4453 = vmul.f32 %v4389, 0.5
  %v4454 = vmul.f32 %v4390, 0.5
  %v4455 = vmul.f32 %v4391, 0.5
  %v4456 = vmul.f32 %v4392, 0.5
  %v4457 = vmul.f32 %v4393, 0.5
  %v4458 = vmul.f32 %v4394, 0.5
  %v4459 = vmul.f32 %v4395, 0.5
  %v4460 = vmul.f32 %v4396, 0.5
  %v4461 = vmul.f32 %v4397, 0.5
  %v4462 = vmul.f32 %v4398, 0.5
  %v4463 = vmul.f32 %v4399, 0.5
  %v4464 = vmul.f32 %v4400, 0.5
  %v4465 = vmul.f32 %v4401, 0.5
  %v4466 = vmul.f32 %v4402, 0.5
  %v4467 = vmul.f32 %v4403, 0.5
  %v4468 = vmul.f32 %v4404, 0.5
  %v4469 = vmul.f32 %v4405, 0.5
  %v4470 = vmul.f32 %v4406, 0.5
  %v4471 = vmul.f32 %v4407, 0.5
  %v4472 = vmul.f32 %v4408, 0.5
  %v4473 = vmul.f32 %v4409, 0.5
  %v4474 = vmul.f32 %v4410, 0.5
  %v4475 = vmul.f32 %v4411, 0.5
  %v4476 = vmul.f32 %v4412, 0.5
  %v4477 = vmul.f32 %v4413, 0.5
  %v4478 = vmul.f32 %v4414, 0.5
  %v4479 = vmul.f32 %v4415, 0.5
  %v4480 = vmul.f32 %v4416, 0.5
  %v4481 = vmul.f32 %v4417, 0.5
  %v4482 = vmul.f32 %v3906, %v4418
  %v4483 = vmul.f32 %v3907, %v4419
  %v4484 = vmul.f32 %v3908, %v4420
  %v4485 = vmul.f32 %v3909, %v4421
  %v4486 = vmul.f32 %v3910, %v4422
  %v4487 = vmul.f32 %v3911, %v4423
  %v4488 = vmul.f32 %v3912, %v4424
  %v4489 = vmul.f32 %v3913, %v4425
  %v4490 = vmul.f32 %v3914, %v4426
  %v4491 = vmul.f32 %v3915, %v4427
  %v4492 = vmul.f32 %v3916, %v4428
  %v4493 = vmul.f32 %v3917, %v4429
  %v4494 = vmul.f32 %v3918, %v4430
  %v4495 = vmul.f32 %v3919, %v4431
  %v4496 = vmul.f32 %v3920, %v4432
  %v4497 = vmul.f32 %v3921, %v4433
  %v4498 = vmul.f32 %v3922, %v4434
  %v4499 = vmul.f32 %v3923, %v4435
  %v4500 = vmul.f32 %v3924, %v4436
  %v4501 = vmul.f32 %v3925, %v4437
  %v4502 = vmul.f32 %v3926, %v4438
  %v4503 = vmul.f32 %v3927, %v4439
  %v4504 = vmul.f32 %v3928, %v4440
  %v4505 = vmul.f32 %v3929, %v4441
  %v4506 = vmul.f32 %v3930, %v4442
  %v4507 = vmul.f32 %v3931, %v4443
  %v4508 = vmul.f32 %v3932, %v4444
  %v4509 = vmul.f32 %v3933, %v4445
  %v4510 = vmul.f32 %v3934, %v4446
  %v4511 = vmul.f32 %v3935, %v4447
  %v4512 = vmul.f32 %v3936, %v4448
  %v4513 = vmul.f32 %v3937, %v4449
  %v4514 = vmul.f32 %v3938, %v4450
  %v4515 = vmul.f32 %v3939, %v4451
  %v4516 = vmul.f32 %v3940, %v4452
  %v4517 = vmul.f32 %v3941, %v4453
  %v4518 = vmul.f32 %v3942, %v4454
  %v4519 = vmul.f32 %v3943, %v4455
  %v4520 = vmul.f32 %v3944, %v4456
  %v4521 = vmul.f32 %v3945, %v4457
  %v4522 = vmul.f32 %v3946, %v4458
  %v4523 = vmul.f32 %v3947, %v4459
  %v4524 = vmul.f32 %v3948, %v4460
  %v4525 = vmul.f32 %v3949, %v4461
  %v4526 = vmul.f32 %v3950, %v4462
  %v4527 = vmul.f32 %v3951, %v4463
  %v4528 = vmul.f32 %v3952, %v4464
  %v4529 = vmul.f32 %v3953, %v4465
  %v4530 = vmul.f32 %v3954, %v4466
  %v4531 = vmul.f32 %v3955, %v4467
  %v4532 = vmul.f32 %v3956, %v4468
  %v4533 = vmul.f32 %v3957, %v4469
  %v4534 = vmul.f32 %v3958, %v4470
  %v4535 = vmul.f32 %v3959, %v4471
  %v4536 = vmul.f32 %v3960, %v4472
  %v4537 = vmul.f32 %v3961, %v4473
  %v4538 = vmul.f32 %v3962, %v4474
  %v4539 = vmul.f32 %v3963, %v4475
  %v4540 = vmul.f32 %v3964, %v4476
  %v4541 = vmul.f32 %v3965, %v4477
  %v4542 = vmul.f32 %v3966, %v4478
  %v4543 = vmul.f32 %v3967, %v4479
  %v4544 = vmul.f32 %v3968, %v4480
  %v4545 = vmul.f32 %v3969, %v4481
  %p4546 = scmp.eq.s32.totalorder 0, 0
  // Predicated region
  $region14: #{convmixer_block_nhwc.2} parent=0 // pred_check
    %p4547 = pneg %p4546
  $region15: #{convmixer_block_nhwc.2} parent=0 // pred_check_branch
    %4549 = sbr.rel (%p4547) target = $region17
  $region16: #{convmixer_block_nhwc.2} parent=0 // pred_region
    %vm4550 = vcmask 24576
    %4551 = vst.msk [vmem:[%s4] sm:$0x1] %vm4550, 0.0
    %4552 = vst.msk [vmem:[%s5] sm:$0x1] %vm4550, 0.0
  $region17: #{convmixer_block_nhwc.2} parent=0 // pred_fallthru
    _
  %v4553 = vld [vmem:[%s4] sm:$0x1]
  %v4554 = vsel %vm17, %v4482, 0.0
  %v4555 = vsel %vm17, %v4483, 0.0
  %v4556 = vadd.f32 %v4554, %v4555
  %v4557 = vsel %vm17, %v4484, 0.0
  %v4558 = vadd.f32 %v4556, %v4557
  %v4559 = vsel %vm17, %v4485, 0.0
  %v4560 = vadd.f32 %v4558, %v4559
  %v4561 = vsel %vm17, %v4486, 0.0
  %v4562 = vadd.f32 %v4560, %v4561
  %v4563 = vsel %vm17, %v4487, 0.0
  %v4564 = vadd.f32 %v4562, %v4563
  %v4565 = vsel %vm17, %v4488, 0.0
  %v4566 = vadd.f32 %v4564, %v4565
  %v4567 = vsel %vm17, %v4489, 0.0
  %v4568 = vadd.f32 %v4566, %v4567
  %v4569 = vsel %vm17, %v4490, 0.0
  %v4570 = vadd.f32 %v4568, %v4569
  %v4571 = vsel %vm17, %v4491, 0.0
  %v4572 = vadd.f32 %v4570, %v4571
  %v4573 = vsel %vm17, %v4492, 0.0
  %v4574 = vadd.f32 %v4572, %v4573
  %v4575 = vsel %vm17, %v4493, 0.0
  %v4576 = vadd.f32 %v4574, %v4575
  %v4577 = vsel %vm17, %v4494, 0.0
  %v4578 = vadd.f32 %v4576, %v4577
  %v4579 = vsel %vm17, %v4495, 0.0
  %v4580 = vadd.f32 %v4578, %v4579
  %v4581 = vsel %vm17, %v4496, 0.0
  %v4582 = vadd.f32 %v4580, %v4581
  %v4583 = vsel %vm17, %v4497, 0.0
  %v4584 = vadd.f32 %v4582, %v4583
  %v4585 = vsel %vm17, %v4498, 0.0
  %v4586 = vadd.f32 %v4584, %v4585
  %v4587 = vsel %vm17, %v4499, 0.0
  %v4588 = vadd.f32 %v4586, %v4587
  %v4589 = vsel %vm17, %v4500, 0.0
  %v4590 = vadd.f32 %v4588, %v4589
  %v4591 = vsel %vm17, %v4501, 0.0
  %v4592 = vadd.f32 %v4590, %v4591
  %v4593 = vsel %vm17, %v4502, 0.0
  %v4594 = vadd.f32 %v4592, %v4593
  %v4595 = vsel %vm17, %v4503, 0.0
  %v4596 = vadd.f32 %v4594, %v4595
  %v4597 = vsel %vm17, %v4504, 0.0
  %v4598 = vadd.f32 %v4596, %v4597
  %v4599 = vsel %vm17, %v4505, 0.0
  %v4600 = vadd.f32 %v4598, %v4599
  %v4601 = vsel %vm17, %v4506, 0.0
  %v4602 = vadd.f32 %v4600, %v4601
  %v4603 = vsel %vm17, %v4507, 0.0
  %v4604 = vadd.f32 %v4602, %v4603
  %v4605 = vsel %vm17, %v4508, 0.0
  %v4606 = vadd.f32 %v4604, %v4605
  %v4607 = vsel %vm17, %v4509, 0.0
  %v4608 = vadd.f32 %v4606, %v4607
  %v4609 = vsel %vm17, %v4510, 0.0
  %v4610 = vadd.f32 %v4608, %v4609
  %v4611 = vsel %vm17, %v4511, 0.0
  %v4612 = vadd.f32 %v4610, %v4611
  %v4613 = vsel %vm17, %v4512, 0.0
  %v4614 = vadd.f32 %v4612, %v4613
  %v4615 = vsel %vm17, %v4513, 0.0
  %v4616 = vadd.f32 %v4614, %v4615
  %v4617 = vsel %vm17, %v4514, 0.0
  %v4618 = vadd.f32 %v4616, %v4617
  %v4619 = vsel %vm17, %v4515, 0.0
  %v4620 = vadd.f32 %v4618, %v4619
  %v4621 = vsel %vm17, %v4516, 0.0
  %v4622 = vadd.f32 %v4620, %v4621
  %v4623 = vsel %vm17, %v4517, 0.0
  %v4624 = vadd.f32 %v4622, %v4623
  %v4625 = vsel %vm17, %v4518, 0.0
  %v4626 = vadd.f32 %v4624, %v4625
  %v4627 = vsel %vm17, %v4519, 0.0
  %v4628 = vadd.f32 %v4626, %v4627
  %v4629 = vsel %vm17, %v4520, 0.0
  %v4630 = vadd.f32 %v4628, %v4629
  %v4631 = vsel %vm17, %v4521, 0.0
  %v4632 = vadd.f32 %v4630, %v4631
  %v4633 = vsel %vm17, %v4522, 0.0
  %v4634 = vadd.f32 %v4632, %v4633
  %v4635 = vsel %vm17, %v4523, 0.0
  %v4636 = vadd.f32 %v4634, %v4635
  %v4637 = vsel %vm17, %v4524, 0.0
  %v4638 = vadd.f32 %v4636, %v4637
  %v4639 = vsel %vm17, %v4525, 0.0
  %v4640 = vadd.f32 %v4638, %v4639
  %v4641 = vsel %vm17, %v4526, 0.0
  %v4642 = vadd.f32 %v4640, %v4641
  %v4643 = vsel %vm17, %v4527, 0.0
  %v4644 = vadd.f32 %v4642, %v4643
  %v4645 = vsel %vm17, %v4528, 0.0
  %v4646 = vadd.f32 %v4644, %v4645
  %v4647 = vsel %vm17, %v4529, 0.0
  %v4648 = vadd.f32 %v4646, %v4647
  %v4649 = vsel %vm17, %v4530, 0.0
  %v4650 = vadd.f32 %v4648, %v4649
  %v4651 = vsel %vm17, %v4531, 0.0
  %v4652 = vadd.f32 %v4650, %v4651
  %v4653 = vsel %vm17, %v4532, 0.0
  %v4654 = vadd.f32 %v4652, %v4653
  %v4655 = vsel %vm17, %v4533, 0.0
  %v4656 = vadd.f32 %v4654, %v4655
  %v4657 = vsel %vm17, %v4534, 0.0
  %v4658 = vadd.f32 %v4656, %v4657
  %v4659 = vsel %vm17, %v4535, 0.0
  %v4660 = vadd.f32 %v4658, %v4659
  %v4661 = vsel %vm17, %v4536, 0.0
  %v4662 = vadd.f32 %v4660, %v4661
  %v4663 = vsel %vm17, %v4537, 0.0
  %v4664 = vadd.f32 %v4662, %v4663
  %v4665 = vsel %vm17, %v4538, 0.0
  %v4666 = vadd.f32 %v4664, %v4665
  %v4667 = vsel %vm17, %v4539, 0.0
  %v4668 = vadd.f32 %v4666, %v4667
  %v4669 = vsel %vm17, %v4540, 0.0
  %v4670 = vadd.f32 %v4668, %v4669
  %v4671 = vsel %vm17, %v4541, 0.0
  %v4672 = vadd.f32 %v4670, %v4671
  %v4673 = vsel %vm17, %v4542, 0.0
  %v4674 = vadd.f32 %v4672, %v4673
  %v4675 = vsel %vm17, %v4543, 0.0
  %v4676 = vadd.f32 %v4674, %v4675
  %v4677 = vsel %vm17, %v4544, 0.0
  %v4678 = vadd.f32 %v4676, %v4677
  %v4679 = vsel %vm17, %v4545, 0.0
  %v4680 = vadd.f32 %v4678, %v4679
  %v4681 = vrot.slane %v4680, 4
  %v4682 = vadd.f32 %v4680, %v4681
  %v4683 = vrot.slane %v4682, 2
  %v4684 = vadd.f32 %v4682, %v4683
  %v4685 = vrot.slane %v4684, 1
  %v4686 = vadd.f32 %v4684, %v4685
  %v4687 = vadd.f32 %v4553, %v4686
  %vm4688 = vcmask 24576
  %4689 = vst.msk [vmem:[%s4] sm:$0x1] %vm4688, %v4687
  %v4690 = vld [vmem:[%s5] sm:$0x1]
  %v4691 = vmul.f32 %v4482, %v4482
  %v4692 = vmul.f32 %v4483, %v4483
  %v4693 = vmul.f32 %v4484, %v4484
  %v4694 = vmul.f32 %v4485, %v4485
  %v4695 = vmul.f32 %v4486, %v4486
  %v4696 = vmul.f32 %v4487, %v4487
  %v4697 = vmul.f32 %v4488, %v4488
  %v4698 = vmul.f32 %v4489, %v4489
  %v4699 = vmul.f32 %v4490, %v4490
  %v4700 = vmul.f32 %v4491, %v4491
  %v4701 = vmul.f32 %v4492, %v4492
  %v4702 = vmul.f32 %v4493, %v4493
  %v4703 = vmul.f32 %v4494, %v4494
  %v4704 = vmul.f32 %v4495, %v4495
  %v4705 = vmul.f32 %v4496, %v4496
  %v4706 = vmul.f32 %v4497, %v4497
  %v4707 = vmul.f32 %v4498, %v4498
  %v4708 = vmul.f32 %v4499, %v4499
  %v4709 = vmul.f32 %v4500, %v4500
  %v4710 = vmul.f32 %v4501, %v4501
  %v4711 = vmul.f32 %v4502, %v4502
  %v4712 = vmul.f32 %v4503, %v4503
  %v4713 = vmul.f32 %v4504, %v4504
  %v4714 = vmul.f32 %v4505, %v4505
  %v4715 = vmul.f32 %v4506, %v4506
  %v4716 = vmul.f32 %v4507, %v4507
  %v4717 = vmul.f32 %v4508, %v4508
  %v4718 = vmul.f32 %v4509, %v4509
  %v4719 = vmul.f32 %v4510, %v4510
  %v4720 = vmul.f32 %v4511, %v4511
  %v4721 = vmul.f32 %v4512, %v4512
  %v4722 = vmul.f32 %v4513, %v4513
  %v4723 = vmul.f32 %v4514, %v4514
  %v4724 = vmul.f32 %v4515, %v4515
  %v4725 = vmul.f32 %v4516, %v4516
  %v4726 = vmul.f32 %v4517, %v4517
  %v4727 = vmul.f32 %v4518, %v4518
  %v4728 = vmul.f32 %v4519, %v4519
  %v4729 = vmul.f32 %v4520, %v4520
  %v4730 = vmul.f32 %v4521, %v4521
  %v4731 = vmul.f32 %v4522, %v4522
  %v4732 = vmul.f32 %v4523, %v4523
  %v4733 = vmul.f32 %v4524, %v4524
  %v4734 = vmul.f32 %v4525, %v4525
  %v4735 = vmul.f32 %v4526, %v4526
  %v4736 = vmul.f32 %v4527, %v4527
  %v4737 = vmul.f32 %v4528, %v4528
  %v4738 = vmul.f32 %v4529, %v4529
  %v4739 = vmul.f32 %v4530, %v4530
  %v4740 = vmul.f32 %v4531, %v4531
  %v4741 = vmul.f32 %v4532, %v4532
  %v4742 = vmul.f32 %v4533, %v4533
  %v4743 = vmul.f32 %v4534, %v4534
  %v4744 = vmul.f32 %v4535, %v4535
  %v4745 = vmul.f32 %v4536, %v4536
  %v4746 = vmul.f32 %v4537, %v4537
  %v4747 = vmul.f32 %v4538, %v4538
  %v4748 = vmul.f32 %v4539, %v4539
  %v4749 = vmul.f32 %v4540, %v4540
  %v4750 = vmul.f32 %v4541, %v4541
  %v4751 = vmul.f32 %v4542, %v4542
  %v4752 = vmul.f32 %v4543, %v4543
  %v4753 = vmul.f32 %v4544, %v4544
  %v4754 = vmul.f32 %v4545, %v4545
  %v4755 = vsel %vm17, %v4691, 0.0
  %v4756 = vsel %vm17, %v4692, 0.0
  %v4757 = vadd.f32 %v4755, %v4756
  %v4758 = vsel %vm17, %v4693, 0.0
  %v4759 = vadd.f32 %v4757, %v4758
  %v4760 = vsel %vm17, %v4694, 0.0
  %v4761 = vadd.f32 %v4759, %v4760
  %v4762 = vsel %vm17, %v4695, 0.0
  %v4763 = vadd.f32 %v4761, %v4762
  %v4764 = vsel %vm17, %v4696, 0.0
  %v4765 = vadd.f32 %v4763, %v4764
  %v4766 = vsel %vm17, %v4697, 0.0
  %v4767 = vadd.f32 %v4765, %v4766
  %v4768 = vsel %vm17, %v4698, 0.0
  %v4769 = vadd.f32 %v4767, %v4768
  %v4770 = vsel %vm17, %v4699, 0.0
  %v4771 = vadd.f32 %v4769, %v4770
  %v4772 = vsel %vm17, %v4700, 0.0
  %v4773 = vadd.f32 %v4771, %v4772
  %v4774 = vsel %vm17, %v4701, 0.0
  %v4775 = vadd.f32 %v4773, %v4774
  %v4776 = vsel %vm17, %v4702, 0.0
  %v4777 = vadd.f32 %v4775, %v4776
  %v4778 = vsel %vm17, %v4703, 0.0
  %v4779 = vadd.f32 %v4777, %v4778
  %v4780 = vsel %vm17, %v4704, 0.0
  %v4781 = vadd.f32 %v4779, %v4780
  %v4782 = vsel %vm17, %v4705, 0.0
  %v4783 = vadd.f32 %v4781, %v4782
  %v4784 = vsel %vm17, %v4706, 0.0
  %v4785 = vadd.f32 %v4783, %v4784
  %v4786 = vsel %vm17, %v4707, 0.0
  %v4787 = vadd.f32 %v4785, %v4786
  %v4788 = vsel %vm17, %v4708, 0.0
  %v4789 = vadd.f32 %v4787, %v4788
  %v4790 = vsel %vm17, %v4709, 0.0
  %v4791 = vadd.f32 %v4789, %v4790
  %v4792 = vsel %vm17, %v4710, 0.0
  %v4793 = vadd.f32 %v4791, %v4792
  %v4794 = vsel %vm17, %v4711, 0.0
  %v4795 = vadd.f32 %v4793, %v4794
  %v4796 = vsel %vm17, %v4712, 0.0
  %v4797 = vadd.f32 %v4795, %v4796
  %v4798 = vsel %vm17, %v4713, 0.0
  %v4799 = vadd.f32 %v4797, %v4798
  %v4800 = vsel %vm17, %v4714, 0.0
  %v4801 = vadd.f32 %v4799, %v4800
  %v4802 = vsel %vm17, %v4715, 0.0
  %v4803 = vadd.f32 %v4801, %v4802
  %v4804 = vsel %vm17, %v4716, 0.0
  %v4805 = vadd.f32 %v4803, %v4804
  %v4806 = vsel %vm17, %v4717, 0.0
  %v4807 = vadd.f32 %v4805, %v4806
  %v4808 = vsel %vm17, %v4718, 0.0
  %v4809 = vadd.f32 %v4807, %v4808
  %v4810 = vsel %vm17, %v4719, 0.0
  %v4811 = vadd.f32 %v4809, %v4810
  %v4812 = vsel %vm17, %v4720, 0.0
  %v4813 = vadd.f32 %v4811, %v4812
  %v4814 = vsel %vm17, %v4721, 0.0
  %v4815 = vadd.f32 %v4813, %v4814
  %v4816 = vsel %vm17, %v4722, 0.0
  %v4817 = vadd.f32 %v4815, %v4816
  %v4818 = vsel %vm17, %v4723, 0.0
  %v4819 = vadd.f32 %v4817, %v4818
  %v4820 = vsel %vm17, %v4724, 0.0
  %v4821 = vadd.f32 %v4819, %v4820
  %v4822 = vsel %vm17, %v4725, 0.0
  %v4823 = vadd.f32 %v4821, %v4822
  %v4824 = vsel %vm17, %v4726, 0.0
  %v4825 = vadd.f32 %v4823, %v4824
  %v4826 = vsel %vm17, %v4727, 0.0
  %v4827 = vadd.f32 %v4825, %v4826
  %v4828 = vsel %vm17, %v4728, 0.0
  %v4829 = vadd.f32 %v4827, %v4828
  %v4830 = vsel %vm17, %v4729, 0.0
  %v4831 = vadd.f32 %v4829, %v4830
  %v4832 = vsel %vm17, %v4730, 0.0
  %v4833 = vadd.f32 %v4831, %v4832
  %v4834 = vsel %vm17, %v4731, 0.0
  %v4835 = vadd.f32 %v4833, %v4834
  %v4836 = vsel %vm17, %v4732, 0.0
  %v4837 = vadd.f32 %v4835, %v4836
  %v4838 = vsel %vm17, %v4733, 0.0
  %v4839 = vadd.f32 %v4837, %v4838
  %v4840 = vsel %vm17, %v4734, 0.0
  %v4841 = vadd.f32 %v4839, %v4840
  %v4842 = vsel %vm17, %v4735, 0.0
  %v4843 = vadd.f32 %v4841, %v4842
  %v4844 = vsel %vm17, %v4736, 0.0
  %v4845 = vadd.f32 %v4843, %v4844
  %v4846 = vsel %vm17, %v4737, 0.0
  %v4847 = vadd.f32 %v4845, %v4846
  %v4848 = vsel %vm17, %v4738, 0.0
  %v4849 = vadd.f32 %v4847, %v4848
  %v4850 = vsel %vm17, %v4739, 0.0
  %v4851 = vadd.f32 %v4849, %v4850
  %v4852 = vsel %vm17, %v4740, 0.0
  %v4853 = vadd.f32 %v4851, %v4852
  %v4854 = vsel %vm17, %v4741, 0.0
  %v4855 = vadd.f32 %v4853, %v4854
  %v4856 = vsel %vm17, %v4742, 0.0
  %v4857 = vadd.f32 %v4855, %v4856
  %v4858 = vsel %vm17, %v4743, 0.0
  %v4859 = vadd.f32 %v4857, %v4858
  %v4860 = vsel %vm17, %v4744, 0.0
  %v4861 = vadd.f32 %v4859, %v4860
  %v4862 = vsel %vm17, %v4745, 0.0
  %v4863 = vadd.f32 %v4861, %v4862
  %v4864 = vsel %vm17, %v4746, 0.0
  %v4865 = vadd.f32 %v4863, %v4864
  %v4866 = vsel %vm17, %v4747, 0.0
  %v4867 = vadd.f32 %v4865, %v4866
  %v4868 = vsel %vm17, %v4748, 0.0
  %v4869 = vadd.f32 %v4867, %v4868
  %v4870 = vsel %vm17, %v4749, 0.0
  %v4871 = vadd.f32 %v4869, %v4870
  %v4872 = vsel %vm17, %v4750, 0.0
  %v4873 = vadd.f32 %v4871, %v4872
  %v4874 = vsel %vm17, %v4751, 0.0
  %v4875 = vadd.f32 %v4873, %v4874
  %v4876 = vsel %vm17, %v4752, 0.0
  %v4877 = vadd.f32 %v4875, %v4876
  %v4878 = vsel %vm17, %v4753, 0.0
  %v4879 = vadd.f32 %v4877, %v4878
  %v4880 = vsel %vm17, %v4754, 0.0
  %v4881 = vadd.f32 %v4879, %v4880
  %v4882 = vrot.slane %v4881, 4
  %v4883 = vadd.f32 %v4881, %v4882
  %v4884 = vrot.slane %v4883, 2
  %v4885 = vadd.f32 %v4883, %v4884
  %v4886 = vrot.slane %v4885, 1
  %v4887 = vadd.f32 %v4885, %v4886
  %v4888 = vadd.f32 %v4690, %v4887
  %4889 = vst.msk [vmem:[%s5] sm:$0x1] %vm4688, %v4888
  %4890 = vst.msk [vmem:[%s3] sm:$0xff] %vm17, %v4482
  %4891 = vst.msk [vmem:[%s3 + $0x8] sm:$0xff] %vm17, %v4483
  %4892 = vst.msk [vmem:[%s3 + $0x10] sm:$0xff] %vm17, %v4484
  %4893 = vst.msk [vmem:[%s3 + $0x18] sm:$0xff] %vm17, %v4485
  %4894 = vst.msk [vmem:[%s3 + $0x20] sm:$0xff] %vm17, %v4486
  %4895 = vst.msk [vmem:[%s3 + $0x28] sm:$0xff] %vm17, %v4487
  %4896 = vst.msk [vmem:[%s3 + $0x30] sm:$0xff] %vm17, %v4488
  %4897 = vst.msk [vmem:[%s3 + $0x38] sm:$0xff] %vm17, %v4489
  %4898 = vst.msk [vmem:[%s3 + $0x40] sm:$0xff] %vm17, %v4490
  %4899 = vst.msk [vmem:[%s3 + $0x48] sm:$0xff] %vm17, %v4491
  %4900 = vst.msk [vmem:[%s3 + $0x50] sm:$0xff] %vm17, %v4492
  %4901 = vst.msk [vmem:[%s3 + $0x58] sm:$0xff] %vm17, %v4493
  %4902 = vst.msk [vmem:[%s3 + $0x60] sm:$0xff] %vm17, %v4494
  %4903 = vst.msk [vmem:[%s3 + $0x68] sm:$0xff] %vm17, %v4495
  %4904 = vst.msk [vmem:[%s3 + $0x70] sm:$0xff] %vm17, %v4496
  %4905 = vst.msk [vmem:[%s3 + $0x78] sm:$0xff] %vm17, %v4497
  %4906 = vst.msk [vmem:[%s3 + $0x80] sm:$0xff] %vm17, %v4498
  %4907 = vst.msk [vmem:[%s3 + $0x88] sm:$0xff] %vm17, %v4499
  %4908 = vst.msk [vmem:[%s3 + $0x90] sm:$0xff] %vm17, %v4500
  %4909 = vst.msk [vmem:[%s3 + $0x98] sm:$0xff] %vm17, %v4501
  %4910 = vst.msk [vmem:[%s3 + $0xa0] sm:$0xff] %vm17, %v4502
  %4911 = vst.msk [vmem:[%s3 + $0xa8] sm:$0xff] %vm17, %v4503
  %4912 = vst.msk [vmem:[%s3 + $0xb0] sm:$0xff] %vm17, %v4504
  %4913 = vst.msk [vmem:[%s3 + $0xb8] sm:$0xff] %vm17, %v4505
  %4914 = vst.msk [vmem:[%s3 + $0xc0] sm:$0xff] %vm17, %v4506
  %4915 = vst.msk [vmem:[%s3 + $0xc8] sm:$0xff] %vm17, %v4507
  %4916 = vst.msk [vmem:[%s3 + $0xd0] sm:$0xff] %vm17, %v4508
  %4917 = vst.msk [vmem:[%s3 + $0xd8] sm:$0xff] %vm17, %v4509
  %4918 = vst.msk [vmem:[%s3 + $0xe0] sm:$0xff] %vm17, %v4510
  %4919 = vst.msk [vmem:[%s3 + $0xe8] sm:$0xff] %vm17, %v4511
  %4920 = vst.msk [vmem:[%s3 + $0xf0] sm:$0xff] %vm17, %v4512
  %4921 = vst.msk [vmem:[%s3 + $0xf8] sm:$0xff] %vm17, %v4513
  %4922 = vst.msk [vmem:[%s3 + $0x100] sm:$0xff] %vm17, %v4514
  %4923 = vst.msk [vmem:[%s3 + $0x108] sm:$0xff] %vm17, %v4515
  %4924 = vst.msk [vmem:[%s3 + $0x110] sm:$0xff] %vm17, %v4516
  %4925 = vst.msk [vmem:[%s3 + $0x118] sm:$0xff] %vm17, %v4517
  %4926 = vst.msk [vmem:[%s3 + $0x120] sm:$0xff] %vm17, %v4518
  %4927 = vst.msk [vmem:[%s3 + $0x128] sm:$0xff] %vm17, %v4519
  %4928 = vst.msk [vmem:[%s3 + $0x130] sm:$0xff] %vm17, %v4520
  %4929 = vst.msk [vmem:[%s3 + $0x138] sm:$0xff] %vm17, %v4521
  %4930 = vst.msk [vmem:[%s3 + $0x140] sm:$0xff] %vm17, %v4522
  %4931 = vst.msk [vmem:[%s3 + $0x148] sm:$0xff] %vm17, %v4523
  %4932 = vst.msk [vmem:[%s3 + $0x150] sm:$0xff] %vm17, %v4524
  %4933 = vst.msk [vmem:[%s3 + $0x158] sm:$0xff] %vm17, %v4525
  %4934 = vst.msk [vmem:[%s3 + $0x160] sm:$0xff] %vm17, %v4526
  %4935 = vst.msk [vmem:[%s3 + $0x168] sm:$0xff] %vm17, %v4527
  %4936 = vst.msk [vmem:[%s3 + $0x170] sm:$0xff] %vm17, %v4528
  %4937 = vst.msk [vmem:[%s3 + $0x178] sm:$0xff] %vm17, %v4529
  %4938 = vst.msk [vmem:[%s3 + $0x180] sm:$0xff] %vm17, %v4530
  %4939 = vst.msk [vmem:[%s3 + $0x188] sm:$0xff] %vm17, %v4531
  %4940 = vst.msk [vmem:[%s3 + $0x190] sm:$0xff] %vm17, %v4532
  %4941 = vst.msk [vmem:[%s3 + $0x198] sm:$0xff] %vm17, %v4533
  %4942 = vst.msk [vmem:[%s3 + $0x1a0] sm:$0xff] %vm17, %v4534
  %4943 = vst.msk [vmem:[%s3 + $0x1a8] sm:$0xff] %vm17, %v4535
  %4944 = vst.msk [vmem:[%s3 + $0x1b0] sm:$0xff] %vm17, %v4536
  %4945 = vst.msk [vmem:[%s3 + $0x1b8] sm:$0xff] %vm17, %v4537
  %4946 = vst.msk [vmem:[%s3 + $0x1c0] sm:$0xff] %vm17, %v4538
  %4947 = vst.msk [vmem:[%s3 + $0x1c8] sm:$0xff] %vm17, %v4539
  %4948 = vst.msk [vmem:[%s3 + $0x1d0] sm:$0xff] %vm17, %v4540
  %4949 = vst.msk [vmem:[%s3 + $0x1d8] sm:$0xff] %vm17, %v4541
  %4950 = vst.msk [vmem:[%s3 + $0x1e0] sm:$0xff] %vm17, %v4542
  %4951 = vst.msk [vmem:[%s3 + $0x1e8] sm:$0xff] %vm17, %v4543
  %4952 = vst.msk [vmem:[%s3 + $0x1f0] sm:$0xff] %vm17, %v4544
  %4953 = vst.msk [vmem:[%s3 + $0x1f8] sm:$0xff] %vm17, %v4545
  // Predicated region
  $region18: #{convmixer_block_nhwc.2} parent=0 // pred_check
    _
  $region19: #{convmixer_block_nhwc.2} parent=0 // pred_check_branch
    %4955 = sbr.rel (0) target = $region21
  $region20: #{convmixer_block_nhwc.2} parent=0 // pred_region
    _
  $region21: #{convmixer_block_nhwc.2} parent=0 // pred_fallthru
    _
  // Predicated region
  $region22: #{convmixer_block_nhwc.2} parent=0 // pred_check
    _
  $region23: #{convmixer_block_nhwc.2} parent=0 // pred_check_branch
    %4957 = sbr.rel (0) target = $region25
  $region24: #{convmixer_block_nhwc.2} parent=0 // pred_region
    _
  $region25: #{convmixer_block_nhwc.2} parent=0 // pred_fallthru
    _
  // Predicated region
  $region26: #{convmixer_block_nhwc.2} parent=0 // pred_check
    _
  $region27: #{convmixer_block_nhwc.2} parent=0 // pred_check_branch
    %4959 = sbr.rel (0) target = $region29
  $region28: #{convmixer_block_nhwc.2} parent=0 // pred_region
    _
  $region29: #{convmixer_block_nhwc.2} parent=0 // pred_fallthru
    _
  // Predicated region
  $region30: #{convmixer_block_nhwc.2} parent=0 // pred_check
    _
  $region31: #{convmixer_block_nhwc.2} parent=0 // pred_check_branch
    %4961 = sbr.rel (0) target = $region33
  $region32: #{convmixer_block_nhwc.2} parent=0 // pred_region
    _
  $region33: #{convmixer_block_nhwc.2} parent=0 // pred_fallthru
    _
  // Predicated region
  $region34: #{convmixer_block_nhwc.2} parent=0 // pred_check
    _
  $region35: #{convmixer_block_nhwc.2} parent=0 // pred_check_branch
    %4963 = sbr.rel (0) target = $region37
  $region36: #{convmixer_block_nhwc.2} parent=0 // pred_region
    _
  $region37: #{convmixer_block_nhwc.2} parent=0 // pred_fallthru
    _
  // Predicated region
  $region38: #{convmixer_block_nhwc.2} parent=0 // pred_check
    _
  $region39: #{convmixer_block_nhwc.2} parent=0 // pred_check_branch
    %4965 = sbr.rel (0) target = $region41
  $region40: #{convmixer_block_nhwc.2} parent=0 // pred_region
    _
  $region41: #{convmixer_block_nhwc.2} parent=0 // pred_fallthru
    _

</llo_original>
